<compile_context>
chip_gen: v7x
topology: tpu7x:2x2x1
jax: 0.10.0
libtpu: 0.0.40
codegen_flags: <defaults>
</compile_context>

<pallas_src>
import math
from functools import partial

import jax
import jax.numpy as jnp
from jax.experimental import pallas as pl
from jax.experimental.pallas import tpu as pltpu


# ----------------------------- fused Pallas kernel -------------------------- #

def _net_mnist_kernel(p1_ref, w1_ref, b1_ref, w2_ref, b2_ref,
                      wf1_ref, bf1_ref, wf2_ref, bf2_ref, out_ref, *, tb):
    f32 = jnp.float32
    bf16 = jnp.bfloat16

    # ---- conv1: ONE MXU matmul; K packs (pool-window q, tap t) -------------
    # p1 rows = (b, h1, w1pad) pooled coords; K lanes = q*25 + t (100 useful).
    # Output columns: lane-tile 0 holds windows {q0,q1}, tile 1 holds {q2,q3};
    # within each 64-lane half the 10 channels are replicated at lanes 10*j+c.
    p1 = p1_ref[0]                                               # [tb*192, 128] bf16
    y1 = jnp.dot(p1, w1_ref[...], preferred_element_type=f32)    # [tb*192, 256] f32

    # ---- maxpool 2x2 = max over the window lane groups; bias after pool ----
    m = jnp.maximum(y1[:, :128], y1[:, 128:])                    # {q0|q2, q1|q3}
    pool1 = jnp.maximum(m[:, :64], m[:, 64:])                    # [tb*192, 64]
    pool1 = jnp.maximum(pool1 + b1_ref[...], 0.0)                # bias + ReLU
    # Hoisted bf16 cast (once, not per conv2 tap).
    pool1 = pool1.astype(bf16).reshape(tb, 12, 16, 64)           # lanes 10*j+c, zeros elsewhere

    # ---- conv2: 5 per-ki matmuls, K packs (kj, cin) -------------------------
    # lhs_ki[b,oh,ow, 10*kj+c] = pool1[b, oh+ki, ow+kj, c]; replicas + disjoint
    # lane masks mean assembly is select + add (exact), no lane shuffles.
    lanes = jax.lax.broadcasted_iota(jnp.int32, (1, 1, 1, 64), 3)
    lhs = [None] * 5
    for kj in range(5):                                          # kj (sublane) slice hoisted
        mask = (lanes >= 10 * kj) & (lanes < 10 * kj + 10)
        col = jnp.where(mask, pool1[:, :, kj:kj + 8, :],
                        jnp.zeros((), dtype=bf16))               # [tb, 12, 8, 64]
        for ki in range(5):
            piece = col[:, ki:ki + 8, :, :]                      # cheap row-range slice
            lhs[ki] = piece if lhs[ki] is None else lhs[ki] + piece

    acc = jnp.zeros((tb * 64, 128), f32)                         # rows = b*64 + oh*8 + ow
    for ki in range(5):
        acc = acc + jnp.dot(lhs[ki].reshape(tb * 64, 64), w2_ref[ki],
                            preferred_element_type=f32)

    # ---- maxpool 2x2, bias (after pool), ReLU; gather fc1 features ----------
    a = acc.reshape(tb, 4, 2, 8, 128)                            # [b, h2, sh, ow2, c]
    arow = jnp.maximum(a[:, :, 0], a[:, :, 1]) + b2_ref[...]     # [tb, 4, 8, 128]
    feats = []
    for r in range(16):                                          # r = h2*4 + w2 (matches view(-1,320))
        hh, ww = r // 4, r % 4
        f = jnp.maximum(jnp.maximum(arow[:, hh, 2 * ww, :],
                                    arow[:, hh, 2 * ww + 1, :]), 0.0)
        feats.append(f.astype(bf16))
    fvec = jnp.concatenate(feats, axis=-1)                       # [tb, 2048] bf16 (tile-aligned concat)

    # ---- fc1 (+ReLU) and fc2: one MXU matmul each ---------------------------
    h = jnp.dot(fvec, wf1_ref[...], preferred_element_type=f32) + bf1_ref[...]
    h = jnp.maximum(h, 0.0)
    out = jnp.dot(h.astype(bf16), wf2_ref[...], preferred_element_type=f32) + bf2_ref[...]
    out_ref[0] = out


# ------------------------------- XLA glue ----------------------------------- #

def _conv1_patches(x):
    """x: [B, 1, 28, 28] f32 -> q-packed im2col patches [B*192, 128] bf16.

    Row = (b, pooled h1, pooled w1[pad 12->16]); lane = q*25 + t where q is the
    2x2 pool-window position and t = 5*ki + kj the conv1 tap (100 useful lanes).
    """
    # NOTE: patches are built in XLA; on v5e an in-kernel build from the raw
    # 3KiB/image would cut HBM traffic further (less critical on v6e/v7x).
    B = x.shape[0]
    img = x[:, 0]                                                # [B, 28, 28]
    cols = jnp.stack([img[:, ki:ki + 24, kj:kj + 24]
                      for ki in range(5) for kj in range(5)], axis=-1)     # [B,24,24,25]
    slabs = jnp.stack([cols[:, qi::2, qj::2, :]
                       for qi in range(2) for qj in range(2)], axis=3)     # [B,12,12,4,25]
    pat = slabs.reshape(B, 12, 12, 100)
    pat = jnp.pad(pat, ((0, 0), (0, 0), (0, 4), (0, 28)))                  # [B,12,16,128]
    return pat.reshape(B * 192, 128).astype(jnp.bfloat16)


def net_mnist_forward(x, packed):
    """Matches Net_mnist.forward (inference; conv2_drop never applied, no log_softmax)."""
    (W1p, b1p, W2p, b2p, Wf1p, bf1p, Wf2p, bf2p) = packed
    B = x.shape[0]
    if B >= 64:
        TB = 32
    elif B >= 32:
        TB = 16
    elif B >= 16:
        TB = 8
    elif B >= 2:
        TB = (B + 1) // 2        # keep >= 2 grid steps so both cores get work
    else:
        TB = 1
    G = -(-B // TB)
    Bp = G * TB
    if Bp != B:
        x = jnp.pad(x, ((0, Bp - B), (0, 0), (0, 0), (0, 0)))

    p1 = _conv1_patches(x).reshape(G, TB * 192, 128)

    flops = 2 * Bp * (192 * 128 * 256 + 5 * 64 * 64 * 128 + 2048 * 128 + 128 * 128)
    bytes_accessed = (p1.size * 2
                      + (W1p.size + W2p.size + Wf1p.size + Wf2p.size) * 2
                      + (b1p.size + b2p.size + bf1p.size + bf2p.size) * 4
                      + Bp * 128 * 4)

    out = pl.pallas_call(
        partial(_net_mnist_kernel, tb=TB),
        out_shape=jax.ShapeDtypeStruct((G, TB, 128), jnp.float32),
        grid=(G,),
        in_specs=[
            pl.BlockSpec((1, TB * 192, 128), lambda i: (i, 0, 0)),  # conv1 q-packed patches
            pl.BlockSpec((128, 256), lambda i: (0, 0)),             # W1 (q,tap) x replicated chans
            pl.BlockSpec((1, 64), lambda i: (0, 0)),                # b1 (replicated)
            pl.BlockSpec((5, 64, 128), lambda i: (0, 0, 0)),        # W2 per-ki, K = kj*10 + cin
            pl.BlockSpec((1, 128), lambda i: (0, 0)),               # b2
            pl.BlockSpec((2048, 128), lambda i: (0, 0)),            # fc1 (single tile)
            pl.BlockSpec((1, 128), lambda i: (0, 0)),               # bf1
            pl.BlockSpec((128, 128), lambda i: (0, 0)),             # fc2
            pl.BlockSpec((1, 128), lambda i: (0, 0)),               # bf2
        ],
        out_specs=pl.BlockSpec((1, TB, 128), lambda i: (i, 0, 0)),
        compiler_params=pltpu.CompilerParams(
            dimension_semantics=("parallel",),
            vmem_limit_bytes=48 * 1024 * 1024),
        cost_estimate=pl.CostEstimate(flops=flops, transcendentals=0,
                                      bytes_accessed=bytes_accessed),
    )(p1, W1p, b1p, W2p, b2p, Wf1p, bf1p, Wf2p, bf2p)

    return out.reshape(Bp, 128)[:B, :10]


# --------------------------- parameter handling ----------------------------- #

def pack_params(params):
    """One-time repack: lane-dense, channels-last, bf16 weights (f32 biases).
    conv1: K = (pool-window q)*25 + tap; output lane-tile 0 = {q0,q1}, tile 1 =
    {q2,q3}; within each 64-lane half the 10 channels are replicated at lanes
    10*j + c so conv2's (kj,cin) K-packing needs no in-kernel lane shuffles.
    conv2: per-ki [64,128] tiles with K rows 10*kj + cin.
    fc1: one [2048,128] tile, rows 128*r + cin (r = h2*4 + w2), which bakes in
    the PyTorch view(-1, 320) flatten order (f = cin*16 + r)."""
    w1, b1, w2, b2, wf1, bf1, wf2, bf2 = params
    f32, bf16 = jnp.float32, jnp.bfloat16

    w1flat = w1.reshape(10, 25).T                                # [tap t, cout c]
    W1p = jnp.zeros((128, 256), f32)
    for q in range(4):
        off = (q % 2) * 64 + (q // 2) * 128
        for j in range(5):
            W1p = W1p.at[q * 25:(q + 1) * 25, off + 10 * j: off + 10 * j + 10].set(w1flat)
    b1p = jnp.zeros((1, 64), f32)
    for j in range(5):
        b1p = b1p.at[0, 10 * j:10 * j + 10].set(b1)

    w2t = jnp.transpose(w2, (2, 3, 1, 0)).reshape(5, 50, 20)     # [ki, kj*10+cin, cout]
    W2p = jnp.zeros((5, 64, 128), f32).at[:, :50, :20].set(w2t)
    b2p = jnp.zeros((1, 128), f32).at[0, :20].set(b2)

    wf1t = jnp.transpose(wf1.reshape(50, 20, 16), (2, 1, 0))     # [r, cin, cout]
    Wf1p = jnp.zeros((16, 128, 128), f32).at[:, :20, :50].set(wf1t).reshape(2048, 128)
    bf1p = jnp.zeros((1, 128), f32).at[0, :50].set(bf1)

    Wf2p = jnp.zeros((128, 128), f32).at[:50, :10].set(wf2.T)
    bf2p = jnp.zeros((1, 128), f32).at[0, :10].set(bf2)

    return (W1p.astype(bf16), b1p, W2p.astype(bf16), b2p,
            Wf1p.astype(bf16), bf1p, Wf2p.astype(bf16), bf2p)


def init_params(key):
    """Deterministic PyTorch-style uniform(-1/sqrt(fan_in), 1/sqrt(fan_in)) init."""
    ks = jax.random.split(key, 8)

    def u(k, shape, fan_in):
        bound = 1.0 / math.sqrt(fan_in)
        return jax.random.uniform(k, shape, jnp.float32, -bound, bound)

    w1 = u(ks[0], (10, 1, 5, 5), 1 * 5 * 5)
    b1 = u(ks[1], (10,), 1 * 5 * 5)
    w2 = u(ks[2], (20, 10, 5, 5), 10 * 5 * 5)
    b2 = u(ks[3], (20,), 10 * 5 * 5)
    wf1 = u(ks[4], (50, 320), 320)
    bf1 = u(ks[5], (50,), 320)
    wf2 = u(ks[6], (10, 50), 50)
    bf2 = u(ks[7], (10,), 50)
    return (w1, b1, w2, b2, wf1, bf1, wf2, bf2)


def _reference_forward(x, params):
    """Pure-JAX f32 reference of Net_mnist.forward (for a tolerance check)."""
    w1, b1, w2, b2, wf1, bf1, wf2, bf2 = params
    dn = ('NCHW', 'OIHW', 'NCHW')

    def pool2(y):
        b, c, h, w = y.shape
        return y.reshape(b, c, h // 2, 2, w // 2, 2).max(axis=(3, 5))

    y = jax.lax.conv_general_dilated(x, w1, (1, 1), 'VALID', dimension_numbers=dn)
    y = jnp.maximum(pool2(y + b1[None, :, None, None]), 0.0)
    y = jax.lax.conv_general_dilated(y, w2, (1, 1), 'VALID', dimension_numbers=dn)
    y = jnp.maximum(pool2(y + b2[None, :, None, None]), 0.0)
    y = y.reshape(y.shape[0], -1)                    # (B, 320), order c*16 + h*4 + w
    y = jnp.maximum(y @ wf1.T + bf1, 0.0)
    return y @ wf2.T + bf2


if __name__ == "__main__":
    key = jax.random.PRNGKey(0)
    k_param, k_x = jax.random.split(key)
    params = init_params(k_param)
    packed = pack_params(params)            # one-time weight repack (outside jit)

    # MNIST geometry is fixed by the 320-wide flatten: batch=2, 1x28x28 input.
    x = jax.random.normal(k_x, (2, 1, 28, 28), dtype=jnp.float32)

    out = jax.block_until_ready(jax.jit(net_mnist_forward)(x, packed))
    ref = jax.block_until_ready(_reference_forward(x, params))

    assert out.shape == (2, 10) and out.dtype == jnp.float32
    assert bool(jnp.isfinite(out).all())
    err = float(jnp.max(jnp.abs(out - ref)))
    assert err < 0.08, f"mismatch vs f32 reference: max abs err {err}"
    print("KERNEL_OK")
</pallas_src>

<mosaic_0001>
module attributes {stable_mosaic.version = 11 : i64} {
  func.func @_net_mnist_kernel(%arg0: i32, %arg1: memref<1x192x128xbf16, #tpu.memory_space<vmem>>, %arg2: memref<128x256xbf16, #tpu.memory_space<vmem>>, %arg3: memref<1x64xf32, #tpu.memory_space<vmem>>, %arg4: memref<5x64x128xbf16, #tpu.memory_space<vmem>>, %arg5: memref<1x128xf32, #tpu.memory_space<vmem>>, %arg6: memref<2048x128xbf16, #tpu.memory_space<vmem>>, %arg7: memref<1x128xf32, #tpu.memory_space<vmem>>, %arg8: memref<128x128xbf16, #tpu.memory_space<vmem>>, %arg9: memref<1x128xf32, #tpu.memory_space<vmem>>, %arg10: memref<1x1x128xf32, #tpu.memory_space<vmem>>) attributes {dimension_semantics = [#tpu.dimension_semantics<parallel>], iteration_bounds = array<i64: 2>, scalar_prefetch = 0 : i64, scratch_operands = 0 : i64, tpu.core_type = #tpu.core_type<tc>, window_params = [{transform_indices = @transform_0, window_bounds = array<i64: 1, 192, 128>}, {pipeline_mode = #tpu.pipeline_mode<synchronous>, transform_indices = @transform_1, window_bounds = array<i64: 128, 256>}, {pipeline_mode = #tpu.pipeline_mode<synchronous>, transform_indices = @transform_2, window_bounds = array<i64: 1, 64>}, {pipeline_mode = #tpu.pipeline_mode<synchronous>, transform_indices = @transform_3, window_bounds = array<i64: 5, 64, 128>}, {pipeline_mode = #tpu.pipeline_mode<synchronous>, transform_indices = @transform_4, window_bounds = array<i64: 1, 128>}, {pipeline_mode = #tpu.pipeline_mode<synchronous>, transform_indices = @transform_5, window_bounds = array<i64: 2048, 128>}, {pipeline_mode = #tpu.pipeline_mode<synchronous>, transform_indices = @transform_6, window_bounds = array<i64: 1, 128>}, {pipeline_mode = #tpu.pipeline_mode<synchronous>, transform_indices = @transform_7, window_bounds = array<i64: 128, 128>}, {pipeline_mode = #tpu.pipeline_mode<synchronous>, transform_indices = @transform_8, window_bounds = array<i64: 1, 128>}, {transform_indices = @transform_9, window_bounds = array<i64: 1, 1, 128>}]} {
    %c0 = arith.constant 0 : index
    %c0_0 = arith.constant 0 : index
    %c0_1 = arith.constant 0 : index
    %0 = vector.load %arg1[%c0, %c0_0, %c0_1] : memref<1x192x128xbf16, #tpu.memory_space<vmem>>, vector<1x192x128xbf16>
    %1 = vector.shape_cast %0 : vector<1x192x128xbf16> to vector<192x128xbf16>
    %c0_2 = arith.constant 0 : index
    %c0_3 = arith.constant 0 : index
    %2 = vector.load %arg2[%c0_2, %c0_3] : memref<128x256xbf16, #tpu.memory_space<vmem>>, vector<128x256xbf16>
    %cst = arith.constant dense<0.000000e+00> : vector<192x256xf32>
    %3 = tpu.matmul %1, %2, %cst {dimension_numbers = #tpu.dot_dimension_numbers<[1], [0], [0], [1], [0, 0, 1, 1], [], []>} : vector<192x128xbf16>, vector<128x256xbf16>, vector<192x256xf32> -> vector<192x256xf32>
    %4 = vector.extract_strided_slice %3 {offsets = [0, 0], sizes = [192, 128], strides = [1, 1]} : vector<192x256xf32> to vector<192x128xf32>
    %5 = vector.extract_strided_slice %3 {offsets = [0, 128], sizes = [192, 128], strides = [1, 1]} : vector<192x256xf32> to vector<192x128xf32>
    %6 = arith.maximumf %4, %5 : vector<192x128xf32>
    %7 = vector.extract_strided_slice %6 {offsets = [0, 0], sizes = [192, 64], strides = [1, 1]} : vector<192x128xf32> to vector<192x64xf32>
    %8 = vector.extract_strided_slice %6 {offsets = [0, 64], sizes = [192, 64], strides = [1, 1]} : vector<192x128xf32> to vector<192x64xf32>
    %9 = arith.maximumf %7, %8 : vector<192x64xf32>
    %c0_4 = arith.constant 0 : index
    %c0_5 = arith.constant 0 : index
    %10 = vector.load %arg3[%c0_4, %c0_5] : memref<1x64xf32, #tpu.memory_space<vmem>>, vector<1x64xf32>
    %11 = vector.broadcast %10 : vector<1x64xf32> to vector<192x64xf32>
    %12 = arith.addf %9, %11 : vector<192x64xf32>
    %cst_6 = arith.constant 0.000000e+00 : f32
    %13 = vector.broadcast %cst_6 : f32 to vector<192x64xf32>
    %14 = arith.maximumf %12, %13 : vector<192x64xf32>
    %15 = arith.truncf %14 : vector<192x64xf32> to vector<192x64xbf16>
    %16 = vector.shape_cast %15 : vector<192x64xbf16> to vector<1x12x16x64xbf16>
    %17 = tpu.iota {dimensions = array<i32: 3>} : vector<1x1x1x64xi32>
    %c0_i32 = arith.constant 0 : i32
    %18 = vector.broadcast %c0_i32 : i32 to vector<1x1x1x64xi32>
    %19 = arith.cmpi sge, %17, %18 : vector<1x1x1x64xi32>
    %c10_i32 = arith.constant 10 : i32
    %20 = vector.broadcast %c10_i32 : i32 to vector<1x1x1x64xi32>
    %21 = arith.cmpi slt, %17, %20 : vector<1x1x1x64xi32>
    %22 = arith.andi %19, %21 : vector<1x1x1x64xi1>
    %23 = vector.extract_strided_slice %16 {offsets = [0, 0, 0, 0], sizes = [1, 12, 8, 64], strides = [1, 1, 1, 1]} : vector<1x12x16x64xbf16> to vector<1x12x8x64xbf16>
    %cst_7 = arith.constant 0.000000e+00 : bf16
    %24 = vector.shape_cast %22 : vector<1x1x1x64xi1> to vector<1x1x1x64xi1>
    %25 = vector.broadcast %24 : vector<1x1x1x64xi1> to vector<1x12x8x64xi1>
    %26 = vector.broadcast %cst_7 : bf16 to vector<1x12x8x64xbf16>
    %27 = arith.select %25, %23, %26 : vector<1x12x8x64xi1>, vector<1x12x8x64xbf16>
    %28 = vector.extract_strided_slice %27 {offsets = [0, 0, 0, 0], sizes = [1, 8, 8, 64], strides = [1, 1, 1, 1]} : vector<1x12x8x64xbf16> to vector<1x8x8x64xbf16>
    %29 = vector.extract_strided_slice %27 {offsets = [0, 1, 0, 0], sizes = [1, 8, 8, 64], strides = [1, 1, 1, 1]} : vector<1x12x8x64xbf16> to vector<1x8x8x64xbf16>
    %30 = vector.extract_strided_slice %27 {offsets = [0, 2, 0, 0], sizes = [1, 8, 8, 64], strides = [1, 1, 1, 1]} : vector<1x12x8x64xbf16> to vector<1x8x8x64xbf16>
    %31 = vector.extract_strided_slice %27 {offsets = [0, 3, 0, 0], sizes = [1, 8, 8, 64], strides = [1, 1, 1, 1]} : vector<1x12x8x64xbf16> to vector<1x8x8x64xbf16>
    %32 = vector.extract_strided_slice %27 {offsets = [0, 4, 0, 0], sizes = [1, 8, 8, 64], strides = [1, 1, 1, 1]} : vector<1x12x8x64xbf16> to vector<1x8x8x64xbf16>
    %c10_i32_8 = arith.constant 10 : i32
    %33 = vector.broadcast %c10_i32_8 : i32 to vector<1x1x1x64xi32>
    %34 = arith.cmpi sge, %17, %33 : vector<1x1x1x64xi32>
    %c20_i32 = arith.constant 20 : i32
    %35 = vector.broadcast %c20_i32 : i32 to vector<1x1x1x64xi32>
    %36 = arith.cmpi slt, %17, %35 : vector<1x1x1x64xi32>
    %37 = arith.andi %34, %36 : vector<1x1x1x64xi1>
    %38 = vector.extract_strided_slice %16 {offsets = [0, 0, 1, 0], sizes = [1, 12, 8, 64], strides = [1, 1, 1, 1]} : vector<1x12x16x64xbf16> to vector<1x12x8x64xbf16>
    %cst_9 = arith.constant 0.000000e+00 : bf16
    %39 = vector.shape_cast %37 : vector<1x1x1x64xi1> to vector<1x1x1x64xi1>
    %40 = vector.broadcast %39 : vector<1x1x1x64xi1> to vector<1x12x8x64xi1>
    %41 = vector.broadcast %cst_9 : bf16 to vector<1x12x8x64xbf16>
    %42 = arith.select %40, %38, %41 : vector<1x12x8x64xi1>, vector<1x12x8x64xbf16>
    %43 = vector.extract_strided_slice %42 {offsets = [0, 0, 0, 0], sizes = [1, 8, 8, 64], strides = [1, 1, 1, 1]} : vector<1x12x8x64xbf16> to vector<1x8x8x64xbf16>
    %44 = arith.addf %28, %43 : vector<1x8x8x64xbf16>
    %45 = vector.extract_strided_slice %42 {offsets = [0, 1, 0, 0], sizes = [1, 8, 8, 64], strides = [1, 1, 1, 1]} : vector<1x12x8x64xbf16> to vector<1x8x8x64xbf16>
    %46 = arith.addf %29, %45 : vector<1x8x8x64xbf16>
    %47 = vector.extract_strided_slice %42 {offsets = [0, 2, 0, 0], sizes = [1, 8, 8, 64], strides = [1, 1, 1, 1]} : vector<1x12x8x64xbf16> to vector<1x8x8x64xbf16>
    %48 = arith.addf %30, %47 : vector<1x8x8x64xbf16>
    %49 = vector.extract_strided_slice %42 {offsets = [0, 3, 0, 0], sizes = [1, 8, 8, 64], strides = [1, 1, 1, 1]} : vector<1x12x8x64xbf16> to vector<1x8x8x64xbf16>
    %50 = arith.addf %31, %49 : vector<1x8x8x64xbf16>
    %51 = vector.extract_strided_slice %42 {offsets = [0, 4, 0, 0], sizes = [1, 8, 8, 64], strides = [1, 1, 1, 1]} : vector<1x12x8x64xbf16> to vector<1x8x8x64xbf16>
    %52 = arith.addf %32, %51 : vector<1x8x8x64xbf16>
    %c20_i32_10 = arith.constant 20 : i32
    %53 = vector.broadcast %c20_i32_10 : i32 to vector<1x1x1x64xi32>
    %54 = arith.cmpi sge, %17, %53 : vector<1x1x1x64xi32>
    %c30_i32 = arith.constant 30 : i32
    %55 = vector.broadcast %c30_i32 : i32 to vector<1x1x1x64xi32>
    %56 = arith.cmpi slt, %17, %55 : vector<1x1x1x64xi32>
    %57 = arith.andi %54, %56 : vector<1x1x1x64xi1>
    %58 = vector.extract_strided_slice %16 {offsets = [0, 0, 2, 0], sizes = [1, 12, 8, 64], strides = [1, 1, 1, 1]} : vector<1x12x16x64xbf16> to vector<1x12x8x64xbf16>
    %cst_11 = arith.constant 0.000000e+00 : bf16
    %59 = vector.shape_cast %57 : vector<1x1x1x64xi1> to vector<1x1x1x64xi1>
    %60 = vector.broadcast %59 : vector<1x1x1x64xi1> to vector<1x12x8x64xi1>
    %61 = vector.broadcast %cst_11 : bf16 to vector<1x12x8x64xbf16>
    %62 = arith.select %60, %58, %61 : vector<1x12x8x64xi1>, vector<1x12x8x64xbf16>
    %63 = vector.extract_strided_slice %62 {offsets = [0, 0, 0, 0], sizes = [1, 8, 8, 64], strides = [1, 1, 1, 1]} : vector<1x12x8x64xbf16> to vector<1x8x8x64xbf16>
    %64 = arith.addf %44, %63 : vector<1x8x8x64xbf16>
    %65 = vector.extract_strided_slice %62 {offsets = [0, 1, 0, 0], sizes = [1, 8, 8, 64], strides = [1, 1, 1, 1]} : vector<1x12x8x64xbf16> to vector<1x8x8x64xbf16>
    %66 = arith.addf %46, %65 : vector<1x8x8x64xbf16>
    %67 = vector.extract_strided_slice %62 {offsets = [0, 2, 0, 0], sizes = [1, 8, 8, 64], strides = [1, 1, 1, 1]} : vector<1x12x8x64xbf16> to vector<1x8x8x64xbf16>
    %68 = arith.addf %48, %67 : vector<1x8x8x64xbf16>
    %69 = vector.extract_strided_slice %62 {offsets = [0, 3, 0, 0], sizes = [1, 8, 8, 64], strides = [1, 1, 1, 1]} : vector<1x12x8x64xbf16> to vector<1x8x8x64xbf16>
    %70 = arith.addf %50, %69 : vector<1x8x8x64xbf16>
    %71 = vector.extract_strided_slice %62 {offsets = [0, 4, 0, 0], sizes = [1, 8, 8, 64], strides = [1, 1, 1, 1]} : vector<1x12x8x64xbf16> to vector<1x8x8x64xbf16>
    %72 = arith.addf %52, %71 : vector<1x8x8x64xbf16>
    %c30_i32_12 = arith.constant 30 : i32
    %73 = vector.broadcast %c30_i32_12 : i32 to vector<1x1x1x64xi32>
    %74 = arith.cmpi sge, %17, %73 : vector<1x1x1x64xi32>
    %c40_i32 = arith.constant 40 : i32
    %75 = vector.broadcast %c40_i32 : i32 to vector<1x1x1x64xi32>
    %76 = arith.cmpi slt, %17, %75 : vector<1x1x1x64xi32>
    %77 = arith.andi %74, %76 : vector<1x1x1x64xi1>
    %78 = vector.extract_strided_slice %16 {offsets = [0, 0, 3, 0], sizes = [1, 12, 8, 64], strides = [1, 1, 1, 1]} : vector<1x12x16x64xbf16> to vector<1x12x8x64xbf16>
    %cst_13 = arith.constant 0.000000e+00 : bf16
    %79 = vector.shape_cast %77 : vector<1x1x1x64xi1> to vector<1x1x1x64xi1>
    %80 = vector.broadcast %79 : vector<1x1x1x64xi1> to vector<1x12x8x64xi1>
    %81 = vector.broadcast %cst_13 : bf16 to vector<1x12x8x64xbf16>
    %82 = arith.select %80, %78, %81 : vector<1x12x8x64xi1>, vector<1x12x8x64xbf16>
    %83 = vector.extract_strided_slice %82 {offsets = [0, 0, 0, 0], sizes = [1, 8, 8, 64], strides = [1, 1, 1, 1]} : vector<1x12x8x64xbf16> to vector<1x8x8x64xbf16>
    %84 = arith.addf %64, %83 : vector<1x8x8x64xbf16>
    %85 = vector.extract_strided_slice %82 {offsets = [0, 1, 0, 0], sizes = [1, 8, 8, 64], strides = [1, 1, 1, 1]} : vector<1x12x8x64xbf16> to vector<1x8x8x64xbf16>
    %86 = arith.addf %66, %85 : vector<1x8x8x64xbf16>
    %87 = vector.extract_strided_slice %82 {offsets = [0, 2, 0, 0], sizes = [1, 8, 8, 64], strides = [1, 1, 1, 1]} : vector<1x12x8x64xbf16> to vector<1x8x8x64xbf16>
    %88 = arith.addf %68, %87 : vector<1x8x8x64xbf16>
    %89 = vector.extract_strided_slice %82 {offsets = [0, 3, 0, 0], sizes = [1, 8, 8, 64], strides = [1, 1, 1, 1]} : vector<1x12x8x64xbf16> to vector<1x8x8x64xbf16>
    %90 = arith.addf %70, %89 : vector<1x8x8x64xbf16>
    %91 = vector.extract_strided_slice %82 {offsets = [0, 4, 0, 0], sizes = [1, 8, 8, 64], strides = [1, 1, 1, 1]} : vector<1x12x8x64xbf16> to vector<1x8x8x64xbf16>
    %92 = arith.addf %72, %91 : vector<1x8x8x64xbf16>
    %c40_i32_14 = arith.constant 40 : i32
    %93 = vector.broadcast %c40_i32_14 : i32 to vector<1x1x1x64xi32>
    %94 = arith.cmpi sge, %17, %93 : vector<1x1x1x64xi32>
    %c50_i32 = arith.constant 50 : i32
    %95 = vector.broadcast %c50_i32 : i32 to vector<1x1x1x64xi32>
    %96 = arith.cmpi slt, %17, %95 : vector<1x1x1x64xi32>
    %97 = arith.andi %94, %96 : vector<1x1x1x64xi1>
    %98 = vector.extract_strided_slice %16 {offsets = [0, 0, 4, 0], sizes = [1, 12, 8, 64], strides = [1, 1, 1, 1]} : vector<1x12x16x64xbf16> to vector<1x12x8x64xbf16>
    %cst_15 = arith.constant 0.000000e+00 : bf16
    %99 = vector.shape_cast %97 : vector<1x1x1x64xi1> to vector<1x1x1x64xi1>
    %100 = vector.broadcast %99 : vector<1x1x1x64xi1> to vector<1x12x8x64xi1>
    %101 = vector.broadcast %cst_15 : bf16 to vector<1x12x8x64xbf16>
    %102 = arith.select %100, %98, %101 : vector<1x12x8x64xi1>, vector<1x12x8x64xbf16>
    %103 = vector.extract_strided_slice %102 {offsets = [0, 0, 0, 0], sizes = [1, 8, 8, 64], strides = [1, 1, 1, 1]} : vector<1x12x8x64xbf16> to vector<1x8x8x64xbf16>
    %104 = arith.addf %84, %103 : vector<1x8x8x64xbf16>
    %105 = vector.extract_strided_slice %102 {offsets = [0, 1, 0, 0], sizes = [1, 8, 8, 64], strides = [1, 1, 1, 1]} : vector<1x12x8x64xbf16> to vector<1x8x8x64xbf16>
    %106 = arith.addf %86, %105 : vector<1x8x8x64xbf16>
    %107 = vector.extract_strided_slice %102 {offsets = [0, 2, 0, 0], sizes = [1, 8, 8, 64], strides = [1, 1, 1, 1]} : vector<1x12x8x64xbf16> to vector<1x8x8x64xbf16>
    %108 = arith.addf %88, %107 : vector<1x8x8x64xbf16>
    %109 = vector.extract_strided_slice %102 {offsets = [0, 3, 0, 0], sizes = [1, 8, 8, 64], strides = [1, 1, 1, 1]} : vector<1x12x8x64xbf16> to vector<1x8x8x64xbf16>
    %110 = arith.addf %90, %109 : vector<1x8x8x64xbf16>
    %111 = vector.extract_strided_slice %102 {offsets = [0, 4, 0, 0], sizes = [1, 8, 8, 64], strides = [1, 1, 1, 1]} : vector<1x12x8x64xbf16> to vector<1x8x8x64xbf16>
    %112 = arith.addf %92, %111 : vector<1x8x8x64xbf16>
    %cst_16 = arith.constant 0.000000e+00 : f32
    %113 = vector.broadcast %cst_16 : f32 to vector<64x128xf32>
    %114 = vector.shape_cast %104 : vector<1x8x8x64xbf16> to vector<64x64xbf16>
    %c0_17 = arith.constant 0 : index
    %c0_18 = arith.constant 0 : index
    %c0_19 = arith.constant 0 : index
    %115 = vector.load %arg4[%c0_17, %c0_18, %c0_19] : memref<5x64x128xbf16, #tpu.memory_space<vmem>>, vector<1x64x128xbf16>
    %116 = vector.shape_cast %115 : vector<1x64x128xbf16> to vector<64x128xbf16>
    %cst_20 = arith.constant dense<0.000000e+00> : vector<64x128xf32>
    %117 = tpu.matmul %114, %116, %cst_20 {dimension_numbers = #tpu.dot_dimension_numbers<[1], [0], [0], [1], [0, 0, 1, 1], [], []>} : vector<64x64xbf16>, vector<64x128xbf16>, vector<64x128xf32> -> vector<64x128xf32>
    %118 = arith.addf %113, %117 : vector<64x128xf32>
    %119 = vector.shape_cast %106 : vector<1x8x8x64xbf16> to vector<64x64xbf16>
    %c1 = arith.constant 1 : index
    %c0_21 = arith.constant 0 : index
    %c0_22 = arith.constant 0 : index
    %120 = vector.load %arg4[%c1, %c0_21, %c0_22] : memref<5x64x128xbf16, #tpu.memory_space<vmem>>, vector<1x64x128xbf16>
    %121 = vector.shape_cast %120 : vector<1x64x128xbf16> to vector<64x128xbf16>
    %cst_23 = arith.constant dense<0.000000e+00> : vector<64x128xf32>
    %122 = tpu.matmul %119, %121, %cst_23 {dimension_numbers = #tpu.dot_dimension_numbers<[1], [0], [0], [1], [0, 0, 1, 1], [], []>} : vector<64x64xbf16>, vector<64x128xbf16>, vector<64x128xf32> -> vector<64x128xf32>
    %123 = arith.addf %118, %122 : vector<64x128xf32>
    %124 = vector.shape_cast %108 : vector<1x8x8x64xbf16> to vector<64x64xbf16>
    %c2 = arith.constant 2 : index
    %c0_24 = arith.constant 0 : index
    %c0_25 = arith.constant 0 : index
    %125 = vector.load %arg4[%c2, %c0_24, %c0_25] : memref<5x64x128xbf16, #tpu.memory_space<vmem>>, vector<1x64x128xbf16>
    %126 = vector.shape_cast %125 : vector<1x64x128xbf16> to vector<64x128xbf16>
    %cst_26 = arith.constant dense<0.000000e+00> : vector<64x128xf32>
    %127 = tpu.matmul %124, %126, %cst_26 {dimension_numbers = #tpu.dot_dimension_numbers<[1], [0], [0], [1], [0, 0, 1, 1], [], []>} : vector<64x64xbf16>, vector<64x128xbf16>, vector<64x128xf32> -> vector<64x128xf32>
    %128 = arith.addf %123, %127 : vector<64x128xf32>
    %129 = vector.shape_cast %110 : vector<1x8x8x64xbf16> to vector<64x64xbf16>
    %c3 = arith.constant 3 : index
    %c0_27 = arith.constant 0 : index
    %c0_28 = arith.constant 0 : index
    %130 = vector.load %arg4[%c3, %c0_27, %c0_28] : memref<5x64x128xbf16, #tpu.memory_space<vmem>>, vector<1x64x128xbf16>
    %131 = vector.shape_cast %130 : vector<1x64x128xbf16> to vector<64x128xbf16>
    %cst_29 = arith.constant dense<0.000000e+00> : vector<64x128xf32>
    %132 = tpu.matmul %129, %131, %cst_29 {dimension_numbers = #tpu.dot_dimension_numbers<[1], [0], [0], [1], [0, 0, 1, 1], [], []>} : vector<64x64xbf16>, vector<64x128xbf16>, vector<64x128xf32> -> vector<64x128xf32>
    %133 = arith.addf %128, %132 : vector<64x128xf32>
    %134 = vector.shape_cast %112 : vector<1x8x8x64xbf16> to vector<64x64xbf16>
    %c4 = arith.constant 4 : index
    %c0_30 = arith.constant 0 : index
    %c0_31 = arith.constant 0 : index
    %135 = vector.load %arg4[%c4, %c0_30, %c0_31] : memref<5x64x128xbf16, #tpu.memory_space<vmem>>, vector<1x64x128xbf16>
    %136 = vector.shape_cast %135 : vector<1x64x128xbf16> to vector<64x128xbf16>
    %cst_32 = arith.constant dense<0.000000e+00> : vector<64x128xf32>
    %137 = tpu.matmul %134, %136, %cst_32 {dimension_numbers = #tpu.dot_dimension_numbers<[1], [0], [0], [1], [0, 0, 1, 1], [], []>} : vector<64x64xbf16>, vector<64x128xbf16>, vector<64x128xf32> -> vector<64x128xf32>
    %138 = arith.addf %133, %137 : vector<64x128xf32>
    %139 = vector.shape_cast %138 : vector<64x128xf32> to vector<1x4x2x8x128xf32>
    %140 = vector.extract_strided_slice %139 {offsets = [0, 0, 0, 0, 0], sizes = [1, 4, 1, 8, 128], strides = [1, 1, 1, 1, 1]} : vector<1x4x2x8x128xf32> to vector<1x4x1x8x128xf32>
    %141 = vector.shape_cast %140 : vector<1x4x1x8x128xf32> to vector<1x4x8x128xf32>
    %142 = vector.extract_strided_slice %139 {offsets = [0, 0, 1, 0, 0], sizes = [1, 4, 1, 8, 128], strides = [1, 1, 1, 1, 1]} : vector<1x4x2x8x128xf32> to vector<1x4x1x8x128xf32>
    %143 = vector.shape_cast %142 : vector<1x4x1x8x128xf32> to vector<1x4x8x128xf32>
    %144 = arith.maximumf %141, %143 : vector<1x4x8x128xf32>
    %c0_33 = arith.constant 0 : index
    %c0_34 = arith.constant 0 : index
    %145 = vector.load %arg5[%c0_33, %c0_34] : memref<1x128xf32, #tpu.memory_space<vmem>>, vector<1x128xf32>
    %146 = vector.shape_cast %145 : vector<1x128xf32> to vector<1x1x1x128xf32>
    %147 = vector.broadcast %146 : vector<1x1x1x128xf32> to vector<1x4x8x128xf32>
    %148 = arith.addf %144, %147 : vector<1x4x8x128xf32>
    %149 = vector.extract_strided_slice %148 {offsets = [0, 0, 0, 0], sizes = [1, 1, 1, 128], strides = [1, 1, 1, 1]} : vector<1x4x8x128xf32> to vector<1x1x1x128xf32>
    %150 = vector.shape_cast %149 : vector<1x1x1x128xf32> to vector<1x128xf32>
    %151 = vector.extract_strided_slice %148 {offsets = [0, 0, 1, 0], sizes = [1, 1, 1, 128], strides = [1, 1, 1, 1]} : vector<1x4x8x128xf32> to vector<1x1x1x128xf32>
    %152 = vector.shape_cast %151 : vector<1x1x1x128xf32> to vector<1x128xf32>
    %153 = arith.maximumf %150, %152 : vector<1x128xf32>
    %cst_35 = arith.constant 0.000000e+00 : f32
    %154 = vector.broadcast %cst_35 : f32 to vector<1x128xf32>
    %155 = arith.maximumf %153, %154 : vector<1x128xf32>
    %156 = arith.truncf %155 : vector<1x128xf32> to vector<1x128xbf16>
    %157 = vector.extract_strided_slice %148 {offsets = [0, 0, 2, 0], sizes = [1, 1, 1, 128], strides = [1, 1, 1, 1]} : vector<1x4x8x128xf32> to vector<1x1x1x128xf32>
    %158 = vector.shape_cast %157 : vector<1x1x1x128xf32> to vector<1x128xf32>
    %159 = vector.extract_strided_slice %148 {offsets = [0, 0, 3, 0], sizes = [1, 1, 1, 128], strides = [1, 1, 1, 1]} : vector<1x4x8x128xf32> to vector<1x1x1x128xf32>
    %160 = vector.shape_cast %159 : vector<1x1x1x128xf32> to vector<1x128xf32>
    %161 = arith.maximumf %158, %160 : vector<1x128xf32>
    %cst_36 = arith.constant 0.000000e+00 : f32
    %162 = vector.broadcast %cst_36 : f32 to vector<1x128xf32>
    %163 = arith.maximumf %161, %162 : vector<1x128xf32>
    %164 = arith.truncf %163 : vector<1x128xf32> to vector<1x128xbf16>
    %165 = vector.extract_strided_slice %148 {offsets = [0, 0, 4, 0], sizes = [1, 1, 1, 128], strides = [1, 1, 1, 1]} : vector<1x4x8x128xf32> to vector<1x1x1x128xf32>
    %166 = vector.shape_cast %165 : vector<1x1x1x128xf32> to vector<1x128xf32>
    %167 = vector.extract_strided_slice %148 {offsets = [0, 0, 5, 0], sizes = [1, 1, 1, 128], strides = [1, 1, 1, 1]} : vector<1x4x8x128xf32> to vector<1x1x1x128xf32>
    %168 = vector.shape_cast %167 : vector<1x1x1x128xf32> to vector<1x128xf32>
    %169 = arith.maximumf %166, %168 : vector<1x128xf32>
    %cst_37 = arith.constant 0.000000e+00 : f32
    %170 = vector.broadcast %cst_37 : f32 to vector<1x128xf32>
    %171 = arith.maximumf %169, %170 : vector<1x128xf32>
    %172 = arith.truncf %171 : vector<1x128xf32> to vector<1x128xbf16>
    %173 = vector.extract_strided_slice %148 {offsets = [0, 0, 6, 0], sizes = [1, 1, 1, 128], strides = [1, 1, 1, 1]} : vector<1x4x8x128xf32> to vector<1x1x1x128xf32>
    %174 = vector.shape_cast %173 : vector<1x1x1x128xf32> to vector<1x128xf32>
    %175 = vector.extract_strided_slice %148 {offsets = [0, 0, 7, 0], sizes = [1, 1, 1, 128], strides = [1, 1, 1, 1]} : vector<1x4x8x128xf32> to vector<1x1x1x128xf32>
    %176 = vector.shape_cast %175 : vector<1x1x1x128xf32> to vector<1x128xf32>
    %177 = arith.maximumf %174, %176 : vector<1x128xf32>
    %cst_38 = arith.constant 0.000000e+00 : f32
    %178 = vector.broadcast %cst_38 : f32 to vector<1x128xf32>
    %179 = arith.maximumf %177, %178 : vector<1x128xf32>
    %180 = arith.truncf %179 : vector<1x128xf32> to vector<1x128xbf16>
    %181 = vector.extract_strided_slice %148 {offsets = [0, 1, 0, 0], sizes = [1, 1, 1, 128], strides = [1, 1, 1, 1]} : vector<1x4x8x128xf32> to vector<1x1x1x128xf32>
    %182 = vector.shape_cast %181 : vector<1x1x1x128xf32> to vector<1x128xf32>
    %183 = vector.extract_strided_slice %148 {offsets = [0, 1, 1, 0], sizes = [1, 1, 1, 128], strides = [1, 1, 1, 1]} : vector<1x4x8x128xf32> to vector<1x1x1x128xf32>
    %184 = vector.shape_cast %183 : vector<1x1x1x128xf32> to vector<1x128xf32>
    %185 = arith.maximumf %182, %184 : vector<1x128xf32>
    %cst_39 = arith.constant 0.000000e+00 : f32
    %186 = vector.broadcast %cst_39 : f32 to vector<1x128xf32>
    %187 = arith.maximumf %185, %186 : vector<1x128xf32>
    %188 = arith.truncf %187 : vector<1x128xf32> to vector<1x128xbf16>
    %189 = vector.extract_strided_slice %148 {offsets = [0, 1, 2, 0], sizes = [1, 1, 1, 128], strides = [1, 1, 1, 1]} : vector<1x4x8x128xf32> to vector<1x1x1x128xf32>
    %190 = vector.shape_cast %189 : vector<1x1x1x128xf32> to vector<1x128xf32>
    %191 = vector.extract_strided_slice %148 {offsets = [0, 1, 3, 0], sizes = [1, 1, 1, 128], strides = [1, 1, 1, 1]} : vector<1x4x8x128xf32> to vector<1x1x1x128xf32>
    %192 = vector.shape_cast %191 : vector<1x1x1x128xf32> to vector<1x128xf32>
    %193 = arith.maximumf %190, %192 : vector<1x128xf32>
    %cst_40 = arith.constant 0.000000e+00 : f32
    %194 = vector.broadcast %cst_40 : f32 to vector<1x128xf32>
    %195 = arith.maximumf %193, %194 : vector<1x128xf32>
    %196 = arith.truncf %195 : vector<1x128xf32> to vector<1x128xbf16>
    %197 = vector.extract_strided_slice %148 {offsets = [0, 1, 4, 0], sizes = [1, 1, 1, 128], strides = [1, 1, 1, 1]} : vector<1x4x8x128xf32> to vector<1x1x1x128xf32>
    %198 = vector.shape_cast %197 : vector<1x1x1x128xf32> to vector<1x128xf32>
    %199 = vector.extract_strided_slice %148 {offsets = [0, 1, 5, 0], sizes = [1, 1, 1, 128], strides = [1, 1, 1, 1]} : vector<1x4x8x128xf32> to vector<1x1x1x128xf32>
    %200 = vector.shape_cast %199 : vector<1x1x1x128xf32> to vector<1x128xf32>
    %201 = arith.maximumf %198, %200 : vector<1x128xf32>
    %cst_41 = arith.constant 0.000000e+00 : f32
    %202 = vector.broadcast %cst_41 : f32 to vector<1x128xf32>
    %203 = arith.maximumf %201, %202 : vector<1x128xf32>
    %204 = arith.truncf %203 : vector<1x128xf32> to vector<1x128xbf16>
    %205 = vector.extract_strided_slice %148 {offsets = [0, 1, 6, 0], sizes = [1, 1, 1, 128], strides = [1, 1, 1, 1]} : vector<1x4x8x128xf32> to vector<1x1x1x128xf32>
    %206 = vector.shape_cast %205 : vector<1x1x1x128xf32> to vector<1x128xf32>
    %207 = vector.extract_strided_slice %148 {offsets = [0, 1, 7, 0], sizes = [1, 1, 1, 128], strides = [1, 1, 1, 1]} : vector<1x4x8x128xf32> to vector<1x1x1x128xf32>
    %208 = vector.shape_cast %207 : vector<1x1x1x128xf32> to vector<1x128xf32>
    %209 = arith.maximumf %206, %208 : vector<1x128xf32>
    %cst_42 = arith.constant 0.000000e+00 : f32
    %210 = vector.broadcast %cst_42 : f32 to vector<1x128xf32>
    %211 = arith.maximumf %209, %210 : vector<1x128xf32>
    %212 = arith.truncf %211 : vector<1x128xf32> to vector<1x128xbf16>
    %213 = vector.extract_strided_slice %148 {offsets = [0, 2, 0, 0], sizes = [1, 1, 1, 128], strides = [1, 1, 1, 1]} : vector<1x4x8x128xf32> to vector<1x1x1x128xf32>
    %214 = vector.shape_cast %213 : vector<1x1x1x128xf32> to vector<1x128xf32>
    %215 = vector.extract_strided_slice %148 {offsets = [0, 2, 1, 0], sizes = [1, 1, 1, 128], strides = [1, 1, 1, 1]} : vector<1x4x8x128xf32> to vector<1x1x1x128xf32>
    %216 = vector.shape_cast %215 : vector<1x1x1x128xf32> to vector<1x128xf32>
    %217 = arith.maximumf %214, %216 : vector<1x128xf32>
    %cst_43 = arith.constant 0.000000e+00 : f32
    %218 = vector.broadcast %cst_43 : f32 to vector<1x128xf32>
    %219 = arith.maximumf %217, %218 : vector<1x128xf32>
    %220 = arith.truncf %219 : vector<1x128xf32> to vector<1x128xbf16>
    %221 = vector.extract_strided_slice %148 {offsets = [0, 2, 2, 0], sizes = [1, 1, 1, 128], strides = [1, 1, 1, 1]} : vector<1x4x8x128xf32> to vector<1x1x1x128xf32>
    %222 = vector.shape_cast %221 : vector<1x1x1x128xf32> to vector<1x128xf32>
    %223 = vector.extract_strided_slice %148 {offsets = [0, 2, 3, 0], sizes = [1, 1, 1, 128], strides = [1, 1, 1, 1]} : vector<1x4x8x128xf32> to vector<1x1x1x128xf32>
    %224 = vector.shape_cast %223 : vector<1x1x1x128xf32> to vector<1x128xf32>
    %225 = arith.maximumf %222, %224 : vector<1x128xf32>
    %cst_44 = arith.constant 0.000000e+00 : f32
    %226 = vector.broadcast %cst_44 : f32 to vector<1x128xf32>
    %227 = arith.maximumf %225, %226 : vector<1x128xf32>
    %228 = arith.truncf %227 : vector<1x128xf32> to vector<1x128xbf16>
    %229 = vector.extract_strided_slice %148 {offsets = [0, 2, 4, 0], sizes = [1, 1, 1, 128], strides = [1, 1, 1, 1]} : vector<1x4x8x128xf32> to vector<1x1x1x128xf32>
    %230 = vector.shape_cast %229 : vector<1x1x1x128xf32> to vector<1x128xf32>
    %231 = vector.extract_strided_slice %148 {offsets = [0, 2, 5, 0], sizes = [1, 1, 1, 128], strides = [1, 1, 1, 1]} : vector<1x4x8x128xf32> to vector<1x1x1x128xf32>
    %232 = vector.shape_cast %231 : vector<1x1x1x128xf32> to vector<1x128xf32>
    %233 = arith.maximumf %230, %232 : vector<1x128xf32>
    %cst_45 = arith.constant 0.000000e+00 : f32
    %234 = vector.broadcast %cst_45 : f32 to vector<1x128xf32>
    %235 = arith.maximumf %233, %234 : vector<1x128xf32>
    %236 = arith.truncf %235 : vector<1x128xf32> to vector<1x128xbf16>
    %237 = vector.extract_strided_slice %148 {offsets = [0, 2, 6, 0], sizes = [1, 1, 1, 128], strides = [1, 1, 1, 1]} : vector<1x4x8x128xf32> to vector<1x1x1x128xf32>
    %238 = vector.shape_cast %237 : vector<1x1x1x128xf32> to vector<1x128xf32>
    %239 = vector.extract_strided_slice %148 {offsets = [0, 2, 7, 0], sizes = [1, 1, 1, 128], strides = [1, 1, 1, 1]} : vector<1x4x8x128xf32> to vector<1x1x1x128xf32>
    %240 = vector.shape_cast %239 : vector<1x1x1x128xf32> to vector<1x128xf32>
    %241 = arith.maximumf %238, %240 : vector<1x128xf32>
    %cst_46 = arith.constant 0.000000e+00 : f32
    %242 = vector.broadcast %cst_46 : f32 to vector<1x128xf32>
    %243 = arith.maximumf %241, %242 : vector<1x128xf32>
    %244 = arith.truncf %243 : vector<1x128xf32> to vector<1x128xbf16>
    %245 = vector.extract_strided_slice %148 {offsets = [0, 3, 0, 0], sizes = [1, 1, 1, 128], strides = [1, 1, 1, 1]} : vector<1x4x8x128xf32> to vector<1x1x1x128xf32>
    %246 = vector.shape_cast %245 : vector<1x1x1x128xf32> to vector<1x128xf32>
    %247 = vector.extract_strided_slice %148 {offsets = [0, 3, 1, 0], sizes = [1, 1, 1, 128], strides = [1, 1, 1, 1]} : vector<1x4x8x128xf32> to vector<1x1x1x128xf32>
    %248 = vector.shape_cast %247 : vector<1x1x1x128xf32> to vector<1x128xf32>
    %249 = arith.maximumf %246, %248 : vector<1x128xf32>
    %cst_47 = arith.constant 0.000000e+00 : f32
    %250 = vector.broadcast %cst_47 : f32 to vector<1x128xf32>
    %251 = arith.maximumf %249, %250 : vector<1x128xf32>
    %252 = arith.truncf %251 : vector<1x128xf32> to vector<1x128xbf16>
    %253 = vector.extract_strided_slice %148 {offsets = [0, 3, 2, 0], sizes = [1, 1, 1, 128], strides = [1, 1, 1, 1]} : vector<1x4x8x128xf32> to vector<1x1x1x128xf32>
    %254 = vector.shape_cast %253 : vector<1x1x1x128xf32> to vector<1x128xf32>
    %255 = vector.extract_strided_slice %148 {offsets = [0, 3, 3, 0], sizes = [1, 1, 1, 128], strides = [1, 1, 1, 1]} : vector<1x4x8x128xf32> to vector<1x1x1x128xf32>
    %256 = vector.shape_cast %255 : vector<1x1x1x128xf32> to vector<1x128xf32>
    %257 = arith.maximumf %254, %256 : vector<1x128xf32>
    %cst_48 = arith.constant 0.000000e+00 : f32
    %258 = vector.broadcast %cst_48 : f32 to vector<1x128xf32>
    %259 = arith.maximumf %257, %258 : vector<1x128xf32>
    %260 = arith.truncf %259 : vector<1x128xf32> to vector<1x128xbf16>
    %261 = vector.extract_strided_slice %148 {offsets = [0, 3, 4, 0], sizes = [1, 1, 1, 128], strides = [1, 1, 1, 1]} : vector<1x4x8x128xf32> to vector<1x1x1x128xf32>
    %262 = vector.shape_cast %261 : vector<1x1x1x128xf32> to vector<1x128xf32>
    %263 = vector.extract_strided_slice %148 {offsets = [0, 3, 5, 0], sizes = [1, 1, 1, 128], strides = [1, 1, 1, 1]} : vector<1x4x8x128xf32> to vector<1x1x1x128xf32>
    %264 = vector.shape_cast %263 : vector<1x1x1x128xf32> to vector<1x128xf32>
    %265 = arith.maximumf %262, %264 : vector<1x128xf32>
    %cst_49 = arith.constant 0.000000e+00 : f32
    %266 = vector.broadcast %cst_49 : f32 to vector<1x128xf32>
    %267 = arith.maximumf %265, %266 : vector<1x128xf32>
    %268 = arith.truncf %267 : vector<1x128xf32> to vector<1x128xbf16>
    %269 = vector.extract_strided_slice %148 {offsets = [0, 3, 6, 0], sizes = [1, 1, 1, 128], strides = [1, 1, 1, 1]} : vector<1x4x8x128xf32> to vector<1x1x1x128xf32>
    %270 = vector.shape_cast %269 : vector<1x1x1x128xf32> to vector<1x128xf32>
    %271 = vector.extract_strided_slice %148 {offsets = [0, 3, 7, 0], sizes = [1, 1, 1, 128], strides = [1, 1, 1, 1]} : vector<1x4x8x128xf32> to vector<1x1x1x128xf32>
    %272 = vector.shape_cast %271 : vector<1x1x1x128xf32> to vector<1x128xf32>
    %273 = arith.maximumf %270, %272 : vector<1x128xf32>
    %cst_50 = arith.constant 0.000000e+00 : f32
    %274 = vector.broadcast %cst_50 : f32 to vector<1x128xf32>
    %275 = arith.maximumf %273, %274 : vector<1x128xf32>
    %276 = arith.truncf %275 : vector<1x128xf32> to vector<1x128xbf16>
    %277 = tpu.concatenate %156, %164, %172, %180, %188, %196, %204, %212, %220, %228, %236, %244, %252, %260, %268, %276 in 1 : vector<1x128xbf16>, vector<1x128xbf16>, vector<1x128xbf16>, vector<1x128xbf16>, vector<1x128xbf16>, vector<1x128xbf16>, vector<1x128xbf16>, vector<1x128xbf16>, vector<1x128xbf16>, vector<1x128xbf16>, vector<1x128xbf16>, vector<1x128xbf16>, vector<1x128xbf16>, vector<1x128xbf16>, vector<1x128xbf16>, vector<1x128xbf16> -> vector<1x2048xbf16>
    %c0_51 = arith.constant 0 : index
    %c0_52 = arith.constant 0 : index
    %278 = vector.load %arg6[%c0_51, %c0_52] : memref<2048x128xbf16, #tpu.memory_space<vmem>>, vector<2048x128xbf16>
    %cst_53 = arith.constant dense<0.000000e+00> : vector<1x128xf32>
    %279 = tpu.matmul %277, %278, %cst_53 {dimension_numbers = #tpu.dot_dimension_numbers<[1], [0], [0], [1], [0, 0, 1, 1], [], []>} : vector<1x2048xbf16>, vector<2048x128xbf16>, vector<1x128xf32> -> vector<1x128xf32>
    %c0_54 = arith.constant 0 : index
    %c0_55 = arith.constant 0 : index
    %280 = vector.load %arg7[%c0_54, %c0_55] : memref<1x128xf32, #tpu.memory_space<vmem>>, vector<1x128xf32>
    %281 = arith.addf %279, %280 : vector<1x128xf32>
    %cst_56 = arith.constant 0.000000e+00 : f32
    %282 = vector.broadcast %cst_56 : f32 to vector<1x128xf32>
    %283 = arith.maximumf %281, %282 : vector<1x128xf32>
    %284 = arith.truncf %283 : vector<1x128xf32> to vector<1x128xbf16>
    %c0_57 = arith.constant 0 : index
    %c0_58 = arith.constant 0 : index
    %285 = vector.load %arg8[%c0_57, %c0_58] : memref<128x128xbf16, #tpu.memory_space<vmem>>, vector<128x128xbf16>
    %cst_59 = arith.constant dense<0.000000e+00> : vector<1x128xf32>
    %286 = tpu.matmul %284, %285, %cst_59 {dimension_numbers = #tpu.dot_dimension_numbers<[1], [0], [0], [1], [0, 0, 1, 1], [], []>} : vector<1x128xbf16>, vector<128x128xbf16>, vector<1x128xf32> -> vector<1x128xf32>
    %c0_60 = arith.constant 0 : index
    %c0_61 = arith.constant 0 : index
    %287 = vector.load %arg9[%c0_60, %c0_61] : memref<1x128xf32, #tpu.memory_space<vmem>>, vector<1x128xf32>
    %288 = arith.addf %286, %287 : vector<1x128xf32>
    %c0_62 = arith.constant 0 : index
    %c0_63 = arith.constant 0 : index
    %c0_64 = arith.constant 0 : index
    %289 = vector.load %arg10[%c0_62, %c0_63, %c0_64] : memref<1x1x128xf32, #tpu.memory_space<vmem>>, vector<1x1x128xf32>
    %290 = vector.shape_cast %289 : vector<1x1x128xf32> to vector<1x128xf32>
    %291 = vector.shape_cast %288 : vector<1x128xf32> to vector<1x1x128xf32>
    tpu.vector_store %arg10[%c0_62, %c0_63, %c0_64], %291 {strides = array<i32>} : memref<1x1x128xf32, #tpu.memory_space<vmem>>, vector<1x1x128xf32>,
    return
  }
  func.func @transform_0(%arg0: i32) -> (i32, i32, i32) {
    %c0_i32 = arith.constant 0 : i32
    %c0_i32_0 = arith.constant 0 : i32
    %c0_i32_1 = arith.constant 0 : i32
    return %arg0, %c0_i32, %c0_i32_0 : i32, i32, i32
  }
  func.func @transform_1(%arg0: i32) -> (i32, i32) {
    %c0_i32 = arith.constant 0 : i32
    %c0_i32_0 = arith.constant 0 : i32
    %c0_i32_1 = arith.constant 0 : i32
    return %c0_i32, %c0_i32_0 : i32, i32
  }
  func.func @transform_2(%arg0: i32) -> (i32, i32) {
    %c0_i32 = arith.constant 0 : i32
    %c0_i32_0 = arith.constant 0 : i32
    %c0_i32_1 = arith.constant 0 : i32
    return %c0_i32, %c0_i32_0 : i32, i32
  }
  func.func @transform_3(%arg0: i32) -> (i32, i32, i32) {
    %c0_i32 = arith.constant 0 : i32
    %c0_i32_0 = arith.constant 0 : i32
    %c0_i32_1 = arith.constant 0 : i32
    %c0_i32_2 = arith.constant 0 : i32
    return %c0_i32, %c0_i32_0, %c0_i32_1 : i32, i32, i32
  }
  func.func @transform_4(%arg0: i32) -> (i32, i32) {
    %c0_i32 = arith.constant 0 : i32
    %c0_i32_0 = arith.constant 0 : i32
    %c0_i32_1 = arith.constant 0 : i32
    return %c0_i32, %c0_i32_0 : i32, i32
  }
  func.func @transform_5(%arg0: i32) -> (i32, i32) {
    %c0_i32 = arith.constant 0 : i32
    %c0_i32_0 = arith.constant 0 : i32
    %c0_i32_1 = arith.constant 0 : i32
    return %c0_i32, %c0_i32_0 : i32, i32
  }
  func.func @transform_6(%arg0: i32) -> (i32, i32) {
    %c0_i32 = arith.constant 0 : i32
    %c0_i32_0 = arith.constant 0 : i32
    %c0_i32_1 = arith.constant 0 : i32
    return %c0_i32, %c0_i32_0 : i32, i32
  }
  func.func @transform_7(%arg0: i32) -> (i32, i32) {
    %c0_i32 = arith.constant 0 : i32
    %c0_i32_0 = arith.constant 0 : i32
    %c0_i32_1 = arith.constant 0 : i32
    return %c0_i32, %c0_i32_0 : i32, i32
  }
  func.func @transform_8(%arg0: i32) -> (i32, i32) {
    %c0_i32 = arith.constant 0 : i32
    %c0_i32_0 = arith.constant 0 : i32
    %c0_i32_1 = arith.constant 0 : i32
    return %c0_i32, %c0_i32_0 : i32, i32
  }
  func.func @transform_9(%arg0: i32) -> (i32, i32, i32) {
    %c0_i32 = arith.constant 0 : i32
    %c0_i32_0 = arith.constant 0 : i32
    %c0_i32_1 = arith.constant 0 : i32
    return %arg0, %c0_i32, %c0_i32_0 : i32, i32, i32
  }
}

</mosaic_0001>

<llo_original>
// kernel: net_mnist_forward.1
$region0: #{net_mnist_forward.1}
  #allocation0 [shape = 'u32[]', space=smem, size = 0x4, offset = 0x4, fixed_abs, tag = 'smem constant byte address 0x4 - core index']
  #allocation1 [shape = 'u32[144,128]{1,0:T(1,128)}', space=vmem, size = 0x12000, scoped, tag = 'internal scratch']
  %s0 = inlined_call_operand.vmem [shape: bf16[2,192,128], index: 0, kind: input, shape index: {}]
  %s1 = inlined_call_operand.vmem [shape: bf16[128,256], index: 1, kind: input, shape index: {}]
  %s2 = inlined_call_operand.vmem [shape: f32[1,64], index: 2, kind: input, shape index: {}]
  %s3 = inlined_call_operand.vmem [shape: bf16[5,64,128], index: 3, kind: input, shape index: {}]
  %s4 = inlined_call_operand.vmem [shape: f32[1,128], index: 4, kind: input, shape index: {}]
  %s5 = inlined_call_operand.vmem [shape: bf16[2048,128], index: 5, kind: input, shape index: {}]
  %s6 = inlined_call_operand.vmem [shape: f32[1,128], index: 6, kind: input, shape index: {}]
  %s7 = inlined_call_operand.vmem [shape: bf16[128,128], index: 7, kind: input, shape index: {}]
  %s8 = inlined_call_operand.vmem [shape: f32[1,128], index: 8, kind: input, shape index: {}]
  %s9 = inlined_call_operand.hbm [shape: f32[2,1,128], index: 9, kind: output, shape index: {}]
  %s10 = sld [smem:[#allocation0]]
  $region69: #{net_mnist_forward.1} parent=0
    _
  %s12 = ssub.s32 1, %s10
  %s13 = scalar_select 0, %s12, %s10
  $region1: #{net_mnist_forward.1} parent=0
    #allocation2 [shape = 'u8[1024]{0}', space=vmem, size = 0x400, scoped, tag = 'output window, operand 0']
    #allocation3 [shape = 's32[2]{0}', space=sflag, size = 0x8, scoped, tag = 'scoped memory for net_mnist_forward.1']
    %14 = vsyncpa [#allocation3], 0
    %s15 = scalar_lea.sflag [#allocation3], 1
    %16 = vsyncpa %s15, 0
    loop: start=0, step=1, limit=4
    $region2: #{net_mnist_forward.1} parent=1 // loop_pre_header
      _
    $region3: #{net_mnist_forward.1} parent=1 // loop_header
      %s18 = sphi 0, %s22
      %p19 = scmp.ge.s32.totalorder %s18, 4
      %s28 = sphi 0, %s30
      %s31 = sphi 0, %s28
      %s32 = sphi 0, %s31
      %s48 = sphi 0, %s32
      %s52 = sphi 0, %s52
      %s54 = sphi 0, %s52
      %s55 = sphi 0, %s54
      %s69 = sphi 0, %s55
      %s73 = sphi 0, %s73
      %s75 = sphi 0, %s73
      %s76 = sphi 0, %s75
      %s90 = sphi 0, %s76
      %s94 = sphi 0, %s94
      %s96 = sphi 0, %s94
      %s97 = sphi 0, %s96
      %s111 = sphi 0, %s97
      %s115 = sphi 0, %s115
      %s117 = sphi 0, %s115
      %s118 = sphi 0, %s117
      %s132 = sphi 0, %s118
      %s136 = sphi 0, %s136
      %s138 = sphi 0, %s136
      %s139 = sphi 0, %s138
      %s153 = sphi 0, %s139
      %s157 = sphi 0, %s157
      %s159 = sphi 0, %s157
      %s160 = sphi 0, %s159
      %s174 = sphi 0, %s160
      %s178 = sphi 0, %s178
      %s180 = sphi 0, %s178
      %s181 = sphi 0, %s180
      %s195 = sphi 0, %s181
      %s199 = sphi 0, %s199
      %s201 = sphi 0, %s199
      %s202 = sphi 0, %s201
      %s216 = sphi 0, %s202
      %s222 = sphi 0, %s224
      %s225 = sphi 0, %s222
      %s226 = sphi 0, %s225
      %s242 = sphi 0, %s226
    $region4: #{net_mnist_forward.1} parent=1 // loop_header_branch
      %21 = sbr.rel (%p19) target = $region8
    $region5: #{net_mnist_forward.1} parent=1 // loop_body
      %s23 = ssub.s32 %s18, 1
      %s24 = ssub.s32 %s18, 2
      %s25 = sadd.s32 %s18, 1
      %s26 = ssub.s32 %s18, %s25
      %p27 = scmp.eq.s32.totalorder %s26, 0
      %s29 = sadd.s32 %s28, 1
      %s30 = scalar_select %p27, %s28, %s29
      %p33 = pneg %p27
      %p34 = scmp.eq.s32.totalorder %s18, 1
      %p35 = por %p33, %p34
      %p36 = scmp.ne.s32.totalorder %s28, %s31
      %p37 = scmp.eq.s32.totalorder %s18, 0
      %p38 = por %p36, %p37
      %p39 = scmp.ne.s32.totalorder %s28, %s31
      %p40 = scmp.eq.s32.totalorder %s23, 1
      %p41 = por %p39, %p40
      %p42 = scmp.ne.s32.totalorder %s31, %s32
      %p43 = scmp.eq.s32.totalorder %s23, 0
      %p44 = por %p42, %p43
      %p45 = scmp.ne.s32.totalorder %s31, %s32
      %p46 = scmp.eq.s32.totalorder %s24, 1
      %p47 = por %p45, %p46
      %p49 = scmp.ne.s32.totalorder %s32, %s48
      %p50 = scmp.eq.s32.totalorder %s24, 0
      %p51 = por %p49, %p50
      %s53 = sadd.s32 %s52, 1
      %p56 = scmp.eq.s32.totalorder %s18, 1
      %p57 = scmp.ne.s32.totalorder %s52, %s54
      %p58 = scmp.eq.s32.totalorder %s18, 0
      %p59 = por %p57, %p58
      %p60 = scmp.ne.s32.totalorder %s52, %s54
      %p61 = scmp.eq.s32.totalorder %s23, 1
      %p62 = por %p60, %p61
      %p63 = scmp.ne.s32.totalorder %s54, %s55
      %p64 = scmp.eq.s32.totalorder %s23, 0
      %p65 = por %p63, %p64
      %p66 = scmp.ne.s32.totalorder %s54, %s55
      %p67 = scmp.eq.s32.totalorder %s24, 1
      %p68 = por %p66, %p67
      %p70 = scmp.ne.s32.totalorder %s55, %s69
      %p71 = scmp.eq.s32.totalorder %s24, 0
      %p72 = por %p70, %p71
      %s74 = sadd.s32 %s73, 1
      %p77 = scmp.eq.s32.totalorder %s18, 1
      %p78 = scmp.ne.s32.totalorder %s73, %s75
      %p79 = scmp.eq.s32.totalorder %s18, 0
      %p80 = por %p78, %p79
      %p81 = scmp.ne.s32.totalorder %s73, %s75
      %p82 = scmp.eq.s32.totalorder %s23, 1
      %p83 = por %p81, %p82
      %p84 = scmp.ne.s32.totalorder %s75, %s76
      %p85 = scmp.eq.s32.totalorder %s23, 0
      %p86 = por %p84, %p85
      %p87 = scmp.ne.s32.totalorder %s75, %s76
      %p88 = scmp.eq.s32.totalorder %s24, 1
      %p89 = por %p87, %p88
      %p91 = scmp.ne.s32.totalorder %s76, %s90
      %p92 = scmp.eq.s32.totalorder %s24, 0
      %p93 = por %p91, %p92
      %s95 = sadd.s32 %s94, 1
      %p98 = scmp.eq.s32.totalorder %s18, 1
      %p99 = scmp.ne.s32.totalorder %s94, %s96
      %p100 = scmp.eq.s32.totalorder %s18, 0
      %p101 = por %p99, %p100
      %p102 = scmp.ne.s32.totalorder %s94, %s96
      %p103 = scmp.eq.s32.totalorder %s23, 1
      %p104 = por %p102, %p103
      %p105 = scmp.ne.s32.totalorder %s96, %s97
      %p106 = scmp.eq.s32.totalorder %s23, 0
      %p107 = por %p105, %p106
      %p108 = scmp.ne.s32.totalorder %s96, %s97
      %p109 = scmp.eq.s32.totalorder %s24, 1
      %p110 = por %p108, %p109
      %p112 = scmp.ne.s32.totalorder %s97, %s111
      %p113 = scmp.eq.s32.totalorder %s24, 0
      %p114 = por %p112, %p113
      %s116 = sadd.s32 %s115, 1
      %p119 = scmp.eq.s32.totalorder %s18, 1
      %p120 = scmp.ne.s32.totalorder %s115, %s117
      %p121 = scmp.eq.s32.totalorder %s18, 0
      %p122 = por %p120, %p121
      %p123 = scmp.ne.s32.totalorder %s115, %s117
      %p124 = scmp.eq.s32.totalorder %s23, 1
      %p125 = por %p123, %p124
      %p126 = scmp.ne.s32.totalorder %s117, %s118
      %p127 = scmp.eq.s32.totalorder %s23, 0
      %p128 = por %p126, %p127
      %p129 = scmp.ne.s32.totalorder %s117, %s118
      %p130 = scmp.eq.s32.totalorder %s24, 1
      %p131 = por %p129, %p130
      %p133 = scmp.ne.s32.totalorder %s118, %s132
      %p134 = scmp.eq.s32.totalorder %s24, 0
      %p135 = por %p133, %p134
      %s137 = sadd.s32 %s136, 1
      %p140 = scmp.eq.s32.totalorder %s18, 1
      %p141 = scmp.ne.s32.totalorder %s136, %s138
      %p142 = scmp.eq.s32.totalorder %s18, 0
      %p143 = por %p141, %p142
      %p144 = scmp.ne.s32.totalorder %s136, %s138
      %p145 = scmp.eq.s32.totalorder %s23, 1
      %p146 = por %p144, %p145
      %p147 = scmp.ne.s32.totalorder %s138, %s139
      %p148 = scmp.eq.s32.totalorder %s23, 0
      %p149 = por %p147, %p148
      %p150 = scmp.ne.s32.totalorder %s138, %s139
      %p151 = scmp.eq.s32.totalorder %s24, 1
      %p152 = por %p150, %p151
      %p154 = scmp.ne.s32.totalorder %s139, %s153
      %p155 = scmp.eq.s32.totalorder %s24, 0
      %p156 = por %p154, %p155
      %s158 = sadd.s32 %s157, 1
      %p161 = scmp.eq.s32.totalorder %s18, 1
      %p162 = scmp.ne.s32.totalorder %s157, %s159
      %p163 = scmp.eq.s32.totalorder %s18, 0
      %p164 = por %p162, %p163
      %p165 = scmp.ne.s32.totalorder %s157, %s159
      %p166 = scmp.eq.s32.totalorder %s23, 1
      %p167 = por %p165, %p166
      %p168 = scmp.ne.s32.totalorder %s159, %s160
      %p169 = scmp.eq.s32.totalorder %s23, 0
      %p170 = por %p168, %p169
      %p171 = scmp.ne.s32.totalorder %s159, %s160
      %p172 = scmp.eq.s32.totalorder %s24, 1
      %p173 = por %p171, %p172
      %p175 = scmp.ne.s32.totalorder %s160, %s174
      %p176 = scmp.eq.s32.totalorder %s24, 0
      %p177 = por %p175, %p176
      %s179 = sadd.s32 %s178, 1
      %p182 = scmp.eq.s32.totalorder %s18, 1
      %p183 = scmp.ne.s32.totalorder %s178, %s180
      %p184 = scmp.eq.s32.totalorder %s18, 0
      %p185 = por %p183, %p184
      %p186 = scmp.ne.s32.totalorder %s178, %s180
      %p187 = scmp.eq.s32.totalorder %s23, 1
      %p188 = por %p186, %p187
      %p189 = scmp.ne.s32.totalorder %s180, %s181
      %p190 = scmp.eq.s32.totalorder %s23, 0
      %p191 = por %p189, %p190
      %p192 = scmp.ne.s32.totalorder %s180, %s181
      %p193 = scmp.eq.s32.totalorder %s24, 1
      %p194 = por %p192, %p193
      %p196 = scmp.ne.s32.totalorder %s181, %s195
      %p197 = scmp.eq.s32.totalorder %s24, 0
      %p198 = por %p196, %p197
      %s200 = sadd.s32 %s199, 1
      %p203 = scmp.eq.s32.totalorder %s18, 1
      %p204 = scmp.ne.s32.totalorder %s199, %s201
      %p205 = scmp.eq.s32.totalorder %s18, 0
      %p206 = por %p204, %p205
      %p207 = scmp.ne.s32.totalorder %s199, %s201
      %p208 = scmp.eq.s32.totalorder %s23, 1
      %p209 = por %p207, %p208
      %p210 = scmp.ne.s32.totalorder %s201, %s202
      %p211 = scmp.eq.s32.totalorder %s23, 0
      %p212 = por %p210, %p211
      %p213 = scmp.ne.s32.totalorder %s201, %s202
      %p214 = scmp.eq.s32.totalorder %s24, 1
      %p215 = por %p213, %p214
      %p217 = scmp.ne.s32.totalorder %s202, %s216
      %p218 = scmp.eq.s32.totalorder %s24, 0
      %p219 = por %p217, %p218
      %s220 = ssub.s32 %s18, %s25
      %p221 = scmp.eq.s32.totalorder %s220, 0
      %s223 = sadd.s32 %s222, 1
      %s224 = scalar_select %p221, %s222, %s223
      %p227 = pneg %p221
      %p228 = scmp.eq.s32.totalorder %s18, 1
      %p229 = por %p227, %p228
      %p230 = scmp.ne.s32.totalorder %s222, %s225
      %p231 = scmp.eq.s32.totalorder %s18, 0
      %p232 = por %p230, %p231
      %p233 = scmp.ne.s32.totalorder %s222, %s225
      %p234 = scmp.eq.s32.totalorder %s23, 1
      %p235 = por %p233, %p234
      %p236 = scmp.ne.s32.totalorder %s225, %s226
      %p237 = scmp.eq.s32.totalorder %s23, 0
      %p238 = por %p236, %p237
      %p239 = scmp.ne.s32.totalorder %s225, %s226
      %p240 = scmp.eq.s32.totalorder %s24, 1
      %p241 = por %p239, %p240
      %p243 = scmp.ne.s32.totalorder %s226, %s242
      %p244 = scmp.eq.s32.totalorder %s24, 0
      %p245 = por %p243, %p244
      %p246 = scmp.le.s32.totalorder 1, %s18
      %p247 = scmp.lt.s32.totalorder %s18, 3
      %p248 = pnand %p246, %p247
      %p249 = pneg %p248
      // Predicated region
      $region9: #{net_mnist_forward.1} parent=5 // pred_check
        _
      $region10: #{net_mnist_forward.1} parent=5 // pred_check_branch
        %251 = sbr.rel (%p248) target = $region12
      $region11: #{net_mnist_forward.1} parent=5 // pred_region
        %s252 = ssub.s32 %s18, 1
        // Predicated region
        $region13: #{net_mnist_forward.1} parent=11 // pred_check
          %p253 = pneg %p65
        $region14: #{net_mnist_forward.1} parent=11 // pred_check_branch
          %255 = sbr.rel (%p253) target = $region16
        $region15: #{net_mnist_forward.1} parent=11 // pred_region
          _
        $region16: #{net_mnist_forward.1} parent=11 // pred_fallthru
          _
        // Predicated region
        $region17: #{net_mnist_forward.1} parent=11 // pred_check
          %p256 = pneg %p86
        $region18: #{net_mnist_forward.1} parent=11 // pred_check_branch
          %258 = sbr.rel (%p256) target = $region20
        $region19: #{net_mnist_forward.1} parent=11 // pred_region
          _
        $region20: #{net_mnist_forward.1} parent=11 // pred_fallthru
          _
        // Predicated region
        $region21: #{net_mnist_forward.1} parent=11 // pred_check
          %p259 = pneg %p107
        $region22: #{net_mnist_forward.1} parent=11 // pred_check_branch
          %261 = sbr.rel (%p259) target = $region24
        $region23: #{net_mnist_forward.1} parent=11 // pred_region
          _
        $region24: #{net_mnist_forward.1} parent=11 // pred_fallthru
          _
        // Predicated region
        $region25: #{net_mnist_forward.1} parent=11 // pred_check
          %p262 = pneg %p128
        $region26: #{net_mnist_forward.1} parent=11 // pred_check_branch
          %264 = sbr.rel (%p262) target = $region28
        $region27: #{net_mnist_forward.1} parent=11 // pred_region
          _
        $region28: #{net_mnist_forward.1} parent=11 // pred_fallthru
          _
        // Predicated region
        $region29: #{net_mnist_forward.1} parent=11 // pred_check
          %p265 = pneg %p149
        $region30: #{net_mnist_forward.1} parent=11 // pred_check_branch
          %267 = sbr.rel (%p265) target = $region32
        $region31: #{net_mnist_forward.1} parent=11 // pred_region
          _
        $region32: #{net_mnist_forward.1} parent=11 // pred_fallthru
          _
        // Predicated region
        $region33: #{net_mnist_forward.1} parent=11 // pred_check
          %p268 = pneg %p170
        $region34: #{net_mnist_forward.1} parent=11 // pred_check_branch
          %270 = sbr.rel (%p268) target = $region36
        $region35: #{net_mnist_forward.1} parent=11 // pred_region
          _
        $region36: #{net_mnist_forward.1} parent=11 // pred_fallthru
          _
        // Predicated region
        $region37: #{net_mnist_forward.1} parent=11 // pred_check
          %p271 = pneg %p191
        $region38: #{net_mnist_forward.1} parent=11 // pred_check_branch
          %273 = sbr.rel (%p271) target = $region40
        $region39: #{net_mnist_forward.1} parent=11 // pred_region
          _
        $region40: #{net_mnist_forward.1} parent=11 // pred_fallthru
          _
        // Predicated region
        $region41: #{net_mnist_forward.1} parent=11 // pred_check
          %p274 = pneg %p212
        $region42: #{net_mnist_forward.1} parent=11 // pred_check_branch
          %276 = sbr.rel (%p274) target = $region44
        $region43: #{net_mnist_forward.1} parent=11 // pred_region
          _
        $region44: #{net_mnist_forward.1} parent=11 // pred_fallthru
          _
      $region12: #{net_mnist_forward.1} parent=5 // pred_fallthru
        _
      %p277 = scmp.lt.s32.totalorder %s18, 2
      // Predicated region
      $region45: #{net_mnist_forward.1} parent=5 // pred_check
        %p278 = pneg %p277
      $region46: #{net_mnist_forward.1} parent=5 // pred_check_branch
        %280 = sbr.rel (%p278) target = $region48
      $region47: #{net_mnist_forward.1} parent=5 // pred_region
        // Predicated region
        $region49: #{net_mnist_forward.1} parent=47 // pred_check
          %p281 = pneg %p38
        $region50: #{net_mnist_forward.1} parent=47 // pred_check_branch
          %283 = sbr.rel (%p281) target = $region52
        $region51: #{net_mnist_forward.1} parent=47 // pred_region
          %p284 = scmp.lt.s32.totalorder %s18, 1
          %s285 = scalar_select %p284, %s18, 1
          %s286 = smul.addr %s285, 24
          %s287 = smul.addr %s286, 4
          %s288 = scalar_lea.vmem %s0, %s287
        $region52: #{net_mnist_forward.1} parent=47 // pred_fallthru
          _
      $region48: #{net_mnist_forward.1} parent=5 // pred_fallthru
        _
      %p289 = scmp.le.s32.totalorder 1, %s18
      %p290 = scmp.lt.s32.totalorder %s18, 3
      %p291 = pnand %p289, %p290
      %p292 = pneg %p291
      // Predicated region
      $region53: #{net_mnist_forward.1} parent=5 // pred_check
        _
      $region54: #{net_mnist_forward.1} parent=5 // pred_check_branch
        %294 = sbr.rel (%p291) target = $region56
      $region55: #{net_mnist_forward.1} parent=5 // pred_region
        %s295 = ssub.s32 %s18, 1
        %p296 = scmp.lt.s32.totalorder %s23, 1
        %s297 = scalar_select %p296, %s23, 1
        %s298 = smul.addr %s297, 24
        %s299 = smul.addr %s298, 4
        %s300 = scalar_lea.vmem %s0, %s299
        %p301 = pneg %p44
        %p302 = pneg %p41
        %p303 = pneg %p65
        %p304 = pneg %p62
        %p305 = pneg %p86
        %p306 = pneg %p83
        %p307 = pneg %p107
        %p308 = pneg %p104
        %p309 = pneg %p128
        %p310 = pneg %p125
        %p311 = pneg %p149
        %p312 = pneg %p146
        %p313 = pneg %p170
        %p314 = pneg %p167
        %p315 = pneg %p191
        %p316 = pneg %p188
        %p317 = pneg %p212
        %p318 = pneg %p209
        %p319 = pneg %p238
        %p320 = pneg %p235
        %s321 = sand.u32 %s225, 1
        %s322 = scalar_lea.sflag [#allocation3], %s321
        %s323 = sand.u32 %s225, 1
        %s324 = scalar_lea.vmem [#allocation2], %s323
        %p325 = scmp.lt.s32.totalorder %s23, 1
        %s326 = scalar_select %p325, %s23, 1
        %s327 = smul.addr %s326, 24
        %s328 = smul.addr %s327, 4
        %s329 = scalar_lea.vmem %s0, %s328
        %v331 = vld [vmem:[%s329] sm:$0xf]
        %v332 = vld [vmem:[%s329 + $0x4] sm:$0xf]
        %v333 = vld [vmem:[%s329 + $0x8] sm:$0xf]
        %v334 = vld [vmem:[%s329 + $0xc] sm:$0xf]
        %v335 = vld [vmem:[%s329 + $0x10] sm:$0xf]
        %v336 = vld [vmem:[%s329 + $0x14] sm:$0xf]
        %v337 = vld [vmem:[%s329 + $0x18] sm:$0xf]
        %v338 = vld [vmem:[%s329 + $0x1c] sm:$0xf]
        %v339 = vld [vmem:[%s329 + $0x20] sm:$0xf]
        %v340 = vld [vmem:[%s329 + $0x24] sm:$0xf]
        %v341 = vld [vmem:[%s329 + $0x28] sm:$0xf]
        %v342 = vld [vmem:[%s329 + $0x2c] sm:$0xf]
        %v343 = vld [vmem:[%s329 + $0x30] sm:$0xf]
        %v344 = vld [vmem:[%s329 + $0x34] sm:$0xf]
        %v345 = vld [vmem:[%s329 + $0x38] sm:$0xf]
        %v346 = vld [vmem:[%s329 + $0x3c] sm:$0xf]
        %v347 = vld [vmem:[%s329 + $0x40] sm:$0xf]
        %v348 = vld [vmem:[%s329 + $0x44] sm:$0xf]
        %v349 = vld [vmem:[%s329 + $0x48] sm:$0xf]
        %v350 = vld [vmem:[%s329 + $0x4c] sm:$0xf]
        %v351 = vld [vmem:[%s329 + $0x50] sm:$0xf]
        %v352 = vld [vmem:[%s329 + $0x54] sm:$0xf]
        %v353 = vld [vmem:[%s329 + $0x58] sm:$0xf]
        %v354 = vld [vmem:[%s329 + $0x5c] sm:$0xf]
        %v355 = vld [vmem:[%s1] sm:$0xff]
        %v356 = vld [vmem:[%s1 + $0x8] sm:$0xff]
        %v357 = vld [vmem:[%s1 + $0x10] sm:$0xff]
        %v358 = vld [vmem:[%s1 + $0x18] sm:$0xff]
        %v359 = vld [vmem:[%s1 + $0x20] sm:$0xff]
        %v360 = vld [vmem:[%s1 + $0x28] sm:$0xff]
        %v361 = vld [vmem:[%s1 + $0x30] sm:$0xff]
        %v362 = vld [vmem:[%s1 + $0x38] sm:$0xff]
        %v363 = vld [vmem:[%s1 + $0x40] sm:$0xff]
        %v364 = vld [vmem:[%s1 + $0x48] sm:$0xff]
        %v365 = vld [vmem:[%s1 + $0x50] sm:$0xff]
        %v366 = vld [vmem:[%s1 + $0x58] sm:$0xff]
        %v367 = vld [vmem:[%s1 + $0x60] sm:$0xff]
        %v368 = vld [vmem:[%s1 + $0x68] sm:$0xff]
        %v369 = vld [vmem:[%s1 + $0x70] sm:$0xff]
        %v370 = vld [vmem:[%s1 + $0x78] sm:$0xff]
        %v395 = vunpack.c.l.b16 %v331
        %v396 = vunpack.c.l.b16 %v332
        %v397 = vunpack.c.l.b16 %v333
        %v398 = vunpack.c.l.b16 %v334
        %v399 = vunpack.c.l.b16 %v335
        %v400 = vunpack.c.l.b16 %v336
        %v401 = vunpack.c.l.b16 %v337
        %v402 = vunpack.c.l.b16 %v338
        %v403 = vunpack.c.l.b16 %v339
        %v404 = vunpack.c.l.b16 %v340
        %v405 = vunpack.c.l.b16 %v341
        %v406 = vunpack.c.l.b16 %v342
        %v407 = vunpack.c.l.b16 %v343
        %v408 = vunpack.c.l.b16 %v344
        %v409 = vunpack.c.l.b16 %v345
        %v410 = vunpack.c.l.b16 %v346
        %v411 = vunpack.c.l.b16 %v347
        %v412 = vunpack.c.l.b16 %v348
        %v413 = vunpack.c.l.b16 %v349
        %v414 = vunpack.c.l.b16 %v350
        %v415 = vunpack.c.l.b16 %v351
        %v416 = vunpack.c.l.b16 %v352
        %v417 = vunpack.c.l.b16 %v353
        %v418 = vunpack.c.l.b16 %v354
        %v419 = vpack.c.b16 %v396, %v395
        %v420 = vpack.c.b16 %v398, %v397
        %v421 = vpack.c.b16 %v400, %v399
        %v422 = vpack.c.b16 %v402, %v401
        %v423 = vpack.c.b16 %v404, %v403
        %v424 = vpack.c.b16 %v406, %v405
        %v425 = vpack.c.b16 %v408, %v407
        %v426 = vpack.c.b16 %v410, %v409
        %v427 = vpack.c.b16 %v412, %v411
        %v428 = vpack.c.b16 %v414, %v413
        %v429 = vpack.c.b16 %v416, %v415
        %v430 = vpack.c.b16 %v418, %v417
        %v459 = vunpack.c.l.b16 %v355
        %v460 = vunpack.c.h.b16 %v355
        %v461 = vunpack.c.l.b16 %v356
        %v462 = vunpack.c.h.b16 %v356
        %v463 = vunpack.c.l.b16 %v357
        %v464 = vunpack.c.h.b16 %v357
        %v465 = vunpack.c.l.b16 %v358
        %v466 = vunpack.c.h.b16 %v358
        %v467 = vunpack.c.l.b16 %v359
        %v468 = vunpack.c.h.b16 %v359
        %v469 = vunpack.c.l.b16 %v360
        %v470 = vunpack.c.h.b16 %v360
        %v471 = vunpack.c.l.b16 %v361
        %v472 = vunpack.c.h.b16 %v361
        %v473 = vunpack.c.l.b16 %v362
        %v474 = vunpack.c.h.b16 %v362
        %v475 = vunpack.c.l.b16 %v363
        %v476 = vunpack.c.h.b16 %v363
        %v477 = vunpack.c.l.b16 %v364
        %v478 = vunpack.c.h.b16 %v364
        %v479 = vunpack.c.l.b16 %v365
        %v480 = vunpack.c.h.b16 %v365
        %v481 = vunpack.c.l.b16 %v366
        %v482 = vunpack.c.h.b16 %v366
        %v483 = vunpack.c.l.b16 %v367
        %v484 = vunpack.c.h.b16 %v367
        %v485 = vunpack.c.l.b16 %v368
        %v486 = vunpack.c.h.b16 %v368
        %v487 = vunpack.c.l.b16 %v369
        %v488 = vunpack.c.h.b16 %v369
        %v489 = vunpack.c.l.b16 %v370
        %v490 = vunpack.c.h.b16 %v370
        %v491 = vpack.c.b16 %v461, %v459
        %v492 = vpack.c.b16 %v462, %v460
        %v493 = vpack.c.b16 %v465, %v463
        %v494 = vpack.c.b16 %v466, %v464
        %v495 = vpack.c.b16 %v469, %v467
        %v496 = vpack.c.b16 %v470, %v468
        %v497 = vpack.c.b16 %v473, %v471
        %v498 = vpack.c.b16 %v474, %v472
        %v499 = vpack.c.b16 %v477, %v475
        %v500 = vpack.c.b16 %v478, %v476
        %v501 = vpack.c.b16 %v481, %v479
        %v502 = vpack.c.b16 %v482, %v480
        %v503 = vpack.c.b16 %v485, %v483
        %v504 = vpack.c.b16 %v486, %v484
        %v505 = vpack.c.b16 %v489, %v487
        %v506 = vpack.c.b16 %v490, %v488
        %523 = vmatprep.subr.bf16.mxu0 %v492
        %524 = vmatpush1.bf16.msra.mxu0 %v491
        %525 = vmatprep.subr.bf16.mxu0 %v494
        %526 = vmatpush1.bf16.msra.mxu0 %v493
        %527 = vmatprep.subr.bf16.mxu0 %v496
        %528 = vmatpush1.bf16.msra.mxu0 %v495
        %529 = vmatprep.subr.bf16.mxu0 %v498
        %530 = vmatpush1.bf16.msra.mxu0 %v497
        %531 = vmatprep.subr.bf16.mxu0 %v500
        %532 = vmatpush1.bf16.msra.mxu0 %v499
        %533 = vmatprep.subr.bf16.mxu0 %v502
        %534 = vmatpush1.bf16.msra.mxu0 %v501
        %535 = vmatprep.subr.bf16.mxu0 %v504
        %536 = vmatpush1.bf16.msra.mxu0 %v503
        %537 = vmatprep.subr.bf16.mxu0 %v506
        %538 = vmatpush1.bf16.msra.mxu0 %v505
        %539 = vmatprep.subr.bf16.mxu0 0
        %540 = vmatpush1.bf16.msra.mxu0 0
        %541 = vmatprep.subr.bf16.mxu0 0
        %542 = vmatpush1.bf16.msra.mxu0 0
        %543 = vmatprep.subr.bf16.mxu0 0
        %544 = vmatpush1.bf16.msra.mxu0 0
        %545 = vmatprep.subr.bf16.mxu0 0
        %546 = vmatpush1.bf16.msra.mxu0 0
        %547 = vmatprep.subr.bf16.mxu0 0
        %548 = vmatpush1.bf16.msra.mxu0 0
        %549 = vmatprep.subr.bf16.mxu0 0
        %550 = vmatpush1.bf16.msra.mxu0 0
        %551 = vmatprep.subr.bf16.mxu0 0
        %552 = vmatpush1.bf16.msra.mxu0 0
        %553 = vmatprep.subr.bf16.mxu0 0
        %554 = vmatpush1.bf16.msra.mxu0 0
        %555 = vmatprep.mubr.bf16.mxu0 0
        %556 = vmatmul.mubr.bf16.gmra.mrb[0].mxu0 %v419
        %v557 = vpop.f32.mrb[0].mxu0
        %v558 = vadd.f32 0.0, %v557
        %v559 = vpop.f32.mrb[0].mxu0
        %v560 = vadd.f32 0.0, %v559
        %v561 = vpop.f32.mrb[0].mxu0
        %v562 = vadd.f32 0.0, %v561
        %v563 = vpop.f32.mrb[0].mxu0
        %v564 = vadd.f32 0.0, %v563
        %565 = vmatprep.mubr.bf16.mxu0 0
        %566 = vmatmul.mubr.bf16.gmra.mrb[0].mxu0 %v420
        %v567 = vpop.f32.mrb[0].mxu0
        %v568 = vadd.f32 0.0, %v567
        %v569 = vpop.f32.mrb[0].mxu0
        %v570 = vadd.f32 0.0, %v569
        %v571 = vpop.f32.mrb[0].mxu0
        %v572 = vadd.f32 0.0, %v571
        %v573 = vpop.f32.mrb[0].mxu0
        %v574 = vadd.f32 0.0, %v573
        %575 = vmatprep.mubr.bf16.mxu0 0
        %576 = vmatmul.mubr.bf16.gmra.mrb[0].mxu0 %v421
        %v577 = vpop.f32.mrb[0].mxu0
        %v578 = vadd.f32 0.0, %v577
        %v579 = vpop.f32.mrb[0].mxu0
        %v580 = vadd.f32 0.0, %v579
        %v581 = vpop.f32.mrb[0].mxu0
        %v582 = vadd.f32 0.0, %v581
        %v583 = vpop.f32.mrb[0].mxu0
        %v584 = vadd.f32 0.0, %v583
        %585 = vmatprep.mubr.bf16.mxu0 0
        %586 = vmatmul.mubr.bf16.gmra.mrb[0].mxu0 %v422
        %v587 = vpop.f32.mrb[0].mxu0
        %v588 = vadd.f32 0.0, %v587
        %v589 = vpop.f32.mrb[0].mxu0
        %v590 = vadd.f32 0.0, %v589
        %v591 = vpop.f32.mrb[0].mxu0
        %v592 = vadd.f32 0.0, %v591
        %v593 = vpop.f32.mrb[0].mxu0
        %v594 = vadd.f32 0.0, %v593
        %595 = vmatprep.mubr.bf16.mxu0 0
        %596 = vmatmul.mubr.bf16.gmra.mrb[0].mxu0 %v423
        %v597 = vpop.f32.mrb[0].mxu0
        %v598 = vadd.f32 0.0, %v597
        %v599 = vpop.f32.mrb[0].mxu0
        %v600 = vadd.f32 0.0, %v599
        %v601 = vpop.f32.mrb[0].mxu0
        %v602 = vadd.f32 0.0, %v601
        %v603 = vpop.f32.mrb[0].mxu0
        %v604 = vadd.f32 0.0, %v603
        %605 = vmatprep.mubr.bf16.mxu0 0
        %606 = vmatmul.mubr.bf16.gmra.mrb[0].mxu0 %v424
        %v607 = vpop.f32.mrb[0].mxu0
        %v608 = vadd.f32 0.0, %v607
        %v609 = vpop.f32.mrb[0].mxu0
        %v610 = vadd.f32 0.0, %v609
        %v611 = vpop.f32.mrb[0].mxu0
        %v612 = vadd.f32 0.0, %v611
        %v613 = vpop.f32.mrb[0].mxu0
        %v614 = vadd.f32 0.0, %v613
        %615 = vmatprep.mubr.bf16.mxu0 0
        %616 = vmatmul.mubr.bf16.gmra.mrb[0].mxu0 %v425
        %v617 = vpop.f32.mrb[0].mxu0
        %v618 = vadd.f32 0.0, %v617
        %v619 = vpop.f32.mrb[0].mxu0
        %v620 = vadd.f32 0.0, %v619
        %v621 = vpop.f32.mrb[0].mxu0
        %v622 = vadd.f32 0.0, %v621
        %v623 = vpop.f32.mrb[0].mxu0
        %v624 = vadd.f32 0.0, %v623
        %625 = vmatprep.mubr.bf16.mxu0 0
        %626 = vmatmul.mubr.bf16.gmra.mrb[0].mxu0 %v426
        %v627 = vpop.f32.mrb[0].mxu0
        %v628 = vadd.f32 0.0, %v627
        %v629 = vpop.f32.mrb[0].mxu0
        %v630 = vadd.f32 0.0, %v629
        %v631 = vpop.f32.mrb[0].mxu0
        %v632 = vadd.f32 0.0, %v631
        %v633 = vpop.f32.mrb[0].mxu0
        %v634 = vadd.f32 0.0, %v633
        %635 = vmatprep.mubr.bf16.mxu0 0
        %636 = vmatmul.mubr.bf16.gmra.mrb[0].mxu0 %v427
        %v637 = vpop.f32.mrb[0].mxu0
        %v638 = vadd.f32 0.0, %v637
        %v639 = vpop.f32.mrb[0].mxu0
        %v640 = vadd.f32 0.0, %v639
        %v641 = vpop.f32.mrb[0].mxu0
        %v642 = vadd.f32 0.0, %v641
        %v643 = vpop.f32.mrb[0].mxu0
        %v644 = vadd.f32 0.0, %v643
        %645 = vmatprep.mubr.bf16.mxu0 0
        %646 = vmatmul.mubr.bf16.gmra.mrb[0].mxu0 %v428
        %v647 = vpop.f32.mrb[0].mxu0
        %v648 = vadd.f32 0.0, %v647
        %v649 = vpop.f32.mrb[0].mxu0
        %v650 = vadd.f32 0.0, %v649
        %v651 = vpop.f32.mrb[0].mxu0
        %v652 = vadd.f32 0.0, %v651
        %v653 = vpop.f32.mrb[0].mxu0
        %v654 = vadd.f32 0.0, %v653
        %655 = vmatprep.mubr.bf16.mxu0 0
        %656 = vmatmul.mubr.bf16.gmra.mrb[0].mxu0 %v429
        %v657 = vpop.f32.mrb[0].mxu0
        %v658 = vadd.f32 0.0, %v657
        %v659 = vpop.f32.mrb[0].mxu0
        %v660 = vadd.f32 0.0, %v659
        %v661 = vpop.f32.mrb[0].mxu0
        %v662 = vadd.f32 0.0, %v661
        %v663 = vpop.f32.mrb[0].mxu0
        %v664 = vadd.f32 0.0, %v663
        %665 = vmatprep.mubr.bf16.mxu0 0
        %666 = vmatmul.mubr.bf16.gmra.mrb[0].mxu0 %v430
        %v667 = vpop.f32.mrb[0].mxu0
        %v668 = vadd.f32 0.0, %v667
        %v669 = vpop.f32.mrb[0].mxu0
        %v670 = vadd.f32 0.0, %v669
        %v671 = vpop.f32.mrb[0].mxu0
        %v672 = vadd.f32 0.0, %v671
        %v673 = vpop.f32.mrb[0].mxu0
        %v674 = vadd.f32 0.0, %v673
        %675 = vdwg.mxu0
        %v676 = vmax.f32 %v558, %v560
        %v677 = vmax.f32 %v562, %v564
        %v678 = vmax.f32 %v568, %v570
        %v679 = vmax.f32 %v572, %v574
        %v680 = vmax.f32 %v578, %v580
        %v681 = vmax.f32 %v582, %v584
        %v682 = vmax.f32 %v588, %v590
        %v683 = vmax.f32 %v592, %v594
        %v684 = vmax.f32 %v598, %v600
        %v685 = vmax.f32 %v602, %v604
        %v686 = vmax.f32 %v608, %v610
        %v687 = vmax.f32 %v612, %v614
        %v688 = vmax.f32 %v618, %v620
        %v689 = vmax.f32 %v622, %v624
        %v690 = vmax.f32 %v628, %v630
        %v691 = vmax.f32 %v632, %v634
        %v692 = vmax.f32 %v638, %v640
        %v693 = vmax.f32 %v642, %v644
        %v694 = vmax.f32 %v648, %v650
        %v695 = vmax.f32 %v652, %v654
        %v696 = vmax.f32 %v658, %v660
        %v697 = vmax.f32 %v662, %v664
        %v698 = vmax.f32 %v668, %v670
        %v699 = vmax.f32 %v672, %v674
        %724 = vrot.lane.b32.xlu0 %v676, 64
        %v725 = vpop.permute.xlu0 %724
        %726 = vrot.lane.b32.xlu0 %v677, 64
        %v727 = vpop.permute.xlu0 %726
        %728 = vrot.lane.b32.xlu0 %v678, 64
        %v729 = vpop.permute.xlu0 %728
        %730 = vrot.lane.b32.xlu0 %v679, 64
        %v731 = vpop.permute.xlu0 %730
        %732 = vrot.lane.b32.xlu0 %v680, 64
        %v733 = vpop.permute.xlu0 %732
        %734 = vrot.lane.b32.xlu0 %v681, 64
        %v735 = vpop.permute.xlu0 %734
        %736 = vrot.lane.b32.xlu0 %v682, 64
        %v737 = vpop.permute.xlu0 %736
        %738 = vrot.lane.b32.xlu0 %v683, 64
        %v739 = vpop.permute.xlu0 %738
        %740 = vrot.lane.b32.xlu0 %v684, 64
        %v741 = vpop.permute.xlu0 %740
        %742 = vrot.lane.b32.xlu0 %v685, 64
        %v743 = vpop.permute.xlu0 %742
        %744 = vrot.lane.b32.xlu0 %v686, 64
        %v745 = vpop.permute.xlu0 %744
        %746 = vrot.lane.b32.xlu0 %v687, 64
        %v747 = vpop.permute.xlu0 %746
        %748 = vrot.lane.b32.xlu0 %v688, 64
        %v749 = vpop.permute.xlu0 %748
        %750 = vrot.lane.b32.xlu0 %v689, 64
        %v751 = vpop.permute.xlu0 %750
        %752 = vrot.lane.b32.xlu0 %v690, 64
        %v753 = vpop.permute.xlu0 %752
        %754 = vrot.lane.b32.xlu0 %v691, 64
        %v755 = vpop.permute.xlu0 %754
        %756 = vrot.lane.b32.xlu0 %v692, 64
        %v757 = vpop.permute.xlu0 %756
        %758 = vrot.lane.b32.xlu0 %v693, 64
        %v759 = vpop.permute.xlu0 %758
        %760 = vrot.lane.b32.xlu0 %v694, 64
        %v761 = vpop.permute.xlu0 %760
        %762 = vrot.lane.b32.xlu0 %v695, 64
        %v763 = vpop.permute.xlu0 %762
        %764 = vrot.lane.b32.xlu0 %v696, 64
        %v765 = vpop.permute.xlu0 %764
        %766 = vrot.lane.b32.xlu0 %v697, 64
        %v767 = vpop.permute.xlu0 %766
        %768 = vrot.lane.b32.xlu0 %v698, 64
        %v769 = vpop.permute.xlu0 %768
        %770 = vrot.lane.b32.xlu0 %v699, 64
        %v771 = vpop.permute.xlu0 %770
        %v796 = vmax.f32 %v676, %v725
        %v797 = vmax.f32 %v677, %v727
        %v798 = vmax.f32 %v678, %v729
        %v799 = vmax.f32 %v679, %v731
        %v800 = vmax.f32 %v680, %v733
        %v801 = vmax.f32 %v681, %v735
        %v802 = vmax.f32 %v682, %v737
        %v803 = vmax.f32 %v683, %v739
        %v804 = vmax.f32 %v684, %v741
        %v805 = vmax.f32 %v685, %v743
        %v806 = vmax.f32 %v686, %v745
        %v807 = vmax.f32 %v687, %v747
        %v808 = vmax.f32 %v688, %v749
        %v809 = vmax.f32 %v689, %v751
        %v810 = vmax.f32 %v690, %v753
        %v811 = vmax.f32 %v691, %v755
        %v812 = vmax.f32 %v692, %v757
        %v813 = vmax.f32 %v693, %v759
        %v814 = vmax.f32 %v694, %v761
        %v815 = vmax.f32 %v695, %v763
        %v816 = vmax.f32 %v696, %v765
        %v817 = vmax.f32 %v697, %v767
        %v818 = vmax.f32 %v698, %v769
        %v819 = vmax.f32 %v699, %v771
        %v820 = vld [vmem:[%s2] sm:$0x1]
        %v822 = vlaneseq
        %v823 = vshrl.u32 %v822, 7
        %v824 = vsub.s32 0, %v823
        %v825 = vrot.slane %v820, %v824
        %v827 = vadd.f32 %v796, %v825
        %v828 = vadd.f32 %v797, %v825
        %v829 = vadd.f32 %v798, %v825
        %v830 = vadd.f32 %v799, %v825
        %v831 = vadd.f32 %v800, %v825
        %v832 = vadd.f32 %v801, %v825
        %v833 = vadd.f32 %v802, %v825
        %v834 = vadd.f32 %v803, %v825
        %v835 = vadd.f32 %v804, %v825
        %v836 = vadd.f32 %v805, %v825
        %v837 = vadd.f32 %v806, %v825
        %v838 = vadd.f32 %v807, %v825
        %v839 = vadd.f32 %v808, %v825
        %v840 = vadd.f32 %v809, %v825
        %v841 = vadd.f32 %v810, %v825
        %v842 = vadd.f32 %v811, %v825
        %v843 = vadd.f32 %v812, %v825
        %v844 = vadd.f32 %v813, %v825
        %v845 = vadd.f32 %v814, %v825
        %v846 = vadd.f32 %v815, %v825
        %v847 = vadd.f32 %v816, %v825
        %v848 = vadd.f32 %v817, %v825
        %v849 = vadd.f32 %v818, %v825
        %v850 = vadd.f32 %v819, %v825
        %v851 = vmax.f32 %v827, 0.0
        %v852 = vmax.f32 %v828, 0.0
        %v853 = vmax.f32 %v829, 0.0
        %v854 = vmax.f32 %v830, 0.0
        %v855 = vmax.f32 %v831, 0.0
        %v856 = vmax.f32 %v832, 0.0
        %v857 = vmax.f32 %v833, 0.0
        %v858 = vmax.f32 %v834, 0.0
        %v859 = vmax.f32 %v835, 0.0
        %v860 = vmax.f32 %v836, 0.0
        %v861 = vmax.f32 %v837, 0.0
        %v862 = vmax.f32 %v838, 0.0
        %v863 = vmax.f32 %v839, 0.0
        %v864 = vmax.f32 %v840, 0.0
        %v865 = vmax.f32 %v841, 0.0
        %v866 = vmax.f32 %v842, 0.0
        %v867 = vmax.f32 %v843, 0.0
        %v868 = vmax.f32 %v844, 0.0
        %v869 = vmax.f32 %v845, 0.0
        %v870 = vmax.f32 %v846, 0.0
        %v871 = vmax.f32 %v847, 0.0
        %v872 = vmax.f32 %v848, 0.0
        %v873 = vmax.f32 %v849, 0.0
        %v874 = vmax.f32 %v850, 0.0
        %v875 = vpack.c.bf16 %v852, %v851
        %v876 = vpack.c.bf16 %v854, %v853
        %v877 = vpack.c.bf16 %v856, %v855
        %v878 = vpack.c.bf16 %v858, %v857
        %v879 = vpack.c.bf16 %v860, %v859
        %v880 = vpack.c.bf16 %v862, %v861
        %v881 = vpack.c.bf16 %v864, %v863
        %v882 = vpack.c.bf16 %v866, %v865
        %v883 = vpack.c.bf16 %v868, %v867
        %v884 = vpack.c.bf16 %v870, %v869
        %v885 = vpack.c.bf16 %v872, %v871
        %v886 = vpack.c.bf16 %v874, %v873
        %v887 = vlaneseq
        %v888 = vand.u32 %v887, 127
        %vm889 = vcmp.ge.s32.totalorder %v888, 0
        %vm890 = vcmp.lt.s32.totalorder %v888, 10
        %vm891 = vmand %vm889, %vm890
        %v892 = vsel %vm891, 1, 0
        %vm893 = vcmp.eq.s32.totalorder %v892, 1
        %vm894 = vmpackc.low %vm893, %vm893
        %v895 = vsel %vm894, %v875, 0
        %v896 = vsel %vm894, %v876, 0
        %v897 = vsel %vm894, %v877, 0
        %v898 = vsel %vm894, %v878, 0
        %v899 = vsel %vm894, %v879, 0
        %v900 = vsel %vm894, %v880, 0
        %v901 = vsel %vm894, %v881, 0
        %v902 = vsel %vm894, %v882, 0
        %v903 = vsel %vm894, %v883, 0
        %v904 = vsel %vm894, %v884, 0
        %v905 = vsel %vm894, %v885, 0
        %v906 = vsel %vm894, %v886, 0
        %vm907 = vcmp.ge.s32.totalorder %v888, 10
        %vm908 = vcmp.lt.s32.totalorder %v888, 20
        %vm909 = vmand %vm907, %vm908
        %v910 = vsel %vm909, 1, 0
        %vm911 = vcmp.eq.s32.totalorder %v910, 1
        %vm912 = vmpackc.low %vm911, %vm911
        %v913 = vsel %vm912, %v875, 0
        %v914 = vsel %vm912, %v876, 0
        %v915 = vsel %vm912, %v877, 0
        %v916 = vsel %vm912, %v878, 0
        %v917 = vsel %vm912, %v879, 0
        %v918 = vsel %vm912, %v880, 0
        %v919 = vsel %vm912, %v881, 0
        %v920 = vsel %vm912, %v882, 0
        %v921 = vsel %vm912, %v883, 0
        %v922 = vsel %vm912, %v884, 0
        %v923 = vsel %vm912, %v885, 0
        %v924 = vsel %vm912, %v886, 0
        %v926 = vshrl.u32 %v913, 16
        %v928 = vshll.u32 %v913, 16
        %v930 = vrot.slane %v928, 1
        %v931 = vor.u32 %v926, %v930
        %v933 = vshrl.u32 %v914, 16
        %v935 = vshll.u32 %v914, 16
        %v937 = vrot.slane %v935, 1
        %v938 = vor.u32 %v933, %v937
        %v940 = vshrl.u32 %v915, 16
        %v942 = vshll.u32 %v915, 16
        %v944 = vrot.slane %v942, 1
        %v945 = vor.u32 %v940, %v944
        %v947 = vshrl.u32 %v916, 16
        %v949 = vshll.u32 %v916, 16
        %v951 = vrot.slane %v949, 1
        %v952 = vor.u32 %v947, %v951
        %v954 = vshrl.u32 %v917, 16
        %v956 = vshll.u32 %v917, 16
        %v958 = vrot.slane %v956, 1
        %v959 = vor.u32 %v954, %v958
        %v961 = vshrl.u32 %v918, 16
        %v963 = vshll.u32 %v918, 16
        %v965 = vrot.slane %v963, 1
        %v966 = vor.u32 %v961, %v965
        %v968 = vshrl.u32 %v919, 16
        %v970 = vshll.u32 %v919, 16
        %v972 = vrot.slane %v970, 1
        %v973 = vor.u32 %v968, %v972
        %v975 = vshrl.u32 %v920, 16
        %v977 = vshll.u32 %v920, 16
        %v979 = vrot.slane %v977, 1
        %v980 = vor.u32 %v975, %v979
        %v989 = vadd.bf16 %v895, %v931
        %v990 = vadd.bf16 %v896, %v938
        %v991 = vadd.bf16 %v897, %v945
        %v992 = vadd.bf16 %v898, %v952
        %v993 = vadd.bf16 %v899, %v959
        %v994 = vadd.bf16 %v900, %v966
        %v995 = vadd.bf16 %v901, %v973
        %v996 = vadd.bf16 %v902, %v980
        %v998 = vshrl.u32 %v921, 16
        %v1000 = vshll.u32 %v921, 16
        %v1002 = vrot.slane %v1000, 1
        %v1003 = vor.u32 %v998, %v1002
        %v1005 = vadd.bf16 %v903, %v1003
        %v1007 = vshrl.u32 %v922, 16
        %v1009 = vshll.u32 %v922, 16
        %v1011 = vrot.slane %v1009, 1
        %v1012 = vor.u32 %v1007, %v1011
        %v1014 = vadd.bf16 %v904, %v1012
        %v1016 = vshrl.u32 %v923, 16
        %v1018 = vshll.u32 %v923, 16
        %v1020 = vrot.slane %v1018, 1
        %v1021 = vor.u32 %v1016, %v1020
        %v1023 = vadd.bf16 %v905, %v1021
        %v1025 = vshrl.u32 %v924, 16
        %v1027 = vshll.u32 %v924, 16
        %v1029 = vrot.slane %v1027, 1
        %v1030 = vor.u32 %v1025, %v1029
        %v1032 = vadd.bf16 %v906, %v1030
        %vm1033 = vcmp.ge.s32.totalorder %v888, 20
        %vm1034 = vcmp.lt.s32.totalorder %v888, 30
        %vm1035 = vmand %vm1033, %vm1034
        %v1036 = vsel %vm1035, 1, 0
        %vm1037 = vcmp.eq.s32.totalorder %v1036, 1
        %vm1038 = vmpackc.low %vm1037, %vm1037
        %v1039 = vsel %vm1038, %v875, 0
        %v1040 = vsel %vm1038, %v876, 0
        %v1041 = vsel %vm1038, %v877, 0
        %v1042 = vsel %vm1038, %v878, 0
        %v1043 = vsel %vm1038, %v879, 0
        %v1044 = vsel %vm1038, %v880, 0
        %v1045 = vsel %vm1038, %v881, 0
        %v1046 = vsel %vm1038, %v882, 0
        %v1047 = vsel %vm1038, %v883, 0
        %v1048 = vsel %vm1038, %v884, 0
        %v1049 = vsel %vm1038, %v885, 0
        %v1050 = vsel %vm1038, %v886, 0
        %v1059 = vrot.slane %v1039, 1
        %v1060 = vrot.slane %v1040, 1
        %v1061 = vrot.slane %v1041, 1
        %v1062 = vrot.slane %v1042, 1
        %v1063 = vrot.slane %v1043, 1
        %v1064 = vrot.slane %v1044, 1
        %v1065 = vrot.slane %v1045, 1
        %v1066 = vrot.slane %v1046, 1
        %v1075 = vadd.bf16 %v989, %v1059
        %v1076 = vadd.bf16 %v990, %v1060
        %v1077 = vadd.bf16 %v991, %v1061
        %v1078 = vadd.bf16 %v992, %v1062
        %v1079 = vadd.bf16 %v993, %v1063
        %v1080 = vadd.bf16 %v994, %v1064
        %v1081 = vadd.bf16 %v995, %v1065
        %v1082 = vadd.bf16 %v996, %v1066
        %v1084 = vrot.slane %v1047, 1
        %v1086 = vadd.bf16 %v1005, %v1084
        %v1088 = vrot.slane %v1048, 1
        %v1090 = vadd.bf16 %v1014, %v1088
        %v1092 = vrot.slane %v1049, 1
        %v1094 = vadd.bf16 %v1023, %v1092
        %v1096 = vrot.slane %v1050, 1
        %v1098 = vadd.bf16 %v1032, %v1096
        %vm1099 = vcmp.ge.s32.totalorder %v888, 30
        %vm1100 = vcmp.lt.s32.totalorder %v888, 40
        %vm1101 = vmand %vm1099, %vm1100
        %v1102 = vsel %vm1101, 1, 0
        %vm1103 = vcmp.eq.s32.totalorder %v1102, 1
        %vm1104 = vmpackc.low %vm1103, %vm1103
        %v1105 = vsel %vm1104, %v875, 0
        %v1106 = vsel %vm1104, %v876, 0
        %v1107 = vsel %vm1104, %v877, 0
        %v1108 = vsel %vm1104, %v878, 0
        %v1109 = vsel %vm1104, %v879, 0
        %v1110 = vsel %vm1104, %v880, 0
        %v1111 = vsel %vm1104, %v881, 0
        %v1112 = vsel %vm1104, %v882, 0
        %v1113 = vsel %vm1104, %v883, 0
        %v1114 = vsel %vm1104, %v884, 0
        %v1115 = vsel %vm1104, %v885, 0
        %v1116 = vsel %vm1104, %v886, 0
        %v1118 = vshrl.u32 %v1105, 16
        %v1120 = vrot.slane %v1118, 1
        %v1121 = vshll.u32 %v1105, 16
        %v1123 = vrot.slane %v1121, 2
        %v1124 = vor.u32 %v1120, %v1123
        %v1126 = vshrl.u32 %v1106, 16
        %v1128 = vrot.slane %v1126, 1
        %v1129 = vshll.u32 %v1106, 16
        %v1131 = vrot.slane %v1129, 2
        %v1132 = vor.u32 %v1128, %v1131
        %v1134 = vshrl.u32 %v1107, 16
        %v1136 = vrot.slane %v1134, 1
        %v1137 = vshll.u32 %v1107, 16
        %v1139 = vrot.slane %v1137, 2
        %v1140 = vor.u32 %v1136, %v1139
        %v1142 = vshrl.u32 %v1108, 16
        %v1144 = vrot.slane %v1142, 1
        %v1145 = vshll.u32 %v1108, 16
        %v1147 = vrot.slane %v1145, 2
        %v1148 = vor.u32 %v1144, %v1147
        %v1150 = vshrl.u32 %v1109, 16
        %v1152 = vrot.slane %v1150, 1
        %v1153 = vshll.u32 %v1109, 16
        %v1155 = vrot.slane %v1153, 2
        %v1156 = vor.u32 %v1152, %v1155
        %v1158 = vshrl.u32 %v1110, 16
        %v1160 = vrot.slane %v1158, 1
        %v1161 = vshll.u32 %v1110, 16
        %v1163 = vrot.slane %v1161, 2
        %v1164 = vor.u32 %v1160, %v1163
        %v1166 = vshrl.u32 %v1111, 16
        %v1168 = vrot.slane %v1166, 1
        %v1169 = vshll.u32 %v1111, 16
        %v1171 = vrot.slane %v1169, 2
        %v1172 = vor.u32 %v1168, %v1171
        %v1174 = vshrl.u32 %v1112, 16
        %v1176 = vrot.slane %v1174, 1
        %v1177 = vshll.u32 %v1112, 16
        %v1179 = vrot.slane %v1177, 2
        %v1180 = vor.u32 %v1176, %v1179
        %v1189 = vadd.bf16 %v1075, %v1124
        %v1190 = vadd.bf16 %v1076, %v1132
        %v1191 = vadd.bf16 %v1077, %v1140
        %v1192 = vadd.bf16 %v1078, %v1148
        %v1193 = vadd.bf16 %v1079, %v1156
        %v1194 = vadd.bf16 %v1080, %v1164
        %v1195 = vadd.bf16 %v1081, %v1172
        %v1196 = vadd.bf16 %v1082, %v1180
        %v1198 = vshrl.u32 %v1113, 16
        %v1200 = vrot.slane %v1198, 1
        %v1201 = vshll.u32 %v1113, 16
        %v1203 = vrot.slane %v1201, 2
        %v1204 = vor.u32 %v1200, %v1203
        %v1206 = vadd.bf16 %v1086, %v1204
        %v1208 = vshrl.u32 %v1114, 16
        %v1210 = vrot.slane %v1208, 1
        %v1211 = vshll.u32 %v1114, 16
        %v1213 = vrot.slane %v1211, 2
        %v1214 = vor.u32 %v1210, %v1213
        %v1216 = vadd.bf16 %v1090, %v1214
        %v1218 = vshrl.u32 %v1115, 16
        %v1220 = vrot.slane %v1218, 1
        %v1221 = vshll.u32 %v1115, 16
        %v1223 = vrot.slane %v1221, 2
        %v1224 = vor.u32 %v1220, %v1223
        %v1226 = vadd.bf16 %v1094, %v1224
        %v1228 = vshrl.u32 %v1116, 16
        %v1230 = vrot.slane %v1228, 1
        %v1231 = vshll.u32 %v1116, 16
        %v1233 = vrot.slane %v1231, 2
        %v1234 = vor.u32 %v1230, %v1233
        %v1236 = vadd.bf16 %v1098, %v1234
        %vm1237 = vcmp.ge.s32.totalorder %v888, 40
        %vm1238 = vcmp.lt.s32.totalorder %v888, 50
        %vm1239 = vmand %vm1237, %vm1238
        %v1240 = vsel %vm1239, 1, 0
        %vm1241 = vcmp.eq.s32.totalorder %v1240, 1
        %vm1242 = vmpackc.low %vm1241, %vm1241
        %v1243 = vsel %vm1242, %v875, 0
        %v1244 = vsel %vm1242, %v876, 0
        %v1245 = vsel %vm1242, %v877, 0
        %v1246 = vsel %vm1242, %v878, 0
        %v1247 = vsel %vm1242, %v879, 0
        %v1248 = vsel %vm1242, %v880, 0
        %v1249 = vsel %vm1242, %v881, 0
        %v1250 = vsel %vm1242, %v882, 0
        %v1251 = vsel %vm1242, %v883, 0
        %v1252 = vsel %vm1242, %v884, 0
        %v1253 = vsel %vm1242, %v885, 0
        %v1254 = vsel %vm1242, %v886, 0
        %v1263 = vrot.slane %v1243, 2
        %v1264 = vrot.slane %v1244, 2
        %v1265 = vrot.slane %v1245, 2
        %v1266 = vrot.slane %v1246, 2
        %v1267 = vrot.slane %v1247, 2
        %v1268 = vrot.slane %v1248, 2
        %v1269 = vrot.slane %v1249, 2
        %v1270 = vrot.slane %v1250, 2
        %v1279 = vadd.bf16 %v1189, %v1263
        %v1280 = vadd.bf16 %v1190, %v1264
        %v1281 = vadd.bf16 %v1191, %v1265
        %v1282 = vadd.bf16 %v1192, %v1266
        %v1283 = vadd.bf16 %v1193, %v1267
        %v1284 = vadd.bf16 %v1194, %v1268
        %v1285 = vadd.bf16 %v1195, %v1269
        %v1286 = vadd.bf16 %v1196, %v1270
        %v1288 = vrot.slane %v1251, 2
        %v1290 = vadd.bf16 %v1206, %v1288
        %v1292 = vrot.slane %v1252, 2
        %v1294 = vadd.bf16 %v1216, %v1292
        %v1296 = vrot.slane %v1253, 2
        %v1298 = vadd.bf16 %v1226, %v1296
        %v1300 = vrot.slane %v1254, 2
        %v1302 = vadd.bf16 %v1236, %v1300
        %v1303 = vld [vmem:[%s3] sm:$0xf]
        %v1304 = vld [vmem:[%s3 + $0x4] sm:$0xf]
        %v1305 = vld [vmem:[%s3 + $0x8] sm:$0xf]
        %v1306 = vld [vmem:[%s3 + $0xc] sm:$0xf]
        %v1307 = vld [vmem:[%s3 + $0x10] sm:$0xf]
        %v1308 = vld [vmem:[%s3 + $0x14] sm:$0xf]
        %v1309 = vld [vmem:[%s3 + $0x18] sm:$0xf]
        %v1310 = vld [vmem:[%s3 + $0x1c] sm:$0xf]
        %s1311 = scalar_lea.vmem %s3, 32
        %v1312 = vld [vmem:[%s1311] sm:$0xf]
        %v1313 = vld [vmem:[%s1311 + $0x4] sm:$0xf]
        %v1314 = vld [vmem:[%s1311 + $0x8] sm:$0xf]
        %v1315 = vld [vmem:[%s1311 + $0xc] sm:$0xf]
        %v1316 = vld [vmem:[%s1311 + $0x10] sm:$0xf]
        %v1317 = vld [vmem:[%s1311 + $0x14] sm:$0xf]
        %v1318 = vld [vmem:[%s1311 + $0x18] sm:$0xf]
        %v1319 = vld [vmem:[%s1311 + $0x1c] sm:$0xf]
        %v1328 = vunpack.c.l.b16 %v1280
        %v1329 = vunpack.c.l.b16 %v1281
        %v1330 = vunpack.c.l.b16 %v1282
        %v1331 = vunpack.c.l.b16 %v1283
        %v1332 = vunpack.c.l.b16 %v1284
        %v1333 = vunpack.c.l.b16 %v1285
        %v1334 = vunpack.c.l.b16 %v1286
        %v1335 = vunpack.c.l.b16 %v1290
        %v1336 = vpack.c.b16 %v1329, %v1328
        %v1337 = vpack.c.b16 %v1331, %v1330
        %v1338 = vpack.c.b16 %v1333, %v1332
        %v1339 = vpack.c.b16 %v1335, %v1334
        %v1348 = vunpack.c.l.b16 %v1312
        %v1349 = vunpack.c.l.b16 %v1313
        %v1350 = vunpack.c.l.b16 %v1314
        %v1351 = vunpack.c.l.b16 %v1315
        %v1352 = vunpack.c.l.b16 %v1316
        %v1353 = vunpack.c.l.b16 %v1317
        %v1354 = vunpack.c.l.b16 %v1318
        %v1355 = vunpack.c.l.b16 %v1319
        %v1356 = vpack.c.b16 %v1349, %v1348
        %v1357 = vpack.c.b16 %v1351, %v1350
        %v1358 = vpack.c.b16 %v1353, %v1352
        %v1359 = vpack.c.b16 %v1355, %v1354
        %vm1364 = vcmask 523264
        %v1366 = vsel %vm1364, %v1336, 0
        %v1369 = vsel %vm1364, %v1337, 0
        %v1372 = vsel %vm1364, %v1338, 0
        %v1375 = vsel %vm1364, %v1339, 0
        %1377 = vmatprep.subr.bf16.mxu0 0
        %1378 = vmatpush1.bf16.msra.mxu0 %v1356
        %1379 = vmatprep.subr.bf16.mxu0 0
        %1380 = vmatpush1.bf16.msra.mxu0 %v1357
        %1381 = vmatprep.subr.bf16.mxu0 0
        %1382 = vmatpush1.bf16.msra.mxu0 %v1358
        %1383 = vmatprep.subr.bf16.mxu0 0
        %1384 = vmatpush1.bf16.msra.mxu0 %v1359
        %1385 = vmatprep.subr.bf16.mxu0 0
        %1386 = vmatpush1.bf16.msra.mxu0 0
        %1387 = vmatprep.subr.bf16.mxu0 0
        %1388 = vmatpush1.bf16.msra.mxu0 0
        %1389 = vmatprep.subr.bf16.mxu0 0
        %1390 = vmatpush1.bf16.msra.mxu0 0
        %1391 = vmatprep.subr.bf16.mxu0 0
        %1392 = vmatpush1.bf16.msra.mxu0 0
        %1393 = vmatprep.subr.bf16.mxu0 0
        %1394 = vmatpush1.bf16.msra.mxu0 0
        %1395 = vmatprep.subr.bf16.mxu0 0
        %1396 = vmatpush1.bf16.msra.mxu0 0
        %1397 = vmatprep.subr.bf16.mxu0 0
        %1398 = vmatpush1.bf16.msra.mxu0 0
        %1399 = vmatprep.subr.bf16.mxu0 0
        %1400 = vmatpush1.bf16.msra.mxu0 0
        %1401 = vmatprep.subr.bf16.mxu0 0
        %1402 = vmatpush1.bf16.msra.mxu0 0
        %1403 = vmatprep.subr.bf16.mxu0 0
        %1404 = vmatpush1.bf16.msra.mxu0 0
        %1405 = vmatprep.subr.bf16.mxu0 0
        %1406 = vmatpush1.bf16.msra.mxu0 0
        %1407 = vmatprep.subr.bf16.mxu0 0
        %1408 = vmatpush1.bf16.msra.mxu0 0
        %1409 = vmatprep.mubr.bf16.mxu0 0
        %1410 = vmatmul.mubr.bf16.gmra.mrb[0].mxu0 %v1366
        %v1411 = vpop.f32.mrb[0].mxu0
        %v1412 = vadd.f32 0.0, %v1411
        %v1413 = vpop.f32.mrb[0].mxu0
        %v1414 = vpop.f32.mrb[0].mxu0
        %v1415 = vadd.f32 0.0, %v1414
        %v1416 = vpop.f32.mrb[0].mxu0
        %1417 = vmatprep.mubr.bf16.mxu0 0
        %1418 = vmatmul.mubr.bf16.gmra.mrb[0].mxu0 %v1369
        %v1419 = vpop.f32.mrb[0].mxu0
        %v1420 = vadd.f32 0.0, %v1419
        %v1421 = vpop.f32.mrb[0].mxu0
        %v1422 = vpop.f32.mrb[0].mxu0
        %v1423 = vadd.f32 0.0, %v1422
        %v1424 = vpop.f32.mrb[0].mxu0
        %1425 = vmatprep.mubr.bf16.mxu0 0
        %1426 = vmatmul.mubr.bf16.gmra.mrb[0].mxu0 %v1372
        %v1427 = vpop.f32.mrb[0].mxu0
        %v1428 = vadd.f32 0.0, %v1427
        %v1429 = vpop.f32.mrb[0].mxu0
        %v1430 = vpop.f32.mrb[0].mxu0
        %v1431 = vadd.f32 0.0, %v1430
        %v1432 = vpop.f32.mrb[0].mxu0
        %1433 = vmatprep.mubr.bf16.mxu0 0
        %1434 = vmatmul.mubr.bf16.gmra.mrb[0].mxu0 %v1375
        %v1435 = vpop.f32.mrb[0].mxu0
        %v1436 = vadd.f32 0.0, %v1435
        %v1437 = vpop.f32.mrb[0].mxu0
        %v1438 = vpop.f32.mrb[0].mxu0
        %v1439 = vadd.f32 0.0, %v1438
        %v1440 = vpop.f32.mrb[0].mxu0
        %1441 = vdwg.mxu0
        %v1443 = vunpack.c.l.b16 %v1279
        %v1444 = vpack.c.b16 %v1328, %v1443
        %v1445 = vpack.c.b16 %v1330, %v1329
        %v1446 = vpack.c.b16 %v1332, %v1331
        %v1447 = vpack.c.b16 %v1334, %v1333
        %v1456 = vunpack.c.l.b16 %v1303
        %v1457 = vunpack.c.l.b16 %v1304
        %v1458 = vunpack.c.l.b16 %v1305
        %v1459 = vunpack.c.l.b16 %v1306
        %v1460 = vunpack.c.l.b16 %v1307
        %v1461 = vunpack.c.l.b16 %v1308
        %v1462 = vunpack.c.l.b16 %v1309
        %v1463 = vunpack.c.l.b16 %v1310
        %v1464 = vpack.c.b16 %v1457, %v1456
        %v1465 = vpack.c.b16 %v1459, %v1458
        %v1466 = vpack.c.b16 %v1461, %v1460
        %v1467 = vpack.c.b16 %v1463, %v1462
        %v1473 = vsel %vm1364, %v1444, 0
        %v1476 = vsel %vm1364, %v1445, 0
        %v1479 = vsel %vm1364, %v1446, 0
        %v1482 = vsel %vm1364, %v1447, 0
        %1484 = vmatprep.subr.bf16.mxu0 0
        %1485 = vmatpush1.bf16.msra.mxu0 %v1464
        %1486 = vmatprep.subr.bf16.mxu0 0
        %1487 = vmatpush1.bf16.msra.mxu0 %v1465
        %1488 = vmatprep.subr.bf16.mxu0 0
        %1489 = vmatpush1.bf16.msra.mxu0 %v1466
        %1490 = vmatprep.subr.bf16.mxu0 0
        %1491 = vmatpush1.bf16.msra.mxu0 %v1467
        %1492 = vmatprep.subr.bf16.mxu0 0
        %1493 = vmatpush1.bf16.msra.mxu0 0
        %1494 = vmatprep.subr.bf16.mxu0 0
        %1495 = vmatpush1.bf16.msra.mxu0 0
        %1496 = vmatprep.subr.bf16.mxu0 0
        %1497 = vmatpush1.bf16.msra.mxu0 0
        %1498 = vmatprep.subr.bf16.mxu0 0
        %1499 = vmatpush1.bf16.msra.mxu0 0
        %1500 = vmatprep.subr.bf16.mxu0 0
        %1501 = vmatpush1.bf16.msra.mxu0 0
        %1502 = vmatprep.subr.bf16.mxu0 0
        %1503 = vmatpush1.bf16.msra.mxu0 0
        %1504 = vmatprep.subr.bf16.mxu0 0
        %1505 = vmatpush1.bf16.msra.mxu0 0
        %1506 = vmatprep.subr.bf16.mxu0 0
        %1507 = vmatpush1.bf16.msra.mxu0 0
        %1508 = vmatprep.subr.bf16.mxu0 0
        %1509 = vmatpush1.bf16.msra.mxu0 0
        %1510 = vmatprep.subr.bf16.mxu0 0
        %1511 = vmatpush1.bf16.msra.mxu0 0
        %1512 = vmatprep.subr.bf16.mxu0 0
        %1513 = vmatpush1.bf16.msra.mxu0 0
        %1514 = vmatprep.subr.bf16.mxu0 0
        %1515 = vmatpush1.bf16.msra.mxu0 0
        %1516 = vmatprep.mubr.bf16.mxu0 0
        %1517 = vmatmul.mubr.bf16.gmra.mrb[0].mxu0 %v1473
        %v1518 = vpop.f32.mrb[0].mxu0
        %v1519 = vadd.f32 %v1412, %v1518
        %v1520 = vpop.f32.mrb[0].mxu0
        %v1521 = vpop.f32.mrb[0].mxu0
        %v1522 = vadd.f32 %v1415, %v1521
        %v1523 = vpop.f32.mrb[0].mxu0
        %1524 = vmatprep.mubr.bf16.mxu0 0
        %1525 = vmatmul.mubr.bf16.gmra.mrb[0].mxu0 %v1476
        %v1526 = vpop.f32.mrb[0].mxu0
        %v1527 = vadd.f32 %v1420, %v1526
        %v1528 = vpop.f32.mrb[0].mxu0
        %v1529 = vpop.f32.mrb[0].mxu0
        %v1530 = vadd.f32 %v1423, %v1529
        %v1531 = vpop.f32.mrb[0].mxu0
        %1532 = vmatprep.mubr.bf16.mxu0 0
        %1533 = vmatmul.mubr.bf16.gmra.mrb[0].mxu0 %v1479
        %v1534 = vpop.f32.mrb[0].mxu0
        %v1535 = vadd.f32 %v1428, %v1534
        %v1536 = vpop.f32.mrb[0].mxu0
        %v1537 = vpop.f32.mrb[0].mxu0
        %v1538 = vadd.f32 %v1431, %v1537
        %v1539 = vpop.f32.mrb[0].mxu0
        %1540 = vmatprep.mubr.bf16.mxu0 0
        %1541 = vmatmul.mubr.bf16.gmra.mrb[0].mxu0 %v1482
        %v1542 = vpop.f32.mrb[0].mxu0
        %v1543 = vadd.f32 %v1436, %v1542
        %v1544 = vpop.f32.mrb[0].mxu0
        %v1545 = vpop.f32.mrb[0].mxu0
        %v1546 = vadd.f32 %v1439, %v1545
        %v1547 = vpop.f32.mrb[0].mxu0
        %1548 = vdwg.mxu0
        %s1549 = scalar_lea.vmem %s3, 64
        %v1550 = vld [vmem:[%s1549] sm:$0xf]
        %v1551 = vld [vmem:[%s1549 + $0x4] sm:$0xf]
        %v1552 = vld [vmem:[%s1549 + $0x8] sm:$0xf]
        %v1553 = vld [vmem:[%s1549 + $0xc] sm:$0xf]
        %v1554 = vld [vmem:[%s1549 + $0x10] sm:$0xf]
        %v1555 = vld [vmem:[%s1549 + $0x14] sm:$0xf]
        %v1556 = vld [vmem:[%s1549 + $0x18] sm:$0xf]
        %v1557 = vld [vmem:[%s1549 + $0x1c] sm:$0xf]
        %v1559 = vunpack.c.l.b16 %v1294
        %v1560 = vpack.c.b16 %v1559, %v1335
        %v1569 = vunpack.c.l.b16 %v1550
        %v1570 = vunpack.c.l.b16 %v1551
        %v1571 = vunpack.c.l.b16 %v1552
        %v1572 = vunpack.c.l.b16 %v1553
        %v1573 = vunpack.c.l.b16 %v1554
        %v1574 = vunpack.c.l.b16 %v1555
        %v1575 = vunpack.c.l.b16 %v1556
        %v1576 = vunpack.c.l.b16 %v1557
        %v1577 = vpack.c.b16 %v1570, %v1569
        %v1578 = vpack.c.b16 %v1572, %v1571
        %v1579 = vpack.c.b16 %v1574, %v1573
        %v1580 = vpack.c.b16 %v1576, %v1575
        %v1586 = vsel %vm1364, %v1560, 0
        %1588 = vmatprep.subr.bf16.mxu0 0
        %1589 = vmatpush1.bf16.msra.mxu0 %v1577
        %1590 = vmatprep.subr.bf16.mxu0 0
        %1591 = vmatpush1.bf16.msra.mxu0 %v1578
        %1592 = vmatprep.subr.bf16.mxu0 0
        %1593 = vmatpush1.bf16.msra.mxu0 %v1579
        %1594 = vmatprep.subr.bf16.mxu0 0
        %1595 = vmatpush1.bf16.msra.mxu0 %v1580
        %1596 = vmatprep.subr.bf16.mxu0 0
        %1597 = vmatpush1.bf16.msra.mxu0 0
        %1598 = vmatprep.subr.bf16.mxu0 0
        %1599 = vmatpush1.bf16.msra.mxu0 0
        %1600 = vmatprep.subr.bf16.mxu0 0
        %1601 = vmatpush1.bf16.msra.mxu0 0
        %1602 = vmatprep.subr.bf16.mxu0 0
        %1603 = vmatpush1.bf16.msra.mxu0 0
        %1604 = vmatprep.subr.bf16.mxu0 0
        %1605 = vmatpush1.bf16.msra.mxu0 0
        %1606 = vmatprep.subr.bf16.mxu0 0
        %1607 = vmatpush1.bf16.msra.mxu0 0
        %1608 = vmatprep.subr.bf16.mxu0 0
        %1609 = vmatpush1.bf16.msra.mxu0 0
        %1610 = vmatprep.subr.bf16.mxu0 0
        %1611 = vmatpush1.bf16.msra.mxu0 0
        %1612 = vmatprep.subr.bf16.mxu0 0
        %1613 = vmatpush1.bf16.msra.mxu0 0
        %1614 = vmatprep.subr.bf16.mxu0 0
        %1615 = vmatpush1.bf16.msra.mxu0 0
        %1616 = vmatprep.subr.bf16.mxu0 0
        %1617 = vmatpush1.bf16.msra.mxu0 0
        %1618 = vmatprep.subr.bf16.mxu0 0
        %1619 = vmatpush1.bf16.msra.mxu0 0
        %1620 = vmatprep.mubr.bf16.mxu0 0
        %1621 = vmatmul.mubr.bf16.gmra.mrb[0].mxu0 %v1476
        %v1622 = vpop.f32.mrb[0].mxu0
        %v1623 = vadd.f32 0.0, %v1622
        %v1624 = vpop.f32.mrb[0].mxu0
        %v1625 = vpop.f32.mrb[0].mxu0
        %v1626 = vadd.f32 0.0, %v1625
        %v1627 = vpop.f32.mrb[0].mxu0
        %1628 = vmatprep.mubr.bf16.mxu0 0
        %1629 = vmatmul.mubr.bf16.gmra.mrb[0].mxu0 %v1479
        %v1630 = vpop.f32.mrb[0].mxu0
        %v1631 = vadd.f32 0.0, %v1630
        %v1632 = vpop.f32.mrb[0].mxu0
        %v1633 = vpop.f32.mrb[0].mxu0
        %v1634 = vadd.f32 0.0, %v1633
        %v1635 = vpop.f32.mrb[0].mxu0
        %1636 = vmatprep.mubr.bf16.mxu0 0
        %1637 = vmatmul.mubr.bf16.gmra.mrb[0].mxu0 %v1482
        %v1638 = vpop.f32.mrb[0].mxu0
        %v1639 = vadd.f32 0.0, %v1638
        %v1640 = vpop.f32.mrb[0].mxu0
        %v1641 = vpop.f32.mrb[0].mxu0
        %v1642 = vadd.f32 0.0, %v1641
        %v1643 = vpop.f32.mrb[0].mxu0
        %1644 = vmatprep.mubr.bf16.mxu0 0
        %1645 = vmatmul.mubr.bf16.gmra.mrb[0].mxu0 %v1586
        %v1646 = vpop.f32.mrb[0].mxu0
        %v1647 = vadd.f32 0.0, %v1646
        %v1648 = vpop.f32.mrb[0].mxu0
        %v1649 = vpop.f32.mrb[0].mxu0
        %v1650 = vadd.f32 0.0, %v1649
        %v1651 = vpop.f32.mrb[0].mxu0
        %1652 = vdwg.mxu0
        %v1653 = vadd.f32 %v1519, %v1623
        %v1654 = vadd.f32 %v1522, %v1626
        %v1655 = vadd.f32 %v1527, %v1631
        %v1656 = vadd.f32 %v1530, %v1634
        %v1657 = vadd.f32 %v1535, %v1639
        %v1658 = vadd.f32 %v1538, %v1642
        %v1659 = vadd.f32 %v1543, %v1647
        %v1660 = vadd.f32 %v1546, %v1650
        %s1661 = scalar_lea.vmem %s3, 96
        %v1662 = vld [vmem:[%s1661] sm:$0xf]
        %v1663 = vld [vmem:[%s1661 + $0x4] sm:$0xf]
        %v1664 = vld [vmem:[%s1661 + $0x8] sm:$0xf]
        %v1665 = vld [vmem:[%s1661 + $0xc] sm:$0xf]
        %v1666 = vld [vmem:[%s1661 + $0x10] sm:$0xf]
        %v1667 = vld [vmem:[%s1661 + $0x14] sm:$0xf]
        %v1668 = vld [vmem:[%s1661 + $0x18] sm:$0xf]
        %v1669 = vld [vmem:[%s1661 + $0x1c] sm:$0xf]
        %v1671 = vunpack.c.l.b16 %v1298
        %v1672 = vpack.c.b16 %v1671, %v1559
        %v1681 = vunpack.c.l.b16 %v1662
        %v1682 = vunpack.c.l.b16 %v1663
        %v1683 = vunpack.c.l.b16 %v1664
        %v1684 = vunpack.c.l.b16 %v1665
        %v1685 = vunpack.c.l.b16 %v1666
        %v1686 = vunpack.c.l.b16 %v1667
        %v1687 = vunpack.c.l.b16 %v1668
        %v1688 = vunpack.c.l.b16 %v1669
        %v1689 = vpack.c.b16 %v1682, %v1681
        %v1690 = vpack.c.b16 %v1684, %v1683
        %v1691 = vpack.c.b16 %v1686, %v1685
        %v1692 = vpack.c.b16 %v1688, %v1687
        %v1698 = vsel %vm1364, %v1672, 0
        %1700 = vmatprep.subr.bf16.mxu0 0
        %1701 = vmatpush1.bf16.msra.mxu0 %v1689
        %1702 = vmatprep.subr.bf16.mxu0 0
        %1703 = vmatpush1.bf16.msra.mxu0 %v1690
        %1704 = vmatprep.subr.bf16.mxu0 0
        %1705 = vmatpush1.bf16.msra.mxu0 %v1691
        %1706 = vmatprep.subr.bf16.mxu0 0
        %1707 = vmatpush1.bf16.msra.mxu0 %v1692
        %1708 = vmatprep.subr.bf16.mxu0 0
        %1709 = vmatpush1.bf16.msra.mxu0 0
        %1710 = vmatprep.subr.bf16.mxu0 0
        %1711 = vmatpush1.bf16.msra.mxu0 0
        %1712 = vmatprep.subr.bf16.mxu0 0
        %1713 = vmatpush1.bf16.msra.mxu0 0
        %1714 = vmatprep.subr.bf16.mxu0 0
        %1715 = vmatpush1.bf16.msra.mxu0 0
        %1716 = vmatprep.subr.bf16.mxu0 0
        %1717 = vmatpush1.bf16.msra.mxu0 0
        %1718 = vmatprep.subr.bf16.mxu0 0
        %1719 = vmatpush1.bf16.msra.mxu0 0
        %1720 = vmatprep.subr.bf16.mxu0 0
        %1721 = vmatpush1.bf16.msra.mxu0 0
        %1722 = vmatprep.subr.bf16.mxu0 0
        %1723 = vmatpush1.bf16.msra.mxu0 0
        %1724 = vmatprep.subr.bf16.mxu0 0
        %1725 = vmatpush1.bf16.msra.mxu0 0
        %1726 = vmatprep.subr.bf16.mxu0 0
        %1727 = vmatpush1.bf16.msra.mxu0 0
        %1728 = vmatprep.subr.bf16.mxu0 0
        %1729 = vmatpush1.bf16.msra.mxu0 0
        %1730 = vmatprep.subr.bf16.mxu0 0
        %1731 = vmatpush1.bf16.msra.mxu0 0
        %1732 = vmatprep.mubr.bf16.mxu0 0
        %1733 = vmatmul.mubr.bf16.gmra.mrb[0].mxu0 %v1369
        %v1734 = vpop.f32.mrb[0].mxu0
        %v1735 = vadd.f32 0.0, %v1734
        %v1736 = vpop.f32.mrb[0].mxu0
        %v1737 = vpop.f32.mrb[0].mxu0
        %v1738 = vadd.f32 0.0, %v1737
        %v1739 = vpop.f32.mrb[0].mxu0
        %1740 = vmatprep.mubr.bf16.mxu0 0
        %1741 = vmatmul.mubr.bf16.gmra.mrb[0].mxu0 %v1372
        %v1742 = vpop.f32.mrb[0].mxu0
        %v1743 = vadd.f32 0.0, %v1742
        %v1744 = vpop.f32.mrb[0].mxu0
        %v1745 = vpop.f32.mrb[0].mxu0
        %v1746 = vadd.f32 0.0, %v1745
        %v1747 = vpop.f32.mrb[0].mxu0
        %1748 = vmatprep.mubr.bf16.mxu0 0
        %1749 = vmatmul.mubr.bf16.gmra.mrb[0].mxu0 %v1375
        %v1750 = vpop.f32.mrb[0].mxu0
        %v1751 = vadd.f32 0.0, %v1750
        %v1752 = vpop.f32.mrb[0].mxu0
        %v1753 = vpop.f32.mrb[0].mxu0
        %v1754 = vadd.f32 0.0, %v1753
        %v1755 = vpop.f32.mrb[0].mxu0
        %1756 = vmatprep.mubr.bf16.mxu0 0
        %1757 = vmatmul.mubr.bf16.gmra.mrb[0].mxu0 %v1698
        %v1758 = vpop.f32.mrb[0].mxu0
        %v1759 = vadd.f32 0.0, %v1758
        %v1760 = vpop.f32.mrb[0].mxu0
        %v1761 = vpop.f32.mrb[0].mxu0
        %v1762 = vadd.f32 0.0, %v1761
        %v1763 = vpop.f32.mrb[0].mxu0
        %1764 = vdwg.mxu0
        %v1765 = vadd.f32 %v1653, %v1735
        %v1766 = vadd.f32 %v1654, %v1738
        %v1767 = vadd.f32 %v1655, %v1743
        %v1768 = vadd.f32 %v1656, %v1746
        %v1769 = vadd.f32 %v1657, %v1751
        %v1770 = vadd.f32 %v1658, %v1754
        %v1771 = vadd.f32 %v1659, %v1759
        %v1772 = vadd.f32 %v1660, %v1762
        %s1773 = scalar_lea.vmem %s3, 128
        %v1774 = vld [vmem:[%s1773] sm:$0xf]
        %v1775 = vld [vmem:[%s1773 + $0x4] sm:$0xf]
        %v1776 = vld [vmem:[%s1773 + $0x8] sm:$0xf]
        %v1777 = vld [vmem:[%s1773 + $0xc] sm:$0xf]
        %v1778 = vld [vmem:[%s1773 + $0x10] sm:$0xf]
        %v1779 = vld [vmem:[%s1773 + $0x14] sm:$0xf]
        %v1780 = vld [vmem:[%s1773 + $0x18] sm:$0xf]
        %v1781 = vld [vmem:[%s1773 + $0x1c] sm:$0xf]
        %v1783 = vunpack.c.l.b16 %v1302
        %v1784 = vpack.c.b16 %v1783, %v1671
        %v1793 = vunpack.c.l.b16 %v1774
        %v1794 = vunpack.c.l.b16 %v1775
        %v1795 = vunpack.c.l.b16 %v1776
        %v1796 = vunpack.c.l.b16 %v1777
        %v1797 = vunpack.c.l.b16 %v1778
        %v1798 = vunpack.c.l.b16 %v1779
        %v1799 = vunpack.c.l.b16 %v1780
        %v1800 = vunpack.c.l.b16 %v1781
        %v1801 = vpack.c.b16 %v1794, %v1793
        %v1802 = vpack.c.b16 %v1796, %v1795
        %v1803 = vpack.c.b16 %v1798, %v1797
        %v1804 = vpack.c.b16 %v1800, %v1799
        %v1810 = vsel %vm1364, %v1784, 0
        %1812 = vmatprep.subr.bf16.mxu0 0
        %1813 = vmatpush1.bf16.msra.mxu0 %v1801
        %1814 = vmatprep.subr.bf16.mxu0 0
        %1815 = vmatpush1.bf16.msra.mxu0 %v1802
        %1816 = vmatprep.subr.bf16.mxu0 0
        %1817 = vmatpush1.bf16.msra.mxu0 %v1803
        %1818 = vmatprep.subr.bf16.mxu0 0
        %1819 = vmatpush1.bf16.msra.mxu0 %v1804
        %1820 = vmatprep.subr.bf16.mxu0 0
        %1821 = vmatpush1.bf16.msra.mxu0 0
        %1822 = vmatprep.subr.bf16.mxu0 0
        %1823 = vmatpush1.bf16.msra.mxu0 0
        %1824 = vmatprep.subr.bf16.mxu0 0
        %1825 = vmatpush1.bf16.msra.mxu0 0
        %1826 = vmatprep.subr.bf16.mxu0 0
        %1827 = vmatpush1.bf16.msra.mxu0 0
        %1828 = vmatprep.subr.bf16.mxu0 0
        %1829 = vmatpush1.bf16.msra.mxu0 0
        %1830 = vmatprep.subr.bf16.mxu0 0
        %1831 = vmatpush1.bf16.msra.mxu0 0
        %1832 = vmatprep.subr.bf16.mxu0 0
        %1833 = vmatpush1.bf16.msra.mxu0 0
        %1834 = vmatprep.subr.bf16.mxu0 0
        %1835 = vmatpush1.bf16.msra.mxu0 0
        %1836 = vmatprep.subr.bf16.mxu0 0
        %1837 = vmatpush1.bf16.msra.mxu0 0
        %1838 = vmatprep.subr.bf16.mxu0 0
        %1839 = vmatpush1.bf16.msra.mxu0 0
        %1840 = vmatprep.subr.bf16.mxu0 0
        %1841 = vmatpush1.bf16.msra.mxu0 0
        %1842 = vmatprep.subr.bf16.mxu0 0
        %1843 = vmatpush1.bf16.msra.mxu0 0
        %1844 = vmatprep.mubr.bf16.mxu0 0
        %1845 = vmatmul.mubr.bf16.gmra.mrb[0].mxu0 %v1479
        %v1846 = vpop.f32.mrb[0].mxu0
        %v1847 = vadd.f32 0.0, %v1846
        %v1848 = vpop.f32.mrb[0].mxu0
        %v1849 = vpop.f32.mrb[0].mxu0
        %v1850 = vadd.f32 0.0, %v1849
        %v1851 = vpop.f32.mrb[0].mxu0
        %1852 = vmatprep.mubr.bf16.mxu0 0
        %1853 = vmatmul.mubr.bf16.gmra.mrb[0].mxu0 %v1482
        %v1854 = vpop.f32.mrb[0].mxu0
        %v1855 = vadd.f32 0.0, %v1854
        %v1856 = vpop.f32.mrb[0].mxu0
        %v1857 = vpop.f32.mrb[0].mxu0
        %v1858 = vadd.f32 0.0, %v1857
        %v1859 = vpop.f32.mrb[0].mxu0
        %1860 = vmatprep.mubr.bf16.mxu0 0
        %1861 = vmatmul.mubr.bf16.gmra.mrb[0].mxu0 %v1586
        %v1862 = vpop.f32.mrb[0].mxu0
        %v1863 = vadd.f32 0.0, %v1862
        %v1864 = vpop.f32.mrb[0].mxu0
        %v1865 = vpop.f32.mrb[0].mxu0
        %v1866 = vadd.f32 0.0, %v1865
        %v1867 = vpop.f32.mrb[0].mxu0
        %1868 = vmatprep.mubr.bf16.mxu0 0
        %1869 = vmatmul.mubr.bf16.gmra.mrb[0].mxu0 %v1810
        %v1870 = vpop.f32.mrb[0].mxu0
        %v1871 = vadd.f32 0.0, %v1870
        %v1872 = vpop.f32.mrb[0].mxu0
        %v1873 = vpop.f32.mrb[0].mxu0
        %v1874 = vadd.f32 0.0, %v1873
        %v1875 = vpop.f32.mrb[0].mxu0
        %1876 = vdwg.mxu0
        %v1877 = vadd.f32 %v1765, %v1847
        %v1878 = vadd.f32 %v1766, %v1850
        %v1879 = vadd.f32 %v1767, %v1855
        %v1880 = vadd.f32 %v1768, %v1858
        %v1881 = vadd.f32 %v1769, %v1863
        %v1882 = vadd.f32 %v1770, %v1866
        %v1883 = vadd.f32 %v1771, %v1871
        %v1884 = vadd.f32 %v1772, %v1874
        %v1885 = vmax.f32 %v1877, %v1878
        %v1886 = vmax.f32 %v1879, %v1880
        %v1887 = vmax.f32 %v1881, %v1882
        %v1888 = vmax.f32 %v1883, %v1884
        %v1889 = vld [vmem:[%s4] sm:$0x1]
        %v1891 = vlaneseq
        %v1892 = vshrl.u32 %v1891, 7
        %v1893 = vsub.s32 0, %v1892
        %v1894 = vrot.slane %v1889, %v1893
        %v1896 = vadd.f32 %v1885, %v1894
        %v1897 = vadd.f32 %v1886, %v1894
        %v1898 = vadd.f32 %v1887, %v1894
        %v1899 = vadd.f32 %v1888, %v1894
        %v1901 = vrot.slane %v1896, 1
        %v1903 = vmax.f32 %v1896, %v1901
        %v1904 = vmax.f32 %v1903, 0.0
        %v1905 = vpack.c.bf16 %v1904, %v1904
        %v1907 = vrot.slane %v1897, 1
        %v1909 = vmax.f32 %v1897, %v1907
        %v1910 = vmax.f32 %v1909, 0.0
        %v1911 = vpack.c.bf16 %v1910, %v1910
        %v1913 = vrot.slane %v1898, 1
        %v1915 = vmax.f32 %v1898, %v1913
        %v1916 = vmax.f32 %v1915, 0.0
        %v1917 = vpack.c.bf16 %v1916, %v1916
        %v1919 = vrot.slane %v1899, 1
        %v1921 = vmax.f32 %v1899, %v1919
        %v1922 = vmax.f32 %v1921, 0.0
        %v1923 = vpack.c.bf16 %v1922, %v1922
        %v1925 = vrot.slane %v1905, 1
        %v1927 = vrot.slane %v1905, 2
        %v1929 = vrot.slane %v1905, 3
        %v1932 = vrot.slane %v1911, 1
        %v1934 = vrot.slane %v1911, 2
        %v1936 = vrot.slane %v1911, 3
        %v1939 = vrot.slane %v1917, 1
        %v1941 = vrot.slane %v1917, 2
        %v1943 = vrot.slane %v1917, 3
        %v1946 = vrot.slane %v1923, 1
        %v1948 = vrot.slane %v1923, 2
        %v1950 = vrot.slane %v1923, 3
        %v1952 = vld [vmem:[%s5] sm:$0xf]
        %v1953 = vld [vmem:[%s5 + $0x4] sm:$0xf]
        %v1954 = vld [vmem:[%s5 + $0x8] sm:$0xf]
        %v1955 = vld [vmem:[%s5 + $0xc] sm:$0xf]
        %v1956 = vld [vmem:[%s5 + $0x10] sm:$0xf]
        %v1957 = vld [vmem:[%s5 + $0x14] sm:$0xf]
        %v1958 = vld [vmem:[%s5 + $0x18] sm:$0xf]
        %v1959 = vld [vmem:[%s5 + $0x1c] sm:$0xf]
        %v1960 = vld [vmem:[%s5 + $0x20] sm:$0xf]
        %v1961 = vld [vmem:[%s5 + $0x24] sm:$0xf]
        %v1962 = vld [vmem:[%s5 + $0x28] sm:$0xf]
        %v1963 = vld [vmem:[%s5 + $0x2c] sm:$0xf]
        %v1964 = vld [vmem:[%s5 + $0x30] sm:$0xf]
        %v1965 = vld [vmem:[%s5 + $0x34] sm:$0xf]
        %v1966 = vld [vmem:[%s5 + $0x38] sm:$0xf]
        %v1967 = vld [vmem:[%s5 + $0x3c] sm:$0xf]
        %v1968 = vld [vmem:[%s5 + $0x40] sm:$0xf]
        %v1969 = vld [vmem:[%s5 + $0x44] sm:$0xf]
        %v1970 = vld [vmem:[%s5 + $0x48] sm:$0xf]
        %v1971 = vld [vmem:[%s5 + $0x4c] sm:$0xf]
        %v1972 = vld [vmem:[%s5 + $0x50] sm:$0xf]
        %v1973 = vld [vmem:[%s5 + $0x54] sm:$0xf]
        %v1974 = vld [vmem:[%s5 + $0x58] sm:$0xf]
        %v1975 = vld [vmem:[%s5 + $0x5c] sm:$0xf]
        %v1976 = vld [vmem:[%s5 + $0x60] sm:$0xf]
        %v1977 = vld [vmem:[%s5 + $0x64] sm:$0xf]
        %v1978 = vld [vmem:[%s5 + $0x68] sm:$0xf]
        %v1979 = vld [vmem:[%s5 + $0x6c] sm:$0xf]
        %v1980 = vld [vmem:[%s5 + $0x70] sm:$0xf]
        %v1981 = vld [vmem:[%s5 + $0x74] sm:$0xf]
        %v1982 = vld [vmem:[%s5 + $0x78] sm:$0xf]
        %v1983 = vld [vmem:[%s5 + $0x7c] sm:$0xf]
        %v1984 = vld [vmem:[%s5 + $0x80] sm:$0xf]
        %v1985 = vld [vmem:[%s5 + $0x84] sm:$0xf]
        %v1986 = vld [vmem:[%s5 + $0x88] sm:$0xf]
        %v1987 = vld [vmem:[%s5 + $0x8c] sm:$0xf]
        %v1988 = vld [vmem:[%s5 + $0x90] sm:$0xf]
        %v1989 = vld [vmem:[%s5 + $0x94] sm:$0xf]
        %v1990 = vld [vmem:[%s5 + $0x98] sm:$0xf]
        %v1991 = vld [vmem:[%s5 + $0x9c] sm:$0xf]
        %v1992 = vld [vmem:[%s5 + $0xa0] sm:$0xf]
        %v1993 = vld [vmem:[%s5 + $0xa4] sm:$0xf]
        %v1994 = vld [vmem:[%s5 + $0xa8] sm:$0xf]
        %v1995 = vld [vmem:[%s5 + $0xac] sm:$0xf]
        %v1996 = vld [vmem:[%s5 + $0xb0] sm:$0xf]
        %v1997 = vld [vmem:[%s5 + $0xb4] sm:$0xf]
        %v1998 = vld [vmem:[%s5 + $0xb8] sm:$0xf]
        %v1999 = vld [vmem:[%s5 + $0xbc] sm:$0xf]
        %v2000 = vld [vmem:[%s5 + $0xc0] sm:$0xf]
        %v2001 = vld [vmem:[%s5 + $0xc4] sm:$0xf]
        %v2002 = vld [vmem:[%s5 + $0xc8] sm:$0xf]
        %v2003 = vld [vmem:[%s5 + $0xcc] sm:$0xf]
        %v2004 = vld [vmem:[%s5 + $0xd0] sm:$0xf]
        %v2005 = vld [vmem:[%s5 + $0xd4] sm:$0xf]
        %v2006 = vld [vmem:[%s5 + $0xd8] sm:$0xf]
        %v2007 = vld [vmem:[%s5 + $0xdc] sm:$0xf]
        %v2008 = vld [vmem:[%s5 + $0xe0] sm:$0xf]
        %v2009 = vld [vmem:[%s5 + $0xe4] sm:$0xf]
        %v2010 = vld [vmem:[%s5 + $0xe8] sm:$0xf]
        %v2011 = vld [vmem:[%s5 + $0xec] sm:$0xf]
        %v2012 = vld [vmem:[%s5 + $0xf0] sm:$0xf]
        %v2013 = vld [vmem:[%s5 + $0xf4] sm:$0xf]
        %v2014 = vld [vmem:[%s5 + $0xf8] sm:$0xf]
        %v2015 = vld [vmem:[%s5 + $0xfc] sm:$0xf]
        %v2016 = vld [vmem:[%s5 + $0x100] sm:$0xf]
        %v2017 = vld [vmem:[%s5 + $0x104] sm:$0xf]
        %v2018 = vld [vmem:[%s5 + $0x108] sm:$0xf]
        %v2019 = vld [vmem:[%s5 + $0x10c] sm:$0xf]
        %v2020 = vld [vmem:[%s5 + $0x110] sm:$0xf]
        %v2021 = vld [vmem:[%s5 + $0x114] sm:$0xf]
        %v2022 = vld [vmem:[%s5 + $0x118] sm:$0xf]
        %v2023 = vld [vmem:[%s5 + $0x11c] sm:$0xf]
        %v2024 = vld [vmem:[%s5 + $0x120] sm:$0xf]
        %v2025 = vld [vmem:[%s5 + $0x124] sm:$0xf]
        %v2026 = vld [vmem:[%s5 + $0x128] sm:$0xf]
        %v2027 = vld [vmem:[%s5 + $0x12c] sm:$0xf]
        %v2028 = vld [vmem:[%s5 + $0x130] sm:$0xf]
        %v2029 = vld [vmem:[%s5 + $0x134] sm:$0xf]
        %v2030 = vld [vmem:[%s5 + $0x138] sm:$0xf]
        %v2031 = vld [vmem:[%s5 + $0x13c] sm:$0xf]
        %v2032 = vld [vmem:[%s5 + $0x140] sm:$0xf]
        %v2033 = vld [vmem:[%s5 + $0x144] sm:$0xf]
        %v2034 = vld [vmem:[%s5 + $0x148] sm:$0xf]
        %v2035 = vld [vmem:[%s5 + $0x14c] sm:$0xf]
        %v2036 = vld [vmem:[%s5 + $0x150] sm:$0xf]
        %v2037 = vld [vmem:[%s5 + $0x154] sm:$0xf]
        %v2038 = vld [vmem:[%s5 + $0x158] sm:$0xf]
        %v2039 = vld [vmem:[%s5 + $0x15c] sm:$0xf]
        %v2040 = vld [vmem:[%s5 + $0x160] sm:$0xf]
        %v2041 = vld [vmem:[%s5 + $0x164] sm:$0xf]
        %v2042 = vld [vmem:[%s5 + $0x168] sm:$0xf]
        %v2043 = vld [vmem:[%s5 + $0x16c] sm:$0xf]
        %v2044 = vld [vmem:[%s5 + $0x170] sm:$0xf]
        %v2045 = vld [vmem:[%s5 + $0x174] sm:$0xf]
        %v2046 = vld [vmem:[%s5 + $0x178] sm:$0xf]
        %v2047 = vld [vmem:[%s5 + $0x17c] sm:$0xf]
        %v2048 = vld [vmem:[%s5 + $0x180] sm:$0xf]
        %v2049 = vld [vmem:[%s5 + $0x184] sm:$0xf]
        %v2050 = vld [vmem:[%s5 + $0x188] sm:$0xf]
        %v2051 = vld [vmem:[%s5 + $0x18c] sm:$0xf]
        %v2052 = vld [vmem:[%s5 + $0x190] sm:$0xf]
        %v2053 = vld [vmem:[%s5 + $0x194] sm:$0xf]
        %v2054 = vld [vmem:[%s5 + $0x198] sm:$0xf]
        %v2055 = vld [vmem:[%s5 + $0x19c] sm:$0xf]
        %v2056 = vld [vmem:[%s5 + $0x1a0] sm:$0xf]
        %v2057 = vld [vmem:[%s5 + $0x1a4] sm:$0xf]
        %v2058 = vld [vmem:[%s5 + $0x1a8] sm:$0xf]
        %v2059 = vld [vmem:[%s5 + $0x1ac] sm:$0xf]
        %v2060 = vld [vmem:[%s5 + $0x1b0] sm:$0xf]
        %v2061 = vld [vmem:[%s5 + $0x1b4] sm:$0xf]
        %v2062 = vld [vmem:[%s5 + $0x1b8] sm:$0xf]
        %v2063 = vld [vmem:[%s5 + $0x1bc] sm:$0xf]
        %v2064 = vld [vmem:[%s5 + $0x1c0] sm:$0xf]
        %v2065 = vld [vmem:[%s5 + $0x1c4] sm:$0xf]
        %v2066 = vld [vmem:[%s5 + $0x1c8] sm:$0xf]
        %v2067 = vld [vmem:[%s5 + $0x1cc] sm:$0xf]
        %v2068 = vld [vmem:[%s5 + $0x1d0] sm:$0xf]
        %v2069 = vld [vmem:[%s5 + $0x1d4] sm:$0xf]
        %v2070 = vld [vmem:[%s5 + $0x1d8] sm:$0xf]
        %v2071 = vld [vmem:[%s5 + $0x1dc] sm:$0xf]
        %v2072 = vld [vmem:[%s5 + $0x1e0] sm:$0xf]
        %v2073 = vld [vmem:[%s5 + $0x1e4] sm:$0xf]
        %v2074 = vld [vmem:[%s5 + $0x1e8] sm:$0xf]
        %v2075 = vld [vmem:[%s5 + $0x1ec] sm:$0xf]
        %v2076 = vld [vmem:[%s5 + $0x1f0] sm:$0xf]
        %v2077 = vld [vmem:[%s5 + $0x1f4] sm:$0xf]
        %v2078 = vld [vmem:[%s5 + $0x1f8] sm:$0xf]
        %v2079 = vld [vmem:[%s5 + $0x1fc] sm:$0xf]
        %v2080 = vld [vmem:[%s5 + $0x200] sm:$0xf]
        %v2081 = vld [vmem:[%s5 + $0x204] sm:$0xf]
        %v2082 = vld [vmem:[%s5 + $0x208] sm:$0xf]
        %v2083 = vld [vmem:[%s5 + $0x20c] sm:$0xf]
        %v2084 = vld [vmem:[%s5 + $0x210] sm:$0xf]
        %v2085 = vld [vmem:[%s5 + $0x214] sm:$0xf]
        %v2086 = vld [vmem:[%s5 + $0x218] sm:$0xf]
        %v2087 = vld [vmem:[%s5 + $0x21c] sm:$0xf]
        %v2088 = vld [vmem:[%s5 + $0x220] sm:$0xf]
        %v2089 = vld [vmem:[%s5 + $0x224] sm:$0xf]
        %v2090 = vld [vmem:[%s5 + $0x228] sm:$0xf]
        %v2091 = vld [vmem:[%s5 + $0x22c] sm:$0xf]
        %v2092 = vld [vmem:[%s5 + $0x230] sm:$0xf]
        %v2093 = vld [vmem:[%s5 + $0x234] sm:$0xf]
        %v2094 = vld [vmem:[%s5 + $0x238] sm:$0xf]
        %v2095 = vld [vmem:[%s5 + $0x23c] sm:$0xf]
        %v2096 = vld [vmem:[%s5 + $0x240] sm:$0xf]
        %v2097 = vld [vmem:[%s5 + $0x244] sm:$0xf]
        %v2098 = vld [vmem:[%s5 + $0x248] sm:$0xf]
        %v2099 = vld [vmem:[%s5 + $0x24c] sm:$0xf]
        %v2100 = vld [vmem:[%s5 + $0x250] sm:$0xf]
        %v2101 = vld [vmem:[%s5 + $0x254] sm:$0xf]
        %v2102 = vld [vmem:[%s5 + $0x258] sm:$0xf]
        %v2103 = vld [vmem:[%s5 + $0x25c] sm:$0xf]
        %v2104 = vld [vmem:[%s5 + $0x260] sm:$0xf]
        %v2105 = vld [vmem:[%s5 + $0x264] sm:$0xf]
        %v2106 = vld [vmem:[%s5 + $0x268] sm:$0xf]
        %v2107 = vld [vmem:[%s5 + $0x26c] sm:$0xf]
        %v2108 = vld [vmem:[%s5 + $0x270] sm:$0xf]
        %v2109 = vld [vmem:[%s5 + $0x274] sm:$0xf]
        %v2110 = vld [vmem:[%s5 + $0x278] sm:$0xf]
        %v2111 = vld [vmem:[%s5 + $0x27c] sm:$0xf]
        %v2112 = vld [vmem:[%s5 + $0x280] sm:$0xf]
        %v2113 = vld [vmem:[%s5 + $0x284] sm:$0xf]
        %v2114 = vld [vmem:[%s5 + $0x288] sm:$0xf]
        %v2115 = vld [vmem:[%s5 + $0x28c] sm:$0xf]
        %v2116 = vld [vmem:[%s5 + $0x290] sm:$0xf]
        %v2117 = vld [vmem:[%s5 + $0x294] sm:$0xf]
        %v2118 = vld [vmem:[%s5 + $0x298] sm:$0xf]
        %v2119 = vld [vmem:[%s5 + $0x29c] sm:$0xf]
        %v2120 = vld [vmem:[%s5 + $0x2a0] sm:$0xf]
        %v2121 = vld [vmem:[%s5 + $0x2a4] sm:$0xf]
        %v2122 = vld [vmem:[%s5 + $0x2a8] sm:$0xf]
        %v2123 = vld [vmem:[%s5 + $0x2ac] sm:$0xf]
        %v2124 = vld [vmem:[%s5 + $0x2b0] sm:$0xf]
        %v2125 = vld [vmem:[%s5 + $0x2b4] sm:$0xf]
        %v2126 = vld [vmem:[%s5 + $0x2b8] sm:$0xf]
        %v2127 = vld [vmem:[%s5 + $0x2bc] sm:$0xf]
        %v2128 = vld [vmem:[%s5 + $0x2c0] sm:$0xf]
        %v2129 = vld [vmem:[%s5 + $0x2c4] sm:$0xf]
        %v2130 = vld [vmem:[%s5 + $0x2c8] sm:$0xf]
        %v2131 = vld [vmem:[%s5 + $0x2cc] sm:$0xf]
        %v2132 = vld [vmem:[%s5 + $0x2d0] sm:$0xf]
        %v2133 = vld [vmem:[%s5 + $0x2d4] sm:$0xf]
        %v2134 = vld [vmem:[%s5 + $0x2d8] sm:$0xf]
        %v2135 = vld [vmem:[%s5 + $0x2dc] sm:$0xf]
        %v2136 = vld [vmem:[%s5 + $0x2e0] sm:$0xf]
        %v2137 = vld [vmem:[%s5 + $0x2e4] sm:$0xf]
        %v2138 = vld [vmem:[%s5 + $0x2e8] sm:$0xf]
        %v2139 = vld [vmem:[%s5 + $0x2ec] sm:$0xf]
        %v2140 = vld [vmem:[%s5 + $0x2f0] sm:$0xf]
        %v2141 = vld [vmem:[%s5 + $0x2f4] sm:$0xf]
        %v2142 = vld [vmem:[%s5 + $0x2f8] sm:$0xf]
        %v2143 = vld [vmem:[%s5 + $0x2fc] sm:$0xf]
        %v2144 = vld [vmem:[%s5 + $0x300] sm:$0xf]
        %v2145 = vld [vmem:[%s5 + $0x304] sm:$0xf]
        %v2146 = vld [vmem:[%s5 + $0x308] sm:$0xf]
        %v2147 = vld [vmem:[%s5 + $0x30c] sm:$0xf]
        %v2148 = vld [vmem:[%s5 + $0x310] sm:$0xf]
        %v2149 = vld [vmem:[%s5 + $0x314] sm:$0xf]
        %v2150 = vld [vmem:[%s5 + $0x318] sm:$0xf]
        %v2151 = vld [vmem:[%s5 + $0x31c] sm:$0xf]
        %v2152 = vld [vmem:[%s5 + $0x320] sm:$0xf]
        %v2153 = vld [vmem:[%s5 + $0x324] sm:$0xf]
        %v2154 = vld [vmem:[%s5 + $0x328] sm:$0xf]
        %v2155 = vld [vmem:[%s5 + $0x32c] sm:$0xf]
        %v2156 = vld [vmem:[%s5 + $0x330] sm:$0xf]
        %v2157 = vld [vmem:[%s5 + $0x334] sm:$0xf]
        %v2158 = vld [vmem:[%s5 + $0x338] sm:$0xf]
        %v2159 = vld [vmem:[%s5 + $0x33c] sm:$0xf]
        %v2160 = vld [vmem:[%s5 + $0x340] sm:$0xf]
        %v2161 = vld [vmem:[%s5 + $0x344] sm:$0xf]
        %v2162 = vld [vmem:[%s5 + $0x348] sm:$0xf]
        %v2163 = vld [vmem:[%s5 + $0x34c] sm:$0xf]
        %v2164 = vld [vmem:[%s5 + $0x350] sm:$0xf]
        %v2165 = vld [vmem:[%s5 + $0x354] sm:$0xf]
        %v2166 = vld [vmem:[%s5 + $0x358] sm:$0xf]
        %v2167 = vld [vmem:[%s5 + $0x35c] sm:$0xf]
        %v2168 = vld [vmem:[%s5 + $0x360] sm:$0xf]
        %v2169 = vld [vmem:[%s5 + $0x364] sm:$0xf]
        %v2170 = vld [vmem:[%s5 + $0x368] sm:$0xf]
        %v2171 = vld [vmem:[%s5 + $0x36c] sm:$0xf]
        %v2172 = vld [vmem:[%s5 + $0x370] sm:$0xf]
        %v2173 = vld [vmem:[%s5 + $0x374] sm:$0xf]
        %v2174 = vld [vmem:[%s5 + $0x378] sm:$0xf]
        %v2175 = vld [vmem:[%s5 + $0x37c] sm:$0xf]
        %v2176 = vld [vmem:[%s5 + $0x380] sm:$0xf]
        %v2177 = vld [vmem:[%s5 + $0x384] sm:$0xf]
        %v2178 = vld [vmem:[%s5 + $0x388] sm:$0xf]
        %v2179 = vld [vmem:[%s5 + $0x38c] sm:$0xf]
        %v2180 = vld [vmem:[%s5 + $0x390] sm:$0xf]
        %v2181 = vld [vmem:[%s5 + $0x394] sm:$0xf]
        %v2182 = vld [vmem:[%s5 + $0x398] sm:$0xf]
        %v2183 = vld [vmem:[%s5 + $0x39c] sm:$0xf]
        %v2184 = vld [vmem:[%s5 + $0x3a0] sm:$0xf]
        %v2185 = vld [vmem:[%s5 + $0x3a4] sm:$0xf]
        %v2186 = vld [vmem:[%s5 + $0x3a8] sm:$0xf]
        %v2187 = vld [vmem:[%s5 + $0x3ac] sm:$0xf]
        %v2188 = vld [vmem:[%s5 + $0x3b0] sm:$0xf]
        %v2189 = vld [vmem:[%s5 + $0x3b4] sm:$0xf]
        %v2190 = vld [vmem:[%s5 + $0x3b8] sm:$0xf]
        %v2191 = vld [vmem:[%s5 + $0x3bc] sm:$0xf]
        %v2192 = vld [vmem:[%s5 + $0x3c0] sm:$0xf]
        %v2193 = vld [vmem:[%s5 + $0x3c4] sm:$0xf]
        %v2194 = vld [vmem:[%s5 + $0x3c8] sm:$0xf]
        %v2195 = vld [vmem:[%s5 + $0x3cc] sm:$0xf]
        %v2196 = vld [vmem:[%s5 + $0x3d0] sm:$0xf]
        %v2197 = vld [vmem:[%s5 + $0x3d4] sm:$0xf]
        %v2198 = vld [vmem:[%s5 + $0x3d8] sm:$0xf]
        %v2199 = vld [vmem:[%s5 + $0x3dc] sm:$0xf]
        %v2200 = vld [vmem:[%s5 + $0x3e0] sm:$0xf]
        %v2201 = vld [vmem:[%s5 + $0x3e4] sm:$0xf]
        %v2202 = vld [vmem:[%s5 + $0x3e8] sm:$0xf]
        %v2203 = vld [vmem:[%s5 + $0x3ec] sm:$0xf]
        %v2204 = vld [vmem:[%s5 + $0x3f0] sm:$0xf]
        %v2205 = vld [vmem:[%s5 + $0x3f4] sm:$0xf]
        %v2206 = vld [vmem:[%s5 + $0x3f8] sm:$0xf]
        %v2207 = vld [vmem:[%s5 + $0x3fc] sm:$0xf]
        %v2208 = vld [vmem:[%s6] sm:$0x1]
        %v2465 = vunpack.c.l.b16 %v1952
        %v2466 = vunpack.c.l.b16 %v1953
        %v2467 = vunpack.c.l.b16 %v1954
        %v2468 = vunpack.c.l.b16 %v1955
        %v2469 = vunpack.c.l.b16 %v1956
        %v2470 = vunpack.c.l.b16 %v1957
        %v2471 = vunpack.c.l.b16 %v1958
        %v2472 = vunpack.c.l.b16 %v1959
        %v2473 = vunpack.c.l.b16 %v1960
        %v2474 = vunpack.c.l.b16 %v1961
        %v2475 = vunpack.c.l.b16 %v1962
        %v2476 = vunpack.c.l.b16 %v1963
        %v2477 = vunpack.c.l.b16 %v1964
        %v2478 = vunpack.c.l.b16 %v1965
        %v2479 = vunpack.c.l.b16 %v1966
        %v2480 = vunpack.c.l.b16 %v1967
        %v2481 = vunpack.c.l.b16 %v1968
        %v2482 = vunpack.c.l.b16 %v1969
        %v2483 = vunpack.c.l.b16 %v1970
        %v2484 = vunpack.c.l.b16 %v1971
        %v2485 = vunpack.c.l.b16 %v1972
        %v2486 = vunpack.c.l.b16 %v1973
        %v2487 = vunpack.c.l.b16 %v1974
        %v2488 = vunpack.c.l.b16 %v1975
        %v2489 = vunpack.c.l.b16 %v1976
        %v2490 = vunpack.c.l.b16 %v1977
        %v2491 = vunpack.c.l.b16 %v1978
        %v2492 = vunpack.c.l.b16 %v1979
        %v2493 = vunpack.c.l.b16 %v1980
        %v2494 = vunpack.c.l.b16 %v1981
        %v2495 = vunpack.c.l.b16 %v1982
        %v2496 = vunpack.c.l.b16 %v1983
        %v2497 = vunpack.c.l.b16 %v1984
        %v2498 = vunpack.c.l.b16 %v1985
        %v2499 = vunpack.c.l.b16 %v1986
        %v2500 = vunpack.c.l.b16 %v1987
        %v2501 = vunpack.c.l.b16 %v1988
        %v2502 = vunpack.c.l.b16 %v1989
        %v2503 = vunpack.c.l.b16 %v1990
        %v2504 = vunpack.c.l.b16 %v1991
        %v2505 = vunpack.c.l.b16 %v1992
        %v2506 = vunpack.c.l.b16 %v1993
        %v2507 = vunpack.c.l.b16 %v1994
        %v2508 = vunpack.c.l.b16 %v1995
        %v2509 = vunpack.c.l.b16 %v1996
        %v2510 = vunpack.c.l.b16 %v1997
        %v2511 = vunpack.c.l.b16 %v1998
        %v2512 = vunpack.c.l.b16 %v1999
        %v2513 = vunpack.c.l.b16 %v2000
        %v2514 = vunpack.c.l.b16 %v2001
        %v2515 = vunpack.c.l.b16 %v2002
        %v2516 = vunpack.c.l.b16 %v2003
        %v2517 = vunpack.c.l.b16 %v2004
        %v2518 = vunpack.c.l.b16 %v2005
        %v2519 = vunpack.c.l.b16 %v2006
        %v2520 = vunpack.c.l.b16 %v2007
        %v2521 = vunpack.c.l.b16 %v2008
        %v2522 = vunpack.c.l.b16 %v2009
        %v2523 = vunpack.c.l.b16 %v2010
        %v2524 = vunpack.c.l.b16 %v2011
        %v2525 = vunpack.c.l.b16 %v2012
        %v2526 = vunpack.c.l.b16 %v2013
        %v2527 = vunpack.c.l.b16 %v2014
        %v2528 = vunpack.c.l.b16 %v2015
        %v2529 = vunpack.c.l.b16 %v2016
        %v2530 = vunpack.c.l.b16 %v2017
        %v2531 = vunpack.c.l.b16 %v2018
        %v2532 = vunpack.c.l.b16 %v2019
        %v2533 = vunpack.c.l.b16 %v2020
        %v2534 = vunpack.c.l.b16 %v2021
        %v2535 = vunpack.c.l.b16 %v2022
        %v2536 = vunpack.c.l.b16 %v2023
        %v2537 = vunpack.c.l.b16 %v2024
        %v2538 = vunpack.c.l.b16 %v2025
        %v2539 = vunpack.c.l.b16 %v2026
        %v2540 = vunpack.c.l.b16 %v2027
        %v2541 = vunpack.c.l.b16 %v2028
        %v2542 = vunpack.c.l.b16 %v2029
        %v2543 = vunpack.c.l.b16 %v2030
        %v2544 = vunpack.c.l.b16 %v2031
        %v2545 = vunpack.c.l.b16 %v2032
        %v2546 = vunpack.c.l.b16 %v2033
        %v2547 = vunpack.c.l.b16 %v2034
        %v2548 = vunpack.c.l.b16 %v2035
        %v2549 = vunpack.c.l.b16 %v2036
        %v2550 = vunpack.c.l.b16 %v2037
        %v2551 = vunpack.c.l.b16 %v2038
        %v2552 = vunpack.c.l.b16 %v2039
        %v2553 = vunpack.c.l.b16 %v2040
        %v2554 = vunpack.c.l.b16 %v2041
        %v2555 = vunpack.c.l.b16 %v2042
        %v2556 = vunpack.c.l.b16 %v2043
        %v2557 = vunpack.c.l.b16 %v2044
        %v2558 = vunpack.c.l.b16 %v2045
        %v2559 = vunpack.c.l.b16 %v2046
        %v2560 = vunpack.c.l.b16 %v2047
        %v2561 = vunpack.c.l.b16 %v2048
        %v2562 = vunpack.c.l.b16 %v2049
        %v2563 = vunpack.c.l.b16 %v2050
        %v2564 = vunpack.c.l.b16 %v2051
        %v2565 = vunpack.c.l.b16 %v2052
        %v2566 = vunpack.c.l.b16 %v2053
        %v2567 = vunpack.c.l.b16 %v2054
        %v2568 = vunpack.c.l.b16 %v2055
        %v2569 = vunpack.c.l.b16 %v2056
        %v2570 = vunpack.c.l.b16 %v2057
        %v2571 = vunpack.c.l.b16 %v2058
        %v2572 = vunpack.c.l.b16 %v2059
        %v2573 = vunpack.c.l.b16 %v2060
        %v2574 = vunpack.c.l.b16 %v2061
        %v2575 = vunpack.c.l.b16 %v2062
        %v2576 = vunpack.c.l.b16 %v2063
        %v2577 = vunpack.c.l.b16 %v2064
        %v2578 = vunpack.c.l.b16 %v2065
        %v2579 = vunpack.c.l.b16 %v2066
        %v2580 = vunpack.c.l.b16 %v2067
        %v2581 = vunpack.c.l.b16 %v2068
        %v2582 = vunpack.c.l.b16 %v2069
        %v2583 = vunpack.c.l.b16 %v2070
        %v2584 = vunpack.c.l.b16 %v2071
        %v2585 = vunpack.c.l.b16 %v2072
        %v2586 = vunpack.c.l.b16 %v2073
        %v2587 = vunpack.c.l.b16 %v2074
        %v2588 = vunpack.c.l.b16 %v2075
        %v2589 = vunpack.c.l.b16 %v2076
        %v2590 = vunpack.c.l.b16 %v2077
        %v2591 = vunpack.c.l.b16 %v2078
        %v2592 = vunpack.c.l.b16 %v2079
        %v2593 = vunpack.c.l.b16 %v2080
        %v2594 = vunpack.c.l.b16 %v2081
        %v2595 = vunpack.c.l.b16 %v2082
        %v2596 = vunpack.c.l.b16 %v2083
        %v2597 = vunpack.c.l.b16 %v2084
        %v2598 = vunpack.c.l.b16 %v2085
        %v2599 = vunpack.c.l.b16 %v2086
        %v2600 = vunpack.c.l.b16 %v2087
        %v2601 = vunpack.c.l.b16 %v2088
        %v2602 = vunpack.c.l.b16 %v2089
        %v2603 = vunpack.c.l.b16 %v2090
        %v2604 = vunpack.c.l.b16 %v2091
        %v2605 = vunpack.c.l.b16 %v2092
        %v2606 = vunpack.c.l.b16 %v2093
        %v2607 = vunpack.c.l.b16 %v2094
        %v2608 = vunpack.c.l.b16 %v2095
        %v2609 = vunpack.c.l.b16 %v2096
        %v2610 = vunpack.c.l.b16 %v2097
        %v2611 = vunpack.c.l.b16 %v2098
        %v2612 = vunpack.c.l.b16 %v2099
        %v2613 = vunpack.c.l.b16 %v2100
        %v2614 = vunpack.c.l.b16 %v2101
        %v2615 = vunpack.c.l.b16 %v2102
        %v2616 = vunpack.c.l.b16 %v2103
        %v2617 = vunpack.c.l.b16 %v2104
        %v2618 = vunpack.c.l.b16 %v2105
        %v2619 = vunpack.c.l.b16 %v2106
        %v2620 = vunpack.c.l.b16 %v2107
        %v2621 = vunpack.c.l.b16 %v2108
        %v2622 = vunpack.c.l.b16 %v2109
        %v2623 = vunpack.c.l.b16 %v2110
        %v2624 = vunpack.c.l.b16 %v2111
        %v2625 = vunpack.c.l.b16 %v2112
        %v2626 = vunpack.c.l.b16 %v2113
        %v2627 = vunpack.c.l.b16 %v2114
        %v2628 = vunpack.c.l.b16 %v2115
        %v2629 = vunpack.c.l.b16 %v2116
        %v2630 = vunpack.c.l.b16 %v2117
        %v2631 = vunpack.c.l.b16 %v2118
        %v2632 = vunpack.c.l.b16 %v2119
        %v2633 = vunpack.c.l.b16 %v2120
        %v2634 = vunpack.c.l.b16 %v2121
        %v2635 = vunpack.c.l.b16 %v2122
        %v2636 = vunpack.c.l.b16 %v2123
        %v2637 = vunpack.c.l.b16 %v2124
        %v2638 = vunpack.c.l.b16 %v2125
        %v2639 = vunpack.c.l.b16 %v2126
        %v2640 = vunpack.c.l.b16 %v2127
        %v2641 = vunpack.c.l.b16 %v2128
        %v2642 = vunpack.c.l.b16 %v2129
        %v2643 = vunpack.c.l.b16 %v2130
        %v2644 = vunpack.c.l.b16 %v2131
        %v2645 = vunpack.c.l.b16 %v2132
        %v2646 = vunpack.c.l.b16 %v2133
        %v2647 = vunpack.c.l.b16 %v2134
        %v2648 = vunpack.c.l.b16 %v2135
        %v2649 = vunpack.c.l.b16 %v2136
        %v2650 = vunpack.c.l.b16 %v2137
        %v2651 = vunpack.c.l.b16 %v2138
        %v2652 = vunpack.c.l.b16 %v2139
        %v2653 = vunpack.c.l.b16 %v2140
        %v2654 = vunpack.c.l.b16 %v2141
        %v2655 = vunpack.c.l.b16 %v2142
        %v2656 = vunpack.c.l.b16 %v2143
        %v2657 = vunpack.c.l.b16 %v2144
        %v2658 = vunpack.c.l.b16 %v2145
        %v2659 = vunpack.c.l.b16 %v2146
        %v2660 = vunpack.c.l.b16 %v2147
        %v2661 = vunpack.c.l.b16 %v2148
        %v2662 = vunpack.c.l.b16 %v2149
        %v2663 = vunpack.c.l.b16 %v2150
        %v2664 = vunpack.c.l.b16 %v2151
        %v2665 = vunpack.c.l.b16 %v2152
        %v2666 = vunpack.c.l.b16 %v2153
        %v2667 = vunpack.c.l.b16 %v2154
        %v2668 = vunpack.c.l.b16 %v2155
        %v2669 = vunpack.c.l.b16 %v2156
        %v2670 = vunpack.c.l.b16 %v2157
        %v2671 = vunpack.c.l.b16 %v2158
        %v2672 = vunpack.c.l.b16 %v2159
        %v2673 = vunpack.c.l.b16 %v2160
        %v2674 = vunpack.c.l.b16 %v2161
        %v2675 = vunpack.c.l.b16 %v2162
        %v2676 = vunpack.c.l.b16 %v2163
        %v2677 = vunpack.c.l.b16 %v2164
        %v2678 = vunpack.c.l.b16 %v2165
        %v2679 = vunpack.c.l.b16 %v2166
        %v2680 = vunpack.c.l.b16 %v2167
        %v2681 = vunpack.c.l.b16 %v2168
        %v2682 = vunpack.c.l.b16 %v2169
        %v2683 = vunpack.c.l.b16 %v2170
        %v2684 = vunpack.c.l.b16 %v2171
        %v2685 = vunpack.c.l.b16 %v2172
        %v2686 = vunpack.c.l.b16 %v2173
        %v2687 = vunpack.c.l.b16 %v2174
        %v2688 = vunpack.c.l.b16 %v2175
        %v2689 = vunpack.c.l.b16 %v2176
        %v2690 = vunpack.c.l.b16 %v2177
        %v2691 = vunpack.c.l.b16 %v2178
        %v2692 = vunpack.c.l.b16 %v2179
        %v2693 = vunpack.c.l.b16 %v2180
        %v2694 = vunpack.c.l.b16 %v2181
        %v2695 = vunpack.c.l.b16 %v2182
        %v2696 = vunpack.c.l.b16 %v2183
        %v2697 = vunpack.c.l.b16 %v2184
        %v2698 = vunpack.c.l.b16 %v2185
        %v2699 = vunpack.c.l.b16 %v2186
        %v2700 = vunpack.c.l.b16 %v2187
        %v2701 = vunpack.c.l.b16 %v2188
        %v2702 = vunpack.c.l.b16 %v2189
        %v2703 = vunpack.c.l.b16 %v2190
        %v2704 = vunpack.c.l.b16 %v2191
        %v2705 = vunpack.c.l.b16 %v2192
        %v2706 = vunpack.c.l.b16 %v2193
        %v2707 = vunpack.c.l.b16 %v2194
        %v2708 = vunpack.c.l.b16 %v2195
        %v2709 = vunpack.c.l.b16 %v2196
        %v2710 = vunpack.c.l.b16 %v2197
        %v2711 = vunpack.c.l.b16 %v2198
        %v2712 = vunpack.c.l.b16 %v2199
        %v2713 = vunpack.c.l.b16 %v2200
        %v2714 = vunpack.c.l.b16 %v2201
        %v2715 = vunpack.c.l.b16 %v2202
        %v2716 = vunpack.c.l.b16 %v2203
        %v2717 = vunpack.c.l.b16 %v2204
        %v2718 = vunpack.c.l.b16 %v2205
        %v2719 = vunpack.c.l.b16 %v2206
        %v2720 = vunpack.c.l.b16 %v2207
        %v2721 = vpack.c.b16 %v2466, %v2465
        %v2722 = vpack.c.b16 %v2468, %v2467
        %v2723 = vpack.c.b16 %v2470, %v2469
        %v2724 = vpack.c.b16 %v2472, %v2471
        %v2725 = vpack.c.b16 %v2474, %v2473
        %v2726 = vpack.c.b16 %v2476, %v2475
        %v2727 = vpack.c.b16 %v2478, %v2477
        %v2728 = vpack.c.b16 %v2480, %v2479
        %v2729 = vpack.c.b16 %v2482, %v2481
        %v2730 = vpack.c.b16 %v2484, %v2483
        %v2731 = vpack.c.b16 %v2486, %v2485
        %v2732 = vpack.c.b16 %v2488, %v2487
        %v2733 = vpack.c.b16 %v2490, %v2489
        %v2734 = vpack.c.b16 %v2492, %v2491
        %v2735 = vpack.c.b16 %v2494, %v2493
        %v2736 = vpack.c.b16 %v2496, %v2495
        %v2737 = vpack.c.b16 %v2498, %v2497
        %v2738 = vpack.c.b16 %v2500, %v2499
        %v2739 = vpack.c.b16 %v2502, %v2501
        %v2740 = vpack.c.b16 %v2504, %v2503
        %v2741 = vpack.c.b16 %v2506, %v2505
        %v2742 = vpack.c.b16 %v2508, %v2507
        %v2743 = vpack.c.b16 %v2510, %v2509
        %v2744 = vpack.c.b16 %v2512, %v2511
        %v2745 = vpack.c.b16 %v2514, %v2513
        %v2746 = vpack.c.b16 %v2516, %v2515
        %v2747 = vpack.c.b16 %v2518, %v2517
        %v2748 = vpack.c.b16 %v2520, %v2519
        %v2749 = vpack.c.b16 %v2522, %v2521
        %v2750 = vpack.c.b16 %v2524, %v2523
        %v2751 = vpack.c.b16 %v2526, %v2525
        %v2752 = vpack.c.b16 %v2528, %v2527
        %v2753 = vpack.c.b16 %v2530, %v2529
        %v2754 = vpack.c.b16 %v2532, %v2531
        %v2755 = vpack.c.b16 %v2534, %v2533
        %v2756 = vpack.c.b16 %v2536, %v2535
        %v2757 = vpack.c.b16 %v2538, %v2537
        %v2758 = vpack.c.b16 %v2540, %v2539
        %v2759 = vpack.c.b16 %v2542, %v2541
        %v2760 = vpack.c.b16 %v2544, %v2543
        %v2761 = vpack.c.b16 %v2546, %v2545
        %v2762 = vpack.c.b16 %v2548, %v2547
        %v2763 = vpack.c.b16 %v2550, %v2549
        %v2764 = vpack.c.b16 %v2552, %v2551
        %v2765 = vpack.c.b16 %v2554, %v2553
        %v2766 = vpack.c.b16 %v2556, %v2555
        %v2767 = vpack.c.b16 %v2558, %v2557
        %v2768 = vpack.c.b16 %v2560, %v2559
        %v2769 = vpack.c.b16 %v2562, %v2561
        %v2770 = vpack.c.b16 %v2564, %v2563
        %v2771 = vpack.c.b16 %v2566, %v2565
        %v2772 = vpack.c.b16 %v2568, %v2567
        %v2773 = vpack.c.b16 %v2570, %v2569
        %v2774 = vpack.c.b16 %v2572, %v2571
        %v2775 = vpack.c.b16 %v2574, %v2573
        %v2776 = vpack.c.b16 %v2576, %v2575
        %v2777 = vpack.c.b16 %v2578, %v2577
        %v2778 = vpack.c.b16 %v2580, %v2579
        %v2779 = vpack.c.b16 %v2582, %v2581
        %v2780 = vpack.c.b16 %v2584, %v2583
        %v2781 = vpack.c.b16 %v2586, %v2585
        %v2782 = vpack.c.b16 %v2588, %v2587
        %v2783 = vpack.c.b16 %v2590, %v2589
        %v2784 = vpack.c.b16 %v2592, %v2591
        %v2785 = vpack.c.b16 %v2594, %v2593
        %v2786 = vpack.c.b16 %v2596, %v2595
        %v2787 = vpack.c.b16 %v2598, %v2597
        %v2788 = vpack.c.b16 %v2600, %v2599
        %v2789 = vpack.c.b16 %v2602, %v2601
        %v2790 = vpack.c.b16 %v2604, %v2603
        %v2791 = vpack.c.b16 %v2606, %v2605
        %v2792 = vpack.c.b16 %v2608, %v2607
        %v2793 = vpack.c.b16 %v2610, %v2609
        %v2794 = vpack.c.b16 %v2612, %v2611
        %v2795 = vpack.c.b16 %v2614, %v2613
        %v2796 = vpack.c.b16 %v2616, %v2615
        %v2797 = vpack.c.b16 %v2618, %v2617
        %v2798 = vpack.c.b16 %v2620, %v2619
        %v2799 = vpack.c.b16 %v2622, %v2621
        %v2800 = vpack.c.b16 %v2624, %v2623
        %v2801 = vpack.c.b16 %v2626, %v2625
        %v2802 = vpack.c.b16 %v2628, %v2627
        %v2803 = vpack.c.b16 %v2630, %v2629
        %v2804 = vpack.c.b16 %v2632, %v2631
        %v2805 = vpack.c.b16 %v2634, %v2633
        %v2806 = vpack.c.b16 %v2636, %v2635
        %v2807 = vpack.c.b16 %v2638, %v2637
        %v2808 = vpack.c.b16 %v2640, %v2639
        %v2809 = vpack.c.b16 %v2642, %v2641
        %v2810 = vpack.c.b16 %v2644, %v2643
        %v2811 = vpack.c.b16 %v2646, %v2645
        %v2812 = vpack.c.b16 %v2648, %v2647
        %v2813 = vpack.c.b16 %v2650, %v2649
        %v2814 = vpack.c.b16 %v2652, %v2651
        %v2815 = vpack.c.b16 %v2654, %v2653
        %v2816 = vpack.c.b16 %v2656, %v2655
        %v2817 = vpack.c.b16 %v2658, %v2657
        %v2818 = vpack.c.b16 %v2660, %v2659
        %v2819 = vpack.c.b16 %v2662, %v2661
        %v2820 = vpack.c.b16 %v2664, %v2663
        %v2821 = vpack.c.b16 %v2666, %v2665
        %v2822 = vpack.c.b16 %v2668, %v2667
        %v2823 = vpack.c.b16 %v2670, %v2669
        %v2824 = vpack.c.b16 %v2672, %v2671
        %v2825 = vpack.c.b16 %v2674, %v2673
        %v2826 = vpack.c.b16 %v2676, %v2675
        %v2827 = vpack.c.b16 %v2678, %v2677
        %v2828 = vpack.c.b16 %v2680, %v2679
        %v2829 = vpack.c.b16 %v2682, %v2681
        %v2830 = vpack.c.b16 %v2684, %v2683
        %v2831 = vpack.c.b16 %v2686, %v2685
        %v2832 = vpack.c.b16 %v2688, %v2687
        %v2833 = vpack.c.b16 %v2690, %v2689
        %v2834 = vpack.c.b16 %v2692, %v2691
        %v2835 = vpack.c.b16 %v2694, %v2693
        %v2836 = vpack.c.b16 %v2696, %v2695
        %v2837 = vpack.c.b16 %v2698, %v2697
        %v2838 = vpack.c.b16 %v2700, %v2699
        %v2839 = vpack.c.b16 %v2702, %v2701
        %v2840 = vpack.c.b16 %v2704, %v2703
        %v2841 = vpack.c.b16 %v2706, %v2705
        %v2842 = vpack.c.b16 %v2708, %v2707
        %v2843 = vpack.c.b16 %v2710, %v2709
        %v2844 = vpack.c.b16 %v2712, %v2711
        %v2845 = vpack.c.b16 %v2714, %v2713
        %v2846 = vpack.c.b16 %v2716, %v2715
        %v2847 = vpack.c.b16 %v2718, %v2717
        %v2848 = vpack.c.b16 %v2720, %v2719
        %2977 = vmatprep.subr.bf16.mxu0 0
        %2978 = vmatpush1.bf16.msra.mxu0 %v2721
        %2979 = vmatprep.subr.bf16.mxu0 0
        %2980 = vmatpush1.bf16.msra.mxu0 %v2722
        %2981 = vmatprep.subr.bf16.mxu0 0
        %2982 = vmatpush1.bf16.msra.mxu0 %v2723
        %2983 = vmatprep.subr.bf16.mxu0 0
        %2984 = vmatpush1.bf16.msra.mxu0 %v2724
        %2985 = vmatprep.subr.bf16.mxu0 0
        %2986 = vmatpush1.bf16.msra.mxu0 %v2725
        %2987 = vmatprep.subr.bf16.mxu0 0
        %2988 = vmatpush1.bf16.msra.mxu0 %v2726
        %2989 = vmatprep.subr.bf16.mxu0 0
        %2990 = vmatpush1.bf16.msra.mxu0 %v2727
        %2991 = vmatprep.subr.bf16.mxu0 0
        %2992 = vmatpush1.bf16.msra.mxu0 %v2728
        %2993 = vmatprep.subr.bf16.mxu0 0
        %2994 = vmatpush1.bf16.msra.mxu0 %v2729
        %2995 = vmatprep.subr.bf16.mxu0 0
        %2996 = vmatpush1.bf16.msra.mxu0 %v2730
        %2997 = vmatprep.subr.bf16.mxu0 0
        %2998 = vmatpush1.bf16.msra.mxu0 %v2731
        %2999 = vmatprep.subr.bf16.mxu0 0
        %3000 = vmatpush1.bf16.msra.mxu0 %v2732
        %3001 = vmatprep.subr.bf16.mxu0 0
        %3002 = vmatpush1.bf16.msra.mxu0 %v2733
        %3003 = vmatprep.subr.bf16.mxu0 0
        %3004 = vmatpush1.bf16.msra.mxu0 %v2734
        %3005 = vmatprep.subr.bf16.mxu0 0
        %3006 = vmatpush1.bf16.msra.mxu0 %v2735
        %3007 = vmatprep.subr.bf16.mxu0 0
        %3008 = vmatpush1.bf16.msra.mxu0 %v2736
        %3009 = vmatprep.mubr.bf16.mxu0 %v1925
        %3010 = vmatmul.mubr.bf16.gmra.mrb[0].mxu0 %v1905
        %v3011 = vpop.f32.mrb[0].mxu0
        %v3012 = vadd.f32 %v2208, %v3011
        %v3013 = vpop.f32.mrb[0].mxu0
        %v3014 = vpop.f32.mrb[0].mxu0
        %v3015 = vpop.f32.mrb[0].mxu0
        %3016 = vdwg.mxu0
        %3017 = vmatprep.subr.bf16.mxu0 0
        %3018 = vmatpush1.bf16.msra.mxu0 %v2737
        %3019 = vmatprep.subr.bf16.mxu0 0
        %3020 = vmatpush1.bf16.msra.mxu0 %v2738
        %3021 = vmatprep.subr.bf16.mxu0 0
        %3022 = vmatpush1.bf16.msra.mxu0 %v2739
        %3023 = vmatprep.subr.bf16.mxu0 0
        %3024 = vmatpush1.bf16.msra.mxu0 %v2740
        %3025 = vmatprep.subr.bf16.mxu0 0
        %3026 = vmatpush1.bf16.msra.mxu0 %v2741
        %3027 = vmatprep.subr.bf16.mxu0 0
        %3028 = vmatpush1.bf16.msra.mxu0 %v2742
        %3029 = vmatprep.subr.bf16.mxu0 0
        %3030 = vmatpush1.bf16.msra.mxu0 %v2743
        %3031 = vmatprep.subr.bf16.mxu0 0
        %3032 = vmatpush1.bf16.msra.mxu0 %v2744
        %3033 = vmatprep.subr.bf16.mxu0 0
        %3034 = vmatpush1.bf16.msra.mxu0 %v2745
        %3035 = vmatprep.subr.bf16.mxu0 0
        %3036 = vmatpush1.bf16.msra.mxu0 %v2746
        %3037 = vmatprep.subr.bf16.mxu0 0
        %3038 = vmatpush1.bf16.msra.mxu0 %v2747
        %3039 = vmatprep.subr.bf16.mxu0 0
        %3040 = vmatpush1.bf16.msra.mxu0 %v2748
        %3041 = vmatprep.subr.bf16.mxu0 0
        %3042 = vmatpush1.bf16.msra.mxu0 %v2749
        %3043 = vmatprep.subr.bf16.mxu0 0
        %3044 = vmatpush1.bf16.msra.mxu0 %v2750
        %3045 = vmatprep.subr.bf16.mxu0 0
        %3046 = vmatpush1.bf16.msra.mxu0 %v2751
        %3047 = vmatprep.subr.bf16.mxu0 0
        %3048 = vmatpush1.bf16.msra.mxu0 %v2752
        %3049 = vmatprep.mubr.bf16.mxu0 %v1929
        %3050 = vmatmul.mubr.bf16.gmra.mrb[0].mxu0 %v1927
        %v3051 = vpop.f32.mrb[0].mxu0
        %v3052 = vadd.f32 %v3012, %v3051
        %v3053 = vpop.f32.mrb[0].mxu0
        %v3054 = vpop.f32.mrb[0].mxu0
        %v3055 = vpop.f32.mrb[0].mxu0
        %3056 = vdwg.mxu0
        %3057 = vmatprep.subr.bf16.mxu0 0
        %3058 = vmatpush1.bf16.msra.mxu0 %v2753
        %3059 = vmatprep.subr.bf16.mxu0 0
        %3060 = vmatpush1.bf16.msra.mxu0 %v2754
        %3061 = vmatprep.subr.bf16.mxu0 0
        %3062 = vmatpush1.bf16.msra.mxu0 %v2755
        %3063 = vmatprep.subr.bf16.mxu0 0
        %3064 = vmatpush1.bf16.msra.mxu0 %v2756
        %3065 = vmatprep.subr.bf16.mxu0 0
        %3066 = vmatpush1.bf16.msra.mxu0 %v2757
        %3067 = vmatprep.subr.bf16.mxu0 0
        %3068 = vmatpush1.bf16.msra.mxu0 %v2758
        %3069 = vmatprep.subr.bf16.mxu0 0
        %3070 = vmatpush1.bf16.msra.mxu0 %v2759
        %3071 = vmatprep.subr.bf16.mxu0 0
        %3072 = vmatpush1.bf16.msra.mxu0 %v2760
        %3073 = vmatprep.subr.bf16.mxu0 0
        %3074 = vmatpush1.bf16.msra.mxu0 %v2761
        %3075 = vmatprep.subr.bf16.mxu0 0
        %3076 = vmatpush1.bf16.msra.mxu0 %v2762
        %3077 = vmatprep.subr.bf16.mxu0 0
        %3078 = vmatpush1.bf16.msra.mxu0 %v2763
        %3079 = vmatprep.subr.bf16.mxu0 0
        %3080 = vmatpush1.bf16.msra.mxu0 %v2764
        %3081 = vmatprep.subr.bf16.mxu0 0
        %3082 = vmatpush1.bf16.msra.mxu0 %v2765
        %3083 = vmatprep.subr.bf16.mxu0 0
        %3084 = vmatpush1.bf16.msra.mxu0 %v2766
        %3085 = vmatprep.subr.bf16.mxu0 0
        %3086 = vmatpush1.bf16.msra.mxu0 %v2767
        %3087 = vmatprep.subr.bf16.mxu0 0
        %3088 = vmatpush1.bf16.msra.mxu0 %v2768
        %3089 = vmatprep.mubr.bf16.mxu0 %v1932
        %3090 = vmatmul.mubr.bf16.gmra.mrb[0].mxu0 %v1911
        %v3091 = vpop.f32.mrb[0].mxu0
        %v3092 = vadd.f32 %v3052, %v3091
        %v3093 = vpop.f32.mrb[0].mxu0
        %v3094 = vpop.f32.mrb[0].mxu0
        %v3095 = vpop.f32.mrb[0].mxu0
        %3096 = vdwg.mxu0
        %3097 = vmatprep.subr.bf16.mxu0 0
        %3098 = vmatpush1.bf16.msra.mxu0 %v2769
        %3099 = vmatprep.subr.bf16.mxu0 0
        %3100 = vmatpush1.bf16.msra.mxu0 %v2770
        %3101 = vmatprep.subr.bf16.mxu0 0
        %3102 = vmatpush1.bf16.msra.mxu0 %v2771
        %3103 = vmatprep.subr.bf16.mxu0 0
        %3104 = vmatpush1.bf16.msra.mxu0 %v2772
        %3105 = vmatprep.subr.bf16.mxu0 0
        %3106 = vmatpush1.bf16.msra.mxu0 %v2773
        %3107 = vmatprep.subr.bf16.mxu0 0
        %3108 = vmatpush1.bf16.msra.mxu0 %v2774
        %3109 = vmatprep.subr.bf16.mxu0 0
        %3110 = vmatpush1.bf16.msra.mxu0 %v2775
        %3111 = vmatprep.subr.bf16.mxu0 0
        %3112 = vmatpush1.bf16.msra.mxu0 %v2776
        %3113 = vmatprep.subr.bf16.mxu0 0
        %3114 = vmatpush1.bf16.msra.mxu0 %v2777
        %3115 = vmatprep.subr.bf16.mxu0 0
        %3116 = vmatpush1.bf16.msra.mxu0 %v2778
        %3117 = vmatprep.subr.bf16.mxu0 0
        %3118 = vmatpush1.bf16.msra.mxu0 %v2779
        %3119 = vmatprep.subr.bf16.mxu0 0
        %3120 = vmatpush1.bf16.msra.mxu0 %v2780
        %3121 = vmatprep.subr.bf16.mxu0 0
        %3122 = vmatpush1.bf16.msra.mxu0 %v2781
        %3123 = vmatprep.subr.bf16.mxu0 0
        %3124 = vmatpush1.bf16.msra.mxu0 %v2782
        %3125 = vmatprep.subr.bf16.mxu0 0
        %3126 = vmatpush1.bf16.msra.mxu0 %v2783
        %3127 = vmatprep.subr.bf16.mxu0 0
        %3128 = vmatpush1.bf16.msra.mxu0 %v2784
        %3129 = vmatprep.mubr.bf16.mxu0 %v1936
        %3130 = vmatmul.mubr.bf16.gmra.mrb[0].mxu0 %v1934
        %v3131 = vpop.f32.mrb[0].mxu0
        %v3132 = vadd.f32 %v3092, %v3131
        %v3133 = vpop.f32.mrb[0].mxu0
        %v3134 = vpop.f32.mrb[0].mxu0
        %v3135 = vpop.f32.mrb[0].mxu0
        %3136 = vdwg.mxu0
        %3137 = vmatprep.subr.bf16.mxu0 0
        %3138 = vmatpush1.bf16.msra.mxu0 %v2785
        %3139 = vmatprep.subr.bf16.mxu0 0
        %3140 = vmatpush1.bf16.msra.mxu0 %v2786
        %3141 = vmatprep.subr.bf16.mxu0 0
        %3142 = vmatpush1.bf16.msra.mxu0 %v2787
        %3143 = vmatprep.subr.bf16.mxu0 0
        %3144 = vmatpush1.bf16.msra.mxu0 %v2788
        %3145 = vmatprep.subr.bf16.mxu0 0
        %3146 = vmatpush1.bf16.msra.mxu0 %v2789
        %3147 = vmatprep.subr.bf16.mxu0 0
        %3148 = vmatpush1.bf16.msra.mxu0 %v2790
        %3149 = vmatprep.subr.bf16.mxu0 0
        %3150 = vmatpush1.bf16.msra.mxu0 %v2791
        %3151 = vmatprep.subr.bf16.mxu0 0
        %3152 = vmatpush1.bf16.msra.mxu0 %v2792
        %3153 = vmatprep.subr.bf16.mxu0 0
        %3154 = vmatpush1.bf16.msra.mxu0 %v2793
        %3155 = vmatprep.subr.bf16.mxu0 0
        %3156 = vmatpush1.bf16.msra.mxu0 %v2794
        %3157 = vmatprep.subr.bf16.mxu0 0
        %3158 = vmatpush1.bf16.msra.mxu0 %v2795
        %3159 = vmatprep.subr.bf16.mxu0 0
        %3160 = vmatpush1.bf16.msra.mxu0 %v2796
        %3161 = vmatprep.subr.bf16.mxu0 0
        %3162 = vmatpush1.bf16.msra.mxu0 %v2797
        %3163 = vmatprep.subr.bf16.mxu0 0
        %3164 = vmatpush1.bf16.msra.mxu0 %v2798
        %3165 = vmatprep.subr.bf16.mxu0 0
        %3166 = vmatpush1.bf16.msra.mxu0 %v2799
        %3167 = vmatprep.subr.bf16.mxu0 0
        %3168 = vmatpush1.bf16.msra.mxu0 %v2800
        %3169 = vmatprep.mubr.bf16.mxu0 %v1939
        %3170 = vmatmul.mubr.bf16.gmra.mrb[0].mxu0 %v1917
        %v3171 = vpop.f32.mrb[0].mxu0
        %v3172 = vadd.f32 %v3132, %v3171
        %v3173 = vpop.f32.mrb[0].mxu0
        %v3174 = vpop.f32.mrb[0].mxu0
        %v3175 = vpop.f32.mrb[0].mxu0
        %3176 = vdwg.mxu0
        %3177 = vmatprep.subr.bf16.mxu0 0
        %3178 = vmatpush1.bf16.msra.mxu0 %v2801
        %3179 = vmatprep.subr.bf16.mxu0 0
        %3180 = vmatpush1.bf16.msra.mxu0 %v2802
        %3181 = vmatprep.subr.bf16.mxu0 0
        %3182 = vmatpush1.bf16.msra.mxu0 %v2803
        %3183 = vmatprep.subr.bf16.mxu0 0
        %3184 = vmatpush1.bf16.msra.mxu0 %v2804
        %3185 = vmatprep.subr.bf16.mxu0 0
        %3186 = vmatpush1.bf16.msra.mxu0 %v2805
        %3187 = vmatprep.subr.bf16.mxu0 0
        %3188 = vmatpush1.bf16.msra.mxu0 %v2806
        %3189 = vmatprep.subr.bf16.mxu0 0
        %3190 = vmatpush1.bf16.msra.mxu0 %v2807
        %3191 = vmatprep.subr.bf16.mxu0 0
        %3192 = vmatpush1.bf16.msra.mxu0 %v2808
        %3193 = vmatprep.subr.bf16.mxu0 0
        %3194 = vmatpush1.bf16.msra.mxu0 %v2809
        %3195 = vmatprep.subr.bf16.mxu0 0
        %3196 = vmatpush1.bf16.msra.mxu0 %v2810
        %3197 = vmatprep.subr.bf16.mxu0 0
        %3198 = vmatpush1.bf16.msra.mxu0 %v2811
        %3199 = vmatprep.subr.bf16.mxu0 0
        %3200 = vmatpush1.bf16.msra.mxu0 %v2812
        %3201 = vmatprep.subr.bf16.mxu0 0
        %3202 = vmatpush1.bf16.msra.mxu0 %v2813
        %3203 = vmatprep.subr.bf16.mxu0 0
        %3204 = vmatpush1.bf16.msra.mxu0 %v2814
        %3205 = vmatprep.subr.bf16.mxu0 0
        %3206 = vmatpush1.bf16.msra.mxu0 %v2815
        %3207 = vmatprep.subr.bf16.mxu0 0
        %3208 = vmatpush1.bf16.msra.mxu0 %v2816
        %3209 = vmatprep.mubr.bf16.mxu0 %v1943
        %3210 = vmatmul.mubr.bf16.gmra.mrb[0].mxu0 %v1941
        %v3211 = vpop.f32.mrb[0].mxu0
        %v3212 = vadd.f32 %v3172, %v3211
        %v3213 = vpop.f32.mrb[0].mxu0
        %v3214 = vpop.f32.mrb[0].mxu0
        %v3215 = vpop.f32.mrb[0].mxu0
        %3216 = vdwg.mxu0
        %3217 = vmatprep.subr.bf16.mxu0 0
        %3218 = vmatpush1.bf16.msra.mxu0 %v2817
        %3219 = vmatprep.subr.bf16.mxu0 0
        %3220 = vmatpush1.bf16.msra.mxu0 %v2818
        %3221 = vmatprep.subr.bf16.mxu0 0
        %3222 = vmatpush1.bf16.msra.mxu0 %v2819
        %3223 = vmatprep.subr.bf16.mxu0 0
        %3224 = vmatpush1.bf16.msra.mxu0 %v2820
        %3225 = vmatprep.subr.bf16.mxu0 0
        %3226 = vmatpush1.bf16.msra.mxu0 %v2821
        %3227 = vmatprep.subr.bf16.mxu0 0
        %3228 = vmatpush1.bf16.msra.mxu0 %v2822
        %3229 = vmatprep.subr.bf16.mxu0 0
        %3230 = vmatpush1.bf16.msra.mxu0 %v2823
        %3231 = vmatprep.subr.bf16.mxu0 0
        %3232 = vmatpush1.bf16.msra.mxu0 %v2824
        %3233 = vmatprep.subr.bf16.mxu0 0
        %3234 = vmatpush1.bf16.msra.mxu0 %v2825
        %3235 = vmatprep.subr.bf16.mxu0 0
        %3236 = vmatpush1.bf16.msra.mxu0 %v2826
        %3237 = vmatprep.subr.bf16.mxu0 0
        %3238 = vmatpush1.bf16.msra.mxu0 %v2827
        %3239 = vmatprep.subr.bf16.mxu0 0
        %3240 = vmatpush1.bf16.msra.mxu0 %v2828
        %3241 = vmatprep.subr.bf16.mxu0 0
        %3242 = vmatpush1.bf16.msra.mxu0 %v2829
        %3243 = vmatprep.subr.bf16.mxu0 0
        %3244 = vmatpush1.bf16.msra.mxu0 %v2830
        %3245 = vmatprep.subr.bf16.mxu0 0
        %3246 = vmatpush1.bf16.msra.mxu0 %v2831
        %3247 = vmatprep.subr.bf16.mxu0 0
        %3248 = vmatpush1.bf16.msra.mxu0 %v2832
        %3249 = vmatprep.mubr.bf16.mxu0 %v1946
        %3250 = vmatmul.mubr.bf16.gmra.mrb[0].mxu0 %v1923
        %v3251 = vpop.f32.mrb[0].mxu0
        %v3252 = vadd.f32 %v3212, %v3251
        %v3253 = vpop.f32.mrb[0].mxu0
        %v3254 = vpop.f32.mrb[0].mxu0
        %v3255 = vpop.f32.mrb[0].mxu0
        %3256 = vdwg.mxu0
        %3257 = vmatprep.subr.bf16.mxu0 0
        %3258 = vmatpush1.bf16.msra.mxu0 %v2833
        %3259 = vmatprep.subr.bf16.mxu0 0
        %3260 = vmatpush1.bf16.msra.mxu0 %v2834
        %3261 = vmatprep.subr.bf16.mxu0 0
        %3262 = vmatpush1.bf16.msra.mxu0 %v2835
        %3263 = vmatprep.subr.bf16.mxu0 0
        %3264 = vmatpush1.bf16.msra.mxu0 %v2836
        %3265 = vmatprep.subr.bf16.mxu0 0
        %3266 = vmatpush1.bf16.msra.mxu0 %v2837
        %3267 = vmatprep.subr.bf16.mxu0 0
        %3268 = vmatpush1.bf16.msra.mxu0 %v2838
        %3269 = vmatprep.subr.bf16.mxu0 0
        %3270 = vmatpush1.bf16.msra.mxu0 %v2839
        %3271 = vmatprep.subr.bf16.mxu0 0
        %3272 = vmatpush1.bf16.msra.mxu0 %v2840
        %3273 = vmatprep.subr.bf16.mxu0 0
        %3274 = vmatpush1.bf16.msra.mxu0 %v2841
        %3275 = vmatprep.subr.bf16.mxu0 0
        %3276 = vmatpush1.bf16.msra.mxu0 %v2842
        %3277 = vmatprep.subr.bf16.mxu0 0
        %3278 = vmatpush1.bf16.msra.mxu0 %v2843
        %3279 = vmatprep.subr.bf16.mxu0 0
        %3280 = vmatpush1.bf16.msra.mxu0 %v2844
        %3281 = vmatprep.subr.bf16.mxu0 0
        %3282 = vmatpush1.bf16.msra.mxu0 %v2845
        %3283 = vmatprep.subr.bf16.mxu0 0
        %3284 = vmatpush1.bf16.msra.mxu0 %v2846
        %3285 = vmatprep.subr.bf16.mxu0 0
        %3286 = vmatpush1.bf16.msra.mxu0 %v2847
        %3287 = vmatprep.subr.bf16.mxu0 0
        %3288 = vmatpush1.bf16.msra.mxu0 %v2848
        %3289 = vmatprep.mubr.bf16.mxu0 %v1950
        %3290 = vmatmul.mubr.bf16.gmra.mrb[0].mxu0 %v1948
        %v3291 = vpop.f32.mrb[0].mxu0
        %v3292 = vadd.f32 %v3252, %v3291
        %v3293 = vpop.f32.mrb[0].mxu0
        %v3294 = vpop.f32.mrb[0].mxu0
        %v3295 = vpop.f32.mrb[0].mxu0
        %3296 = vdwg.mxu0
        %v3297 = vmax.f32 %v3292, 0.0
        %v3298 = vpack.c.bf16 %v3297, %v3297
        %v3299 = vld [vmem:[%s7] sm:$0xf]
        %v3300 = vld [vmem:[%s7 + $0x4] sm:$0xf]
        %v3301 = vld [vmem:[%s7 + $0x8] sm:$0xf]
        %v3302 = vld [vmem:[%s7 + $0xc] sm:$0xf]
        %v3303 = vld [vmem:[%s7 + $0x10] sm:$0xf]
        %v3304 = vld [vmem:[%s7 + $0x14] sm:$0xf]
        %v3305 = vld [vmem:[%s7 + $0x18] sm:$0xf]
        %v3306 = vld [vmem:[%s7 + $0x1c] sm:$0xf]
        %v3307 = vld [vmem:[%s7 + $0x20] sm:$0xf]
        %v3308 = vld [vmem:[%s7 + $0x24] sm:$0xf]
        %v3309 = vld [vmem:[%s7 + $0x28] sm:$0xf]
        %v3310 = vld [vmem:[%s7 + $0x2c] sm:$0xf]
        %v3311 = vld [vmem:[%s7 + $0x30] sm:$0xf]
        %v3312 = vld [vmem:[%s7 + $0x34] sm:$0xf]
        %v3313 = vld [vmem:[%s7 + $0x38] sm:$0xf]
        %v3314 = vld [vmem:[%s7 + $0x3c] sm:$0xf]
        %v3315 = vld [vmem:[%s8] sm:$0x1]
        %v3332 = vunpack.c.l.b16 %v3299
        %v3333 = vunpack.c.l.b16 %v3300
        %v3334 = vunpack.c.l.b16 %v3301
        %v3335 = vunpack.c.l.b16 %v3302
        %v3336 = vunpack.c.l.b16 %v3303
        %v3337 = vunpack.c.l.b16 %v3304
        %v3338 = vunpack.c.l.b16 %v3305
        %v3339 = vunpack.c.l.b16 %v3306
        %v3340 = vunpack.c.l.b16 %v3307
        %v3341 = vunpack.c.l.b16 %v3308
        %v3342 = vunpack.c.l.b16 %v3309
        %v3343 = vunpack.c.l.b16 %v3310
        %v3344 = vunpack.c.l.b16 %v3311
        %v3345 = vunpack.c.l.b16 %v3312
        %v3346 = vunpack.c.l.b16 %v3313
        %v3347 = vunpack.c.l.b16 %v3314
        %v3348 = vpack.c.b16 %v3333, %v3332
        %v3349 = vpack.c.b16 %v3335, %v3334
        %v3350 = vpack.c.b16 %v3337, %v3336
        %v3351 = vpack.c.b16 %v3339, %v3338
        %v3352 = vpack.c.b16 %v3341, %v3340
        %v3353 = vpack.c.b16 %v3343, %v3342
        %v3354 = vpack.c.b16 %v3345, %v3344
        %v3355 = vpack.c.b16 %v3347, %v3346
        %3364 = vmatprep.subr.bf16.mxu0 0
        %3365 = vmatpush1.bf16.msra.mxu0 %v3348
        %3366 = vmatprep.subr.bf16.mxu0 0
        %3367 = vmatpush1.bf16.msra.mxu0 %v3349
        %3368 = vmatprep.subr.bf16.mxu0 0
        %3369 = vmatpush1.bf16.msra.mxu0 %v3350
        %3370 = vmatprep.subr.bf16.mxu0 0
        %3371 = vmatpush1.bf16.msra.mxu0 %v3351
        %3372 = vmatprep.subr.bf16.mxu0 0
        %3373 = vmatpush1.bf16.msra.mxu0 %v3352
        %3374 = vmatprep.subr.bf16.mxu0 0
        %3375 = vmatpush1.bf16.msra.mxu0 %v3353
        %3376 = vmatprep.subr.bf16.mxu0 0
        %3377 = vmatpush1.bf16.msra.mxu0 %v3354
        %3378 = vmatprep.subr.bf16.mxu0 0
        %3379 = vmatpush1.bf16.msra.mxu0 %v3355
        %3380 = vmatprep.subr.bf16.mxu0 0
        %3381 = vmatpush1.bf16.msra.mxu0 0
        %3382 = vmatprep.subr.bf16.mxu0 0
        %3383 = vmatpush1.bf16.msra.mxu0 0
        %3384 = vmatprep.subr.bf16.mxu0 0
        %3385 = vmatpush1.bf16.msra.mxu0 0
        %3386 = vmatprep.subr.bf16.mxu0 0
        %3387 = vmatpush1.bf16.msra.mxu0 0
        %3388 = vmatprep.subr.bf16.mxu0 0
        %3389 = vmatpush1.bf16.msra.mxu0 0
        %3390 = vmatprep.subr.bf16.mxu0 0
        %3391 = vmatpush1.bf16.msra.mxu0 0
        %3392 = vmatprep.subr.bf16.mxu0 0
        %3393 = vmatpush1.bf16.msra.mxu0 0
        %3394 = vmatprep.subr.bf16.mxu0 0
        %3395 = vmatpush1.bf16.msra.mxu0 0
        %3396 = vmatprep.mubr.bf16.mxu0 0
        %3397 = vmatmul.mubr.bf16.gmra.mrb[0].mxu0 %v3298
        %v3398 = vpop.f32.mrb[0].mxu0
        %v3399 = vadd.f32 %v3315, %v3398
        %v3400 = vpop.f32.mrb[0].mxu0
        %v3401 = vpop.f32.mrb[0].mxu0
        %v3402 = vpop.f32.mrb[0].mxu0
        %3403 = vdwg.mxu0
        %3404 = vst [vmem:[%s324] sm:$0x1] %v3399
        %s3405 = sand.u32 %s225, 1
        %s3406 = scalar_lea.sflag [#allocation3], %s3405
        %s3407 = sand.u32 %s225, 1
        %s3408 = scalar_lea.vmem [#allocation2], %s3407
        // Predicated region
        $region57: #{net_mnist_forward.1} parent=55 // pred_check
          %p3409 = pneg %p235
        $region58: #{net_mnist_forward.1} parent=55 // pred_check_branch
          %3411 = sbr.rel (%p3409) target = $region60
        $region59: #{net_mnist_forward.1} parent=55 // pred_region
          %s3413 = ssub.s32 16, 16
          %3414 = vsyncadd %s3406, %s3413
          %s3415 = smul.addr %s23, 16
          %s3416 = scalar_lea.hbm %s9, %s3415
          %s3418 = sshll.u32 %s3408, 4
          %s3419 = int_to_ptr.vmem [resolvable:$true] %s3418
          %3421 = dma.vmem_to_hbm [thread:$0]  %s3419, 16, %s3416, %s3406
        $region60: #{net_mnist_forward.1} parent=55 // pred_fallthru
          _
      $region56: #{net_mnist_forward.1} parent=5 // pred_fallthru
        _
      %p3422 = scmp.le.s32.totalorder 2, %s18
      // Predicated region
      $region61: #{net_mnist_forward.1} parent=5 // pred_check
        %p3423 = pneg %p3422
      $region62: #{net_mnist_forward.1} parent=5 // pred_check_branch
        %3425 = sbr.rel (%p3423) target = $region64
      $region63: #{net_mnist_forward.1} parent=5 // pred_region
        %s3426 = ssub.s32 %s18, 2
        // Predicated region
        $region65: #{net_mnist_forward.1} parent=63 // pred_check
          %p3427 = pneg %p241
        $region66: #{net_mnist_forward.1} parent=63 // pred_check_branch
          %3429 = sbr.rel (%p3427) target = $region68
        $region67: #{net_mnist_forward.1} parent=63 // pred_region
          %s3430 = sand.u32 %s226, 1
          %s3431 = scalar_lea.sflag [#allocation3], %s3430
          %s3432 = sand.u32 %s226, 1
          %s3433 = scalar_lea.vmem [#allocation2], %s3432
          %3434 = dma.done %s3431, 16
        $region68: #{net_mnist_forward.1} parent=63 // pred_fallthru
          _
      $region64: #{net_mnist_forward.1} parent=5 // pred_fallthru
        _
    $region6: #{net_mnist_forward.1} parent=1 // loop_footer
      %s22 = sadd.s32 1, %s18
    $region7: #{net_mnist_forward.1} parent=1 // loop_footer_branch
      %17 = sbr.rel target = $region3
    $region8: #{net_mnist_forward.1} parent=1 // loop_exit
      _
    %3435 = vsyncpa [#allocation3], 1
    %s3436 = scalar_lea.sflag [#allocation3], 1
    %3437 = vsyncpa %s3436, 1

</llo_original>
